<compile_context>
chip_gen: v5e
topology: v5e:2x2
jax: 0.10.0
libtpu: 0.0.40
codegen_flags: <defaults>
</compile_context>

<pallas_src>
import math
import functools

import jax
import jax.numpy as jnp
from jax.experimental import pallas as pl
from jax.experimental.pallas import tpu as pltpu


def _layer_norm(x, gamma, beta, eps=1e-5):
    mu = jnp.mean(x, axis=-1, keepdims=True)
    var = jnp.mean((x - mu) ** 2, axis=-1, keepdims=True)
    return (x - mu) * jax.lax.rsqrt(var + eps) * gamma + beta


def _decoder_kernel(nhead, nb,
                    x_ref,      # (Nb*T, D)  agent queries
                    m_ref,      # (Nb*S, D)  map keys/values
                    mask_ref,   # (Nb, 1, S) int32, nonzero = padded key
                    wq_ref,     # (D, D)   attention scale folded in
                    wkv_ref,    # (D, 2D)  [Wk | Wv]
                    wo_ref,     # (D, D)
                    w1_ref,     # (D, F)
                    w2_ref,     # (F, D)
                    bkv_ref,    # (1, 2D)  [bk | bv]
                    b1_ref,     # (1, F)
                    vec_ref,    # (7, D): bq*scale, bo, g1, be1, b2, g2, be2
                    out_ref):   # (Nb*T, D)
    x = x_ref[...]                       # (Nb*T, D)
    m = m_ref[...]                       # (Nb*S, D)
    nbT, D = x.shape
    nbS = m.shape[0]
    T = nbT // nb
    S = nbS // nb
    hd = D // nhead

    vec = vec_ref[...]                   # (7, D)
    bq, bo, g1, be1 = vec[0:1, :], vec[1:2, :], vec[2:3, :], vec[3:4, :]
    b2, g2, be2 = vec[4:5, :], vec[5:6, :], vec[6:7, :]

    # key-padding mask -> additive bias (single VPU select, hidden under MXU).
    # NOTE: a fully-masked row degrades to a uniform distribution over padded
    # keys (same behaviour as the pure-JAX reference below).
    bias = jnp.where(mask_ref[...] != 0, -1e9, 0.0).astype(jnp.float32)  # (Nb,1,S)
    bias = jnp.broadcast_to(bias, (nb, T, S))   # hoisted out of the head loop

    # Full-width projections: lane-dense outputs, MXU columns filled.
    q = jnp.dot(x, wq_ref[...], preferred_element_type=jnp.float32) + bq       # (Nb*T, D)
    kv = jnp.dot(m, wkv_ref[...], preferred_element_type=jnp.float32) + bkv_ref[...]  # (Nb*S, 2D)

    o_heads = []
    for h in range(nhead):               # static, unrolled; static lane slices
        q3 = q[:, h * hd:(h + 1) * hd].reshape(nb, T, hd)
        k3 = kv[:, h * hd:(h + 1) * hd].reshape(nb, S, hd)
        v3 = kv[:, D + h * hd:D + (h + 1) * hd].reshape(nb, S, hd)
        # batched over the Nb slices in the block (single batch dim).
        s = jnp.einsum("btd,bsd->bts", q3, k3,
                       preferred_element_type=jnp.float32) + bias          # (Nb,T,S)
        s = s - jnp.max(s, axis=-1, keepdims=True)
        p = jnp.exp(s)
        p = p * pl.reciprocal(jnp.sum(p, axis=-1, keepdims=True), approx=True)
        o = jnp.einsum("bts,bsd->btd", p, v3,
                       preferred_element_type=jnp.float32)                  # (Nb,T,hd)
        o_heads.append(o.reshape(nbT, hd))

    # concat over heads (lane concat, XLU slot) + one fat output projection.
    o_cat = jnp.concatenate(o_heads, axis=-1)                               # (Nb*T, D)
    attn = jnp.dot(o_cat, wo_ref[...], preferred_element_type=jnp.float32) + bo

    # TODO(synk): dropout omitted — forward implemented with eval semantics.
    h1 = _layer_norm(attn + x, g1, be1)

    ff = jnp.dot(h1, w1_ref[...], preferred_element_type=jnp.float32) + b1_ref[...]
    ff = jnp.maximum(ff, 0.0)
    ff = jnp.dot(ff, w2_ref[...], preferred_element_type=jnp.float32) + b2

    out_ref[...] = _layer_norm(ff + h1, g2, be2)


def _pick_block(N, T, target_rows):
    nb = max(1, min(N, max(1, target_rows // max(T, 1))))
    while N % nb:
        nb -= 1
    return nb


def map_agent_decoder(agent_feat, map_feat, map_mask, params, nhead,
                      block_n=None, target_rows=256):
    """Forward pass of MapAgentDecoder (eval semantics).

    target_rows: aim for Nb*T ~ 256 on v6e/v7x, ~128 on v5e.  At realistic
    d_model/S, budget VMEM for the (Nb*S, D) block on v7x (64 MiB physical)
    and raise pltpu.CompilerParams(vmem_limit_bytes=...) if needed.
    """
    B, M, T, D = agent_feat.shape
    N = B * M
    S = map_feat.shape[1]
    assert D % nhead == 0
    hd = D // nhead

    nb = _pick_block(N, T, target_rows) if block_n is None else block_n
    assert N % nb == 0, "block_n must divide B*M"

    x2 = agent_feat.astype(jnp.float32).reshape(N * T, D)
    m2 = map_feat.astype(jnp.float32).reshape(N * S, D)
    mask_i = map_mask.astype(jnp.int32).reshape(N, 1, S)

    # --- pack the 16 parameter tensors into 8 arrays (trace-time, free) -----
    scale = 1.0 / math.sqrt(hd)
    wq = params["wq"] * scale                                     # fold attn scale
    bq = params["bq"] * scale
    wkv = jnp.concatenate([params["wk"], params["wv"]], axis=1)   # (D, 2D)
    bkv = jnp.concatenate([params["bk"], params["bv"]], axis=1)   # (1, 2D)
    vec = jnp.concatenate([bq, params["bo"], params["g1"], params["be1"],
                           params["b2"], params["g2"], params["be2"]], axis=0)  # (7, D)
    wo, w1, b1, w2 = params["wo"], params["w1"], params["b1"], params["w2"]

    def const_spec(a):
        nd = a.ndim
        return pl.BlockSpec(a.shape, lambda n, _nd=nd: (0,) * _nd)

    out = pl.pallas_call(
        functools.partial(_decoder_kernel, nhead, nb),
        out_shape=jax.ShapeDtypeStruct((N * T, D), jnp.float32),
        grid=(N // nb,),
        in_specs=[
            pl.BlockSpec((nb * T, D), lambda n: (n, 0)),      # agent block
            pl.BlockSpec((nb * S, D), lambda n: (n, 0)),      # map block
            pl.BlockSpec((nb, 1, S), lambda n: (n, 0, 0)),    # mask block
            const_spec(wq), const_spec(wkv), const_spec(wo),
            const_spec(w1), const_spec(w2),
            const_spec(bkv), const_spec(b1), const_spec(vec),
        ],
        out_specs=pl.BlockSpec((nb * T, D), lambda n: (n, 0)),
        compiler_params=pltpu.CompilerParams(
            dimension_semantics=("parallel",)),               # 2x on v7x (2 TCs)
    )(x2, m2, mask_i, wq, wkv, wo, w1, w2, bkv, b1, vec)

    return out.reshape(B, M, T, D)


def init_params(key, d_model, nhead, dim_feedforward):
    D, F = d_model, dim_feedforward
    ks = jax.random.split(key, 12)

    def w(k, shape, scale=0.02):
        return (scale * jax.random.normal(k, shape)).astype(jnp.float32)

    return {
        "wq": w(ks[0], (D, D)), "bq": w(ks[1], (1, D), 0.01),
        "wk": w(ks[2], (D, D)), "bk": w(ks[3], (1, D), 0.01),
        "wv": w(ks[4], (D, D)), "bv": w(ks[5], (1, D), 0.01),
        "wo": w(ks[6], (D, D)), "bo": w(ks[7], (1, D), 0.01),
        "g1": jnp.ones((1, D), jnp.float32), "be1": jnp.zeros((1, D), jnp.float32),
        "w1": w(ks[8], (D, F)), "b1": w(ks[9], (1, F), 0.01),
        "w2": w(ks[10], (F, D)), "b2": w(ks[11], (1, D), 0.01),
        "g2": jnp.ones((1, D), jnp.float32), "be2": jnp.zeros((1, D), jnp.float32),
    }


def reference(agent_feat, map_feat, map_mask, params, nhead):
    """Pure-JAX reference with identical math (eval semantics)."""
    B, M, T, D = agent_feat.shape
    N = B * M
    S = map_feat.shape[1]
    hd = D // nhead
    scale = 1.0 / math.sqrt(hd)

    x = agent_feat.reshape(N, T, D)
    q = x @ params["wq"] + params["bq"]
    k = map_feat @ params["wk"] + params["bk"]
    v = map_feat @ params["wv"] + params["bv"]
    qh = q.reshape(N, T, nhead, hd).transpose(0, 2, 1, 3)
    kh = k.reshape(N, S, nhead, hd).transpose(0, 2, 1, 3)
    vh = v.reshape(N, S, nhead, hd).transpose(0, 2, 1, 3)
    s = jnp.einsum("nhtd,nhsd->nhts", qh, kh) * scale
    s = s + jnp.where(map_mask, -1e9, 0.0)[:, None, None, :]
    p = jax.nn.softmax(s, axis=-1)
    o = jnp.einsum("nhts,nhsd->nhtd", p, vh).transpose(0, 2, 1, 3).reshape(N, T, D)
    attn = o @ params["wo"] + params["bo"]
    h1 = _layer_norm(attn + x, params["g1"], params["be1"])
    ff = jnp.maximum(h1 @ params["w1"] + params["b1"], 0.0) @ params["w2"] + params["b2"]
    out = _layer_norm(ff + h1, params["g2"], params["be2"])
    return out.reshape(B, M, T, D)


if __name__ == "__main__":
    D_MODEL, NHEAD, DIM_FF = 32, 4, 64
    B, M, T, S = 2, 4, 8, 16
    N = B * M

    key = jax.random.PRNGKey(0)
    k_agent, k_map, k_len, k_param = jax.random.split(key, 4)

    agent_feat = jax.random.normal(k_agent, (B, M, T, D_MODEL), dtype=jnp.float32)
    map_feat = jax.random.normal(k_map, (N, S, D_MODEL), dtype=jnp.float32)
    lens = jax.random.randint(k_len, (N,), minval=4, maxval=S + 1)
    map_mask = jnp.arange(S)[None, :] >= lens[:, None]          # True = padding
    params = init_params(k_param, D_MODEL, NHEAD, DIM_FF)

    with jax.default_matmul_precision("highest"):
        ref = jax.block_until_ready(reference(agent_feat, map_feat, map_mask, params, NHEAD))

    # 1) auto block size (Nb = N here -> single fat grid step filling the MXU).
    out = jax.block_until_ready(
        map_agent_decoder(agent_feat, map_feat, map_mask, params, NHEAD))
    assert out.shape == (B, M, T, D_MODEL)
    err = float(jnp.max(jnp.abs(out - ref)))
    assert jnp.allclose(out, ref, atol=5e-3, rtol=5e-3), f"max_err={err}"

    # 2) forced small block so the grid actually iterates (exercises index maps).
    out2 = jax.block_until_ready(
        map_agent_decoder(agent_feat, map_feat, map_mask, params, NHEAD, block_n=2))
    err2 = float(jnp.max(jnp.abs(out2 - ref)))
    assert jnp.allclose(out2, ref, atol=5e-3, rtol=5e-3), f"max_err={err2}"

    print("KERNEL_OK")
</pallas_src>

<mosaic_0001>
module attributes {stable_mosaic.version = 11 : i64} {
  func.func @_decoder_kernel(%arg0: i32, %arg1: memref<64x32xf32, #tpu.memory_space<vmem>>, %arg2: memref<128x32xf32, #tpu.memory_space<vmem>>, %arg3: memref<8x1x16xi32, #tpu.memory_space<vmem>>, %arg4: memref<32x32xf32, #tpu.memory_space<vmem>>, %arg5: memref<32x64xf32, #tpu.memory_space<vmem>>, %arg6: memref<32x32xf32, #tpu.memory_space<vmem>>, %arg7: memref<32x64xf32, #tpu.memory_space<vmem>>, %arg8: memref<64x32xf32, #tpu.memory_space<vmem>>, %arg9: memref<1x64xf32, #tpu.memory_space<vmem>>, %arg10: memref<1x64xf32, #tpu.memory_space<vmem>>, %arg11: memref<7x32xf32, #tpu.memory_space<vmem>>, %arg12: memref<64x32xf32, #tpu.memory_space<vmem>>) attributes {dimension_semantics = [#tpu.dimension_semantics<parallel>], iteration_bounds = array<i64: 1>, scalar_prefetch = 0 : i64, scratch_operands = 0 : i64, tpu.core_type = #tpu.core_type<tc>, window_params = [{transform_indices = @transform_0, window_bounds = array<i64: 64, 32>}, {transform_indices = @transform_1, window_bounds = array<i64: 128, 32>}, {transform_indices = @transform_2, window_bounds = array<i64: 8, 1, 16>}, {pipeline_mode = #tpu.pipeline_mode<synchronous>, transform_indices = @transform_3, window_bounds = array<i64: 32, 32>}, {pipeline_mode = #tpu.pipeline_mode<synchronous>, transform_indices = @transform_4, window_bounds = array<i64: 32, 64>}, {pipeline_mode = #tpu.pipeline_mode<synchronous>, transform_indices = @transform_5, window_bounds = array<i64: 32, 32>}, {pipeline_mode = #tpu.pipeline_mode<synchronous>, transform_indices = @transform_6, window_bounds = array<i64: 32, 64>}, {pipeline_mode = #tpu.pipeline_mode<synchronous>, transform_indices = @transform_7, window_bounds = array<i64: 64, 32>}, {pipeline_mode = #tpu.pipeline_mode<synchronous>, transform_indices = @transform_8, window_bounds = array<i64: 1, 64>}, {pipeline_mode = #tpu.pipeline_mode<synchronous>, transform_indices = @transform_9, window_bounds = array<i64: 1, 64>}, {pipeline_mode = #tpu.pipeline_mode<synchronous>, transform_indices = @transform_10, window_bounds = array<i64: 7, 32>}, {transform_indices = @transform_11, window_bounds = array<i64: 64, 32>}]} {
    %c0 = arith.constant 0 : index
    %c0_0 = arith.constant 0 : index
    %0 = vector.load %arg1[%c0, %c0_0] : memref<64x32xf32, #tpu.memory_space<vmem>>, vector<64x32xf32>
    %c0_1 = arith.constant 0 : index
    %c0_2 = arith.constant 0 : index
    %1 = vector.load %arg2[%c0_1, %c0_2] : memref<128x32xf32, #tpu.memory_space<vmem>>, vector<128x32xf32>
    %c0_3 = arith.constant 0 : index
    %c0_4 = arith.constant 0 : index
    %2 = vector.load %arg11[%c0_3, %c0_4] : memref<7x32xf32, #tpu.memory_space<vmem>>, vector<7x32xf32>
    %3 = vector.extract_strided_slice %2 {offsets = [0, 0], sizes = [1, 32], strides = [1, 1]} : vector<7x32xf32> to vector<1x32xf32>
    %4 = vector.extract_strided_slice %2 {offsets = [1, 0], sizes = [1, 32], strides = [1, 1]} : vector<7x32xf32> to vector<1x32xf32>
    %5 = vector.extract_strided_slice %2 {offsets = [2, 0], sizes = [1, 32], strides = [1, 1]} : vector<7x32xf32> to vector<1x32xf32>
    %6 = vector.extract_strided_slice %2 {offsets = [3, 0], sizes = [1, 32], strides = [1, 1]} : vector<7x32xf32> to vector<1x32xf32>
    %7 = vector.extract_strided_slice %2 {offsets = [4, 0], sizes = [1, 32], strides = [1, 1]} : vector<7x32xf32> to vector<1x32xf32>
    %8 = vector.extract_strided_slice %2 {offsets = [5, 0], sizes = [1, 32], strides = [1, 1]} : vector<7x32xf32> to vector<1x32xf32>
    %9 = vector.extract_strided_slice %2 {offsets = [6, 0], sizes = [1, 32], strides = [1, 1]} : vector<7x32xf32> to vector<1x32xf32>
    %c0_5 = arith.constant 0 : index
    %c0_6 = arith.constant 0 : index
    %c0_7 = arith.constant 0 : index
    %10 = vector.load %arg3[%c0_5, %c0_6, %c0_7] : memref<8x1x16xi32, #tpu.memory_space<vmem>>, vector<8x1x16xi32>
    %c0_i32 = arith.constant 0 : i32
    %11 = vector.broadcast %c0_i32 : i32 to vector<8x1x16xi32>
    %12 = arith.cmpi ne, %10, %11 : vector<8x1x16xi32>
    %cst = arith.constant -1.000000e+09 : f32
    %cst_8 = arith.constant 0.000000e+00 : f32
    %13 = vector.broadcast %cst : f32 to vector<8x1x16xf32>
    %14 = vector.broadcast %cst_8 : f32 to vector<8x1x16xf32>
    %15 = arith.select %12, %13, %14 : vector<8x1x16xi1>, vector<8x1x16xf32>
    %16 = vector.shape_cast %15 : vector<8x1x16xf32> to vector<8x1x16xf32>
    %17 = vector.broadcast %16 : vector<8x1x16xf32> to vector<8x8x16xf32>
    %c0_9 = arith.constant 0 : index
    %c0_10 = arith.constant 0 : index
    %18 = vector.load %arg4[%c0_9, %c0_10] : memref<32x32xf32, #tpu.memory_space<vmem>>, vector<32x32xf32>
    %cst_11 = arith.constant dense<0.000000e+00> : vector<64x32xf32>
    %19 = tpu.matmul %0, %18, %cst_11 {dimension_numbers = #tpu.dot_dimension_numbers<[1], [0], [0], [1], [0, 0, 1, 1], [], []>} : vector<64x32xf32>, vector<32x32xf32>, vector<64x32xf32> -> vector<64x32xf32>
    %20 = vector.broadcast %3 : vector<1x32xf32> to vector<64x32xf32>
    %21 = arith.addf %19, %20 : vector<64x32xf32>
    %c0_12 = arith.constant 0 : index
    %c0_13 = arith.constant 0 : index
    %22 = vector.load %arg5[%c0_12, %c0_13] : memref<32x64xf32, #tpu.memory_space<vmem>>, vector<32x64xf32>
    %cst_14 = arith.constant dense<0.000000e+00> : vector<128x64xf32>
    %23 = tpu.matmul %1, %22, %cst_14 {dimension_numbers = #tpu.dot_dimension_numbers<[1], [0], [0], [1], [0, 0, 1, 1], [], []>} : vector<128x32xf32>, vector<32x64xf32>, vector<128x64xf32> -> vector<128x64xf32>
    %c0_15 = arith.constant 0 : index
    %c0_16 = arith.constant 0 : index
    %24 = vector.load %arg9[%c0_15, %c0_16] : memref<1x64xf32, #tpu.memory_space<vmem>>, vector<1x64xf32>
    %25 = vector.broadcast %24 : vector<1x64xf32> to vector<128x64xf32>
    %26 = arith.addf %23, %25 : vector<128x64xf32>
    %27 = vector.extract_strided_slice %21 {offsets = [0, 0], sizes = [64, 8], strides = [1, 1]} : vector<64x32xf32> to vector<64x8xf32>
    %28 = vector.shape_cast %27 : vector<64x8xf32> to vector<8x8x8xf32>
    %29 = vector.extract_strided_slice %26 {offsets = [0, 0], sizes = [128, 8], strides = [1, 1]} : vector<128x64xf32> to vector<128x8xf32>
    %30 = vector.shape_cast %29 : vector<128x8xf32> to vector<8x16x8xf32>
    %31 = vector.extract_strided_slice %26 {offsets = [0, 32], sizes = [128, 8], strides = [1, 1]} : vector<128x64xf32> to vector<128x8xf32>
    %32 = vector.shape_cast %31 : vector<128x8xf32> to vector<8x16x8xf32>
    "tpu.trace_start"() <{level = 10 : i32, message = "btd,bsd->bts"}> : () -> ()
    %cst_17 = arith.constant dense<0.000000e+00> : vector<8x8x16xf32>
    %33 = tpu.matmul %28, %30, %cst_17 {dimension_numbers = #tpu.dot_dimension_numbers<[2], [2], [1], [1], [0, 0, 0, 1, 1, 1], [0], [0]>} : vector<8x8x8xf32>, vector<8x16x8xf32>, vector<8x8x16xf32> -> vector<8x8x16xf32>
    "tpu.trace_stop"() : () -> ()
    %34 = arith.addf %33, %17 : vector<8x8x16xf32>
    %cst_18 = arith.constant dense<0xFF800000> : vector<8x8xf32>
    %35 = vector.multi_reduction <maximumf>, %34, %cst_18 [2] : vector<8x8x16xf32> to vector<8x8xf32>
    %36 = vector.shape_cast %35 : vector<8x8xf32> to vector<8x8x1xf32>
    %37 = vector.broadcast %36 : vector<8x8x1xf32> to vector<8x8x16xf32>
    %38 = arith.subf %34, %37 : vector<8x8x16xf32>
    %39 = math.exp %38 : vector<8x8x16xf32>
    %cst_19 = arith.constant dense<0.000000e+00> : vector<8x8xf32>
    %40 = vector.multi_reduction <add>, %39, %cst_19 [2] : vector<8x8x16xf32> to vector<8x8xf32>
    %41 = vector.shape_cast %40 : vector<8x8xf32> to vector<8x8x1xf32>
    %42 = tpu.reciprocal %41 {approx = true} : vector<8x8x1xf32> -> vector<8x8x1xf32>
    %43 = vector.broadcast %42 : vector<8x8x1xf32> to vector<8x8x16xf32>
    %44 = arith.mulf %39, %43 : vector<8x8x16xf32>
    "tpu.trace_start"() <{level = 10 : i32, message = "bts,bsd->btd"}> : () -> ()
    %cst_20 = arith.constant dense<0.000000e+00> : vector<8x8x8xf32>
    %45 = tpu.matmul %44, %32, %cst_20 {dimension_numbers = #tpu.dot_dimension_numbers<[2], [1], [1], [2], [0, 0, 0, 1, 1, 2], [0], [0]>} : vector<8x8x16xf32>, vector<8x16x8xf32>, vector<8x8x8xf32> -> vector<8x8x8xf32>
    "tpu.trace_stop"() : () -> ()
    %46 = vector.shape_cast %45 : vector<8x8x8xf32> to vector<64x8xf32>
    %47 = vector.extract_strided_slice %21 {offsets = [0, 8], sizes = [64, 8], strides = [1, 1]} : vector<64x32xf32> to vector<64x8xf32>
    %48 = vector.shape_cast %47 : vector<64x8xf32> to vector<8x8x8xf32>
    %49 = vector.extract_strided_slice %26 {offsets = [0, 8], sizes = [128, 8], strides = [1, 1]} : vector<128x64xf32> to vector<128x8xf32>
    %50 = vector.shape_cast %49 : vector<128x8xf32> to vector<8x16x8xf32>
    %51 = vector.extract_strided_slice %26 {offsets = [0, 40], sizes = [128, 8], strides = [1, 1]} : vector<128x64xf32> to vector<128x8xf32>
    %52 = vector.shape_cast %51 : vector<128x8xf32> to vector<8x16x8xf32>
    "tpu.trace_start"() <{level = 10 : i32, message = "btd,bsd->bts"}> : () -> ()
    %cst_21 = arith.constant dense<0.000000e+00> : vector<8x8x16xf32>
    %53 = tpu.matmul %48, %50, %cst_21 {dimension_numbers = #tpu.dot_dimension_numbers<[2], [2], [1], [1], [0, 0, 0, 1, 1, 1], [0], [0]>} : vector<8x8x8xf32>, vector<8x16x8xf32>, vector<8x8x16xf32> -> vector<8x8x16xf32>
    "tpu.trace_stop"() : () -> ()
    %54 = arith.addf %53, %17 : vector<8x8x16xf32>
    %cst_22 = arith.constant dense<0xFF800000> : vector<8x8xf32>
    %55 = vector.multi_reduction <maximumf>, %54, %cst_22 [2] : vector<8x8x16xf32> to vector<8x8xf32>
    %56 = vector.shape_cast %55 : vector<8x8xf32> to vector<8x8x1xf32>
    %57 = vector.broadcast %56 : vector<8x8x1xf32> to vector<8x8x16xf32>
    %58 = arith.subf %54, %57 : vector<8x8x16xf32>
    %59 = math.exp %58 : vector<8x8x16xf32>
    %cst_23 = arith.constant dense<0.000000e+00> : vector<8x8xf32>
    %60 = vector.multi_reduction <add>, %59, %cst_23 [2] : vector<8x8x16xf32> to vector<8x8xf32>
    %61 = vector.shape_cast %60 : vector<8x8xf32> to vector<8x8x1xf32>
    %62 = tpu.reciprocal %61 {approx = true} : vector<8x8x1xf32> -> vector<8x8x1xf32>
    %63 = vector.broadcast %62 : vector<8x8x1xf32> to vector<8x8x16xf32>
    %64 = arith.mulf %59, %63 : vector<8x8x16xf32>
    "tpu.trace_start"() <{level = 10 : i32, message = "bts,bsd->btd"}> : () -> ()
    %cst_24 = arith.constant dense<0.000000e+00> : vector<8x8x8xf32>
    %65 = tpu.matmul %64, %52, %cst_24 {dimension_numbers = #tpu.dot_dimension_numbers<[2], [1], [1], [2], [0, 0, 0, 1, 1, 2], [0], [0]>} : vector<8x8x16xf32>, vector<8x16x8xf32>, vector<8x8x8xf32> -> vector<8x8x8xf32>
    "tpu.trace_stop"() : () -> ()
    %66 = vector.shape_cast %65 : vector<8x8x8xf32> to vector<64x8xf32>
    %67 = vector.extract_strided_slice %21 {offsets = [0, 16], sizes = [64, 8], strides = [1, 1]} : vector<64x32xf32> to vector<64x8xf32>
    %68 = vector.shape_cast %67 : vector<64x8xf32> to vector<8x8x8xf32>
    %69 = vector.extract_strided_slice %26 {offsets = [0, 16], sizes = [128, 8], strides = [1, 1]} : vector<128x64xf32> to vector<128x8xf32>
    %70 = vector.shape_cast %69 : vector<128x8xf32> to vector<8x16x8xf32>
    %71 = vector.extract_strided_slice %26 {offsets = [0, 48], sizes = [128, 8], strides = [1, 1]} : vector<128x64xf32> to vector<128x8xf32>
    %72 = vector.shape_cast %71 : vector<128x8xf32> to vector<8x16x8xf32>
    "tpu.trace_start"() <{level = 10 : i32, message = "btd,bsd->bts"}> : () -> ()
    %cst_25 = arith.constant dense<0.000000e+00> : vector<8x8x16xf32>
    %73 = tpu.matmul %68, %70, %cst_25 {dimension_numbers = #tpu.dot_dimension_numbers<[2], [2], [1], [1], [0, 0, 0, 1, 1, 1], [0], [0]>} : vector<8x8x8xf32>, vector<8x16x8xf32>, vector<8x8x16xf32> -> vector<8x8x16xf32>
    "tpu.trace_stop"() : () -> ()
    %74 = arith.addf %73, %17 : vector<8x8x16xf32>
    %cst_26 = arith.constant dense<0xFF800000> : vector<8x8xf32>
    %75 = vector.multi_reduction <maximumf>, %74, %cst_26 [2] : vector<8x8x16xf32> to vector<8x8xf32>
    %76 = vector.shape_cast %75 : vector<8x8xf32> to vector<8x8x1xf32>
    %77 = vector.broadcast %76 : vector<8x8x1xf32> to vector<8x8x16xf32>
    %78 = arith.subf %74, %77 : vector<8x8x16xf32>
    %79 = math.exp %78 : vector<8x8x16xf32>
    %cst_27 = arith.constant dense<0.000000e+00> : vector<8x8xf32>
    %80 = vector.multi_reduction <add>, %79, %cst_27 [2] : vector<8x8x16xf32> to vector<8x8xf32>
    %81 = vector.shape_cast %80 : vector<8x8xf32> to vector<8x8x1xf32>
    %82 = tpu.reciprocal %81 {approx = true} : vector<8x8x1xf32> -> vector<8x8x1xf32>
    %83 = vector.broadcast %82 : vector<8x8x1xf32> to vector<8x8x16xf32>
    %84 = arith.mulf %79, %83 : vector<8x8x16xf32>
    "tpu.trace_start"() <{level = 10 : i32, message = "bts,bsd->btd"}> : () -> ()
    %cst_28 = arith.constant dense<0.000000e+00> : vector<8x8x8xf32>
    %85 = tpu.matmul %84, %72, %cst_28 {dimension_numbers = #tpu.dot_dimension_numbers<[2], [1], [1], [2], [0, 0, 0, 1, 1, 2], [0], [0]>} : vector<8x8x16xf32>, vector<8x16x8xf32>, vector<8x8x8xf32> -> vector<8x8x8xf32>
    "tpu.trace_stop"() : () -> ()
    %86 = vector.shape_cast %85 : vector<8x8x8xf32> to vector<64x8xf32>
    %87 = vector.extract_strided_slice %21 {offsets = [0, 24], sizes = [64, 8], strides = [1, 1]} : vector<64x32xf32> to vector<64x8xf32>
    %88 = vector.shape_cast %87 : vector<64x8xf32> to vector<8x8x8xf32>
    %89 = vector.extract_strided_slice %26 {offsets = [0, 24], sizes = [128, 8], strides = [1, 1]} : vector<128x64xf32> to vector<128x8xf32>
    %90 = vector.shape_cast %89 : vector<128x8xf32> to vector<8x16x8xf32>
    %91 = vector.extract_strided_slice %26 {offsets = [0, 56], sizes = [128, 8], strides = [1, 1]} : vector<128x64xf32> to vector<128x8xf32>
    %92 = vector.shape_cast %91 : vector<128x8xf32> to vector<8x16x8xf32>
    "tpu.trace_start"() <{level = 10 : i32, message = "btd,bsd->bts"}> : () -> ()
    %cst_29 = arith.constant dense<0.000000e+00> : vector<8x8x16xf32>
    %93 = tpu.matmul %88, %90, %cst_29 {dimension_numbers = #tpu.dot_dimension_numbers<[2], [2], [1], [1], [0, 0, 0, 1, 1, 1], [0], [0]>} : vector<8x8x8xf32>, vector<8x16x8xf32>, vector<8x8x16xf32> -> vector<8x8x16xf32>
    "tpu.trace_stop"() : () -> ()
    %94 = arith.addf %93, %17 : vector<8x8x16xf32>
    %cst_30 = arith.constant dense<0xFF800000> : vector<8x8xf32>
    %95 = vector.multi_reduction <maximumf>, %94, %cst_30 [2] : vector<8x8x16xf32> to vector<8x8xf32>
    %96 = vector.shape_cast %95 : vector<8x8xf32> to vector<8x8x1xf32>
    %97 = vector.broadcast %96 : vector<8x8x1xf32> to vector<8x8x16xf32>
    %98 = arith.subf %94, %97 : vector<8x8x16xf32>
    %99 = math.exp %98 : vector<8x8x16xf32>
    %cst_31 = arith.constant dense<0.000000e+00> : vector<8x8xf32>
    %100 = vector.multi_reduction <add>, %99, %cst_31 [2] : vector<8x8x16xf32> to vector<8x8xf32>
    %101 = vector.shape_cast %100 : vector<8x8xf32> to vector<8x8x1xf32>
    %102 = tpu.reciprocal %101 {approx = true} : vector<8x8x1xf32> -> vector<8x8x1xf32>
    %103 = vector.broadcast %102 : vector<8x8x1xf32> to vector<8x8x16xf32>
    %104 = arith.mulf %99, %103 : vector<8x8x16xf32>
    "tpu.trace_start"() <{level = 10 : i32, message = "bts,bsd->btd"}> : () -> ()
    %cst_32 = arith.constant dense<0.000000e+00> : vector<8x8x8xf32>
    %105 = tpu.matmul %104, %92, %cst_32 {dimension_numbers = #tpu.dot_dimension_numbers<[2], [1], [1], [2], [0, 0, 0, 1, 1, 2], [0], [0]>} : vector<8x8x16xf32>, vector<8x16x8xf32>, vector<8x8x8xf32> -> vector<8x8x8xf32>
    "tpu.trace_stop"() : () -> ()
    %106 = vector.shape_cast %105 : vector<8x8x8xf32> to vector<64x8xf32>
    %107 = tpu.concatenate %46, %66, %86, %106 in 1 : vector<64x8xf32>, vector<64x8xf32>, vector<64x8xf32>, vector<64x8xf32> -> vector<64x32xf32>
    %c0_33 = arith.constant 0 : index
    %c0_34 = arith.constant 0 : index
    %108 = vector.load %arg6[%c0_33, %c0_34] : memref<32x32xf32, #tpu.memory_space<vmem>>, vector<32x32xf32>
    %cst_35 = arith.constant dense<0.000000e+00> : vector<64x32xf32>
    %109 = tpu.matmul %107, %108, %cst_35 {dimension_numbers = #tpu.dot_dimension_numbers<[1], [0], [0], [1], [0, 0, 1, 1], [], []>} : vector<64x32xf32>, vector<32x32xf32>, vector<64x32xf32> -> vector<64x32xf32>
    %110 = vector.broadcast %4 : vector<1x32xf32> to vector<64x32xf32>
    %111 = arith.addf %109, %110 : vector<64x32xf32>
    %112 = arith.addf %111, %0 : vector<64x32xf32>
    %cst_36 = arith.constant dense<0.000000e+00> : vector<64xf32>
    %113 = vector.multi_reduction <add>, %112, %cst_36 [1] : vector<64x32xf32> to vector<64xf32>
    %114 = vector.shape_cast %113 : vector<64xf32> to vector<64x1xf32>
    %cst_37 = arith.constant 3.200000e+01 : f32
    %115 = vector.broadcast %cst_37 : f32 to vector<64x1xf32>
    %116 = arith.divf %114, %115 : vector<64x1xf32>
    %117 = vector.broadcast %116 : vector<64x1xf32> to vector<64x32xf32>
    %118 = arith.subf %112, %117 : vector<64x32xf32>
    %119 = arith.mulf %118, %118 : vector<64x32xf32>
    %cst_38 = arith.constant dense<0.000000e+00> : vector<64xf32>
    %120 = vector.multi_reduction <add>, %119, %cst_38 [1] : vector<64x32xf32> to vector<64xf32>
    %121 = vector.shape_cast %120 : vector<64xf32> to vector<64x1xf32>
    %cst_39 = arith.constant 3.200000e+01 : f32
    %122 = vector.broadcast %cst_39 : f32 to vector<64x1xf32>
    %123 = arith.divf %121, %122 : vector<64x1xf32>
    %124 = vector.broadcast %116 : vector<64x1xf32> to vector<64x32xf32>
    %125 = arith.subf %112, %124 : vector<64x32xf32>
    %cst_40 = arith.constant 9.99999974E-6 : f32
    %126 = vector.broadcast %cst_40 : f32 to vector<64x1xf32>
    %127 = arith.addf %123, %126 : vector<64x1xf32>
    %128 = math.rsqrt %127 : vector<64x1xf32>
    %129 = vector.broadcast %128 : vector<64x1xf32> to vector<64x32xf32>
    %130 = arith.mulf %125, %129 : vector<64x32xf32>
    %131 = vector.broadcast %5 : vector<1x32xf32> to vector<64x32xf32>
    %132 = arith.mulf %130, %131 : vector<64x32xf32>
    %133 = vector.broadcast %6 : vector<1x32xf32> to vector<64x32xf32>
    %134 = arith.addf %132, %133 : vector<64x32xf32>
    %c0_41 = arith.constant 0 : index
    %c0_42 = arith.constant 0 : index
    %135 = vector.load %arg7[%c0_41, %c0_42] : memref<32x64xf32, #tpu.memory_space<vmem>>, vector<32x64xf32>
    %cst_43 = arith.constant dense<0.000000e+00> : vector<64x64xf32>
    %136 = tpu.matmul %134, %135, %cst_43 {dimension_numbers = #tpu.dot_dimension_numbers<[1], [0], [0], [1], [0, 0, 1, 1], [], []>} : vector<64x32xf32>, vector<32x64xf32>, vector<64x64xf32> -> vector<64x64xf32>
    %c0_44 = arith.constant 0 : index
    %c0_45 = arith.constant 0 : index
    %137 = vector.load %arg10[%c0_44, %c0_45] : memref<1x64xf32, #tpu.memory_space<vmem>>, vector<1x64xf32>
    %138 = vector.broadcast %137 : vector<1x64xf32> to vector<64x64xf32>
    %139 = arith.addf %136, %138 : vector<64x64xf32>
    %cst_46 = arith.constant 0.000000e+00 : f32
    %140 = vector.broadcast %cst_46 : f32 to vector<64x64xf32>
    %141 = arith.maximumf %139, %140 : vector<64x64xf32>
    %c0_47 = arith.constant 0 : index
    %c0_48 = arith.constant 0 : index
    %142 = vector.load %arg8[%c0_47, %c0_48] : memref<64x32xf32, #tpu.memory_space<vmem>>, vector<64x32xf32>
    %cst_49 = arith.constant dense<0.000000e+00> : vector<64x32xf32>
    %143 = tpu.matmul %141, %142, %cst_49 {dimension_numbers = #tpu.dot_dimension_numbers<[1], [0], [0], [1], [0, 0, 1, 1], [], []>} : vector<64x64xf32>, vector<64x32xf32>, vector<64x32xf32> -> vector<64x32xf32>
    %144 = vector.broadcast %7 : vector<1x32xf32> to vector<64x32xf32>
    %145 = arith.addf %143, %144 : vector<64x32xf32>
    %146 = arith.addf %145, %134 : vector<64x32xf32>
    %cst_50 = arith.constant dense<0.000000e+00> : vector<64xf32>
    %147 = vector.multi_reduction <add>, %146, %cst_50 [1] : vector<64x32xf32> to vector<64xf32>
    %148 = vector.shape_cast %147 : vector<64xf32> to vector<64x1xf32>
    %cst_51 = arith.constant 3.200000e+01 : f32
    %149 = vector.broadcast %cst_51 : f32 to vector<64x1xf32>
    %150 = arith.divf %148, %149 : vector<64x1xf32>
    %151 = vector.broadcast %150 : vector<64x1xf32> to vector<64x32xf32>
    %152 = arith.subf %146, %151 : vector<64x32xf32>
    %153 = arith.mulf %152, %152 : vector<64x32xf32>
    %cst_52 = arith.constant dense<0.000000e+00> : vector<64xf32>
    %154 = vector.multi_reduction <add>, %153, %cst_52 [1] : vector<64x32xf32> to vector<64xf32>
    %155 = vector.shape_cast %154 : vector<64xf32> to vector<64x1xf32>
    %cst_53 = arith.constant 3.200000e+01 : f32
    %156 = vector.broadcast %cst_53 : f32 to vector<64x1xf32>
    %157 = arith.divf %155, %156 : vector<64x1xf32>
    %158 = vector.broadcast %150 : vector<64x1xf32> to vector<64x32xf32>
    %159 = arith.subf %146, %158 : vector<64x32xf32>
    %cst_54 = arith.constant 9.99999974E-6 : f32
    %160 = vector.broadcast %cst_54 : f32 to vector<64x1xf32>
    %161 = arith.addf %157, %160 : vector<64x1xf32>
    %162 = math.rsqrt %161 : vector<64x1xf32>
    %163 = vector.broadcast %162 : vector<64x1xf32> to vector<64x32xf32>
    %164 = arith.mulf %159, %163 : vector<64x32xf32>
    %165 = vector.broadcast %8 : vector<1x32xf32> to vector<64x32xf32>
    %166 = arith.mulf %164, %165 : vector<64x32xf32>
    %167 = vector.broadcast %9 : vector<1x32xf32> to vector<64x32xf32>
    %168 = arith.addf %166, %167 : vector<64x32xf32>
    %c0_55 = arith.constant 0 : index
    %c0_56 = arith.constant 0 : index
    %169 = vector.load %arg12[%c0_55, %c0_56] : memref<64x32xf32, #tpu.memory_space<vmem>>, vector<64x32xf32>
    tpu.vector_store %arg12[%c0_55, %c0_56], %168 {strides = array<i32>} : memref<64x32xf32, #tpu.memory_space<vmem>>, vector<64x32xf32>,
    return
  }
  func.func @transform_0(%arg0: i32) -> (i32, i32) {
    %c0_i32 = arith.constant 0 : i32
    %c0_i32_0 = arith.constant 0 : i32
    return %arg0, %c0_i32 : i32, i32
  }
  func.func @transform_1(%arg0: i32) -> (i32, i32) {
    %c0_i32 = arith.constant 0 : i32
    %c0_i32_0 = arith.constant 0 : i32
    return %arg0, %c0_i32 : i32, i32
  }
  func.func @transform_2(%arg0: i32) -> (i32, i32, i32) {
    %c0_i32 = arith.constant 0 : i32
    %c0_i32_0 = arith.constant 0 : i32
    %c0_i32_1 = arith.constant 0 : i32
    return %arg0, %c0_i32, %c0_i32_0 : i32, i32, i32
  }
  func.func @transform_3(%arg0: i32) -> (i32, i32) {
    %c0_i32 = arith.constant 0 : i32
    %c0_i32_0 = arith.constant 0 : i32
    %c0_i32_1 = arith.constant 0 : i32
    return %c0_i32, %c0_i32_0 : i32, i32
  }
  func.func @transform_4(%arg0: i32) -> (i32, i32) {
    %c0_i32 = arith.constant 0 : i32
    %c0_i32_0 = arith.constant 0 : i32
    %c0_i32_1 = arith.constant 0 : i32
    return %c0_i32, %c0_i32_0 : i32, i32
  }
  func.func @transform_5(%arg0: i32) -> (i32, i32) {
    %c0_i32 = arith.constant 0 : i32
    %c0_i32_0 = arith.constant 0 : i32
    %c0_i32_1 = arith.constant 0 : i32
    return %c0_i32, %c0_i32_0 : i32, i32
  }
  func.func @transform_6(%arg0: i32) -> (i32, i32) {
    %c0_i32 = arith.constant 0 : i32
    %c0_i32_0 = arith.constant 0 : i32
    %c0_i32_1 = arith.constant 0 : i32
    return %c0_i32, %c0_i32_0 : i32, i32
  }
  func.func @transform_7(%arg0: i32) -> (i32, i32) {
    %c0_i32 = arith.constant 0 : i32
    %c0_i32_0 = arith.constant 0 : i32
    %c0_i32_1 = arith.constant 0 : i32
    return %c0_i32, %c0_i32_0 : i32, i32
  }
  func.func @transform_8(%arg0: i32) -> (i32, i32) {
    %c0_i32 = arith.constant 0 : i32
    %c0_i32_0 = arith.constant 0 : i32
    %c0_i32_1 = arith.constant 0 : i32
    return %c0_i32, %c0_i32_0 : i32, i32
  }
  func.func @transform_9(%arg0: i32) -> (i32, i32) {
    %c0_i32 = arith.constant 0 : i32
    %c0_i32_0 = arith.constant 0 : i32
    %c0_i32_1 = arith.constant 0 : i32
    return %c0_i32, %c0_i32_0 : i32, i32
  }
  func.func @transform_10(%arg0: i32) -> (i32, i32) {
    %c0_i32 = arith.constant 0 : i32
    %c0_i32_0 = arith.constant 0 : i32
    %c0_i32_1 = arith.constant 0 : i32
    return %c0_i32, %c0_i32_0 : i32, i32
  }
  func.func @transform_11(%arg0: i32) -> (i32, i32) {
    %c0_i32 = arith.constant 0 : i32
    %c0_i32_0 = arith.constant 0 : i32
    return %arg0, %c0_i32 : i32, i32
  }
}

</mosaic_0001>

<llo_original>
// kernel: tpu_custom_call.1
$region0: #{tpu_custom_call.1}
  #allocation0 [shape = 'u32[]', space=smem, size = 0x4, offset = 0x4, fixed_abs, tag = 'smem constant byte address 0x4 - core index']
  #allocation1 [shape = 'u32[72,128]{1,0:T(1,128)}', space=vmem, size = 0x9000, scoped, tag = 'internal scratch']
  %s0 = inlined_call_operand.vmem [shape: f32[64,32], index: 0, kind: input, shape index: {}]
  %s1 = inlined_call_operand.vmem [shape: f32[128,32], index: 1, kind: input, shape index: {}]
  %s2 = inlined_call_operand.vmem [shape: s32[8,1,16], index: 2, kind: input, shape index: {}]
  %s3 = inlined_call_operand.vmem [shape: f32[32,32], index: 3, kind: input, shape index: {}]
  %s4 = inlined_call_operand.vmem [shape: f32[32,64], index: 4, kind: input, shape index: {}]
  %s5 = inlined_call_operand.vmem [shape: f32[32,32], index: 5, kind: input, shape index: {}]
  %s6 = inlined_call_operand.vmem [shape: f32[32,64], index: 6, kind: input, shape index: {}]
  %s7 = inlined_call_operand.vmem [shape: f32[64,32], index: 7, kind: input, shape index: {}]
  %s8 = inlined_call_operand.vmem [shape: f32[1,64], index: 8, kind: input, shape index: {}]
  %s9 = inlined_call_operand.vmem [shape: f32[1,64], index: 9, kind: input, shape index: {}]
  %s10 = inlined_call_operand.vmem [shape: f32[7,32], index: 10, kind: input, shape index: {}]
  %s11 = inlined_call_operand.vmem [shape: f32[64,32], index: 11, kind: output, shape index: {}]
  %s12 = sld [smem:[#allocation0]]
  $region54: #{tpu_custom_call.1} parent=0
    _
  %s14 = ssub.s32 1, %s12
  %s15 = scalar_select 0, %s14, %s12
  // Predicated region
  $region2: #{tpu_custom_call.1} parent=0 // pred_check
    _
  $region3: #{tpu_custom_call.1} parent=0 // pred_check_branch
    %17 = sbr.rel (0) target = $region5
  $region4: #{tpu_custom_call.1} parent=0 // pred_region
    _
  $region5: #{tpu_custom_call.1} parent=0 // pred_fallthru
    _
  // Predicated region
  $region6: #{tpu_custom_call.1} parent=0 // pred_check
    _
  $region7: #{tpu_custom_call.1} parent=0 // pred_check_branch
    %19 = sbr.rel (0) target = $region9
  $region8: #{tpu_custom_call.1} parent=0 // pred_region
    _
  $region9: #{tpu_custom_call.1} parent=0 // pred_fallthru
    _
  // Predicated region
  $region10: #{tpu_custom_call.1} parent=0 // pred_check
    _
  $region11: #{tpu_custom_call.1} parent=0 // pred_check_branch
    %21 = sbr.rel (0) target = $region13
  $region12: #{tpu_custom_call.1} parent=0 // pred_region
    _
  $region13: #{tpu_custom_call.1} parent=0 // pred_fallthru
    _
  // Predicated region
  $region14: #{tpu_custom_call.1} parent=0 // pred_check
    _
  $region15: #{tpu_custom_call.1} parent=0 // pred_check_branch
    %23 = sbr.rel (0) target = $region17
  $region16: #{tpu_custom_call.1} parent=0 // pred_region
    _
  $region17: #{tpu_custom_call.1} parent=0 // pred_fallthru
    _
  // Predicated region
  $region18: #{tpu_custom_call.1} parent=0 // pred_check
    _
  $region19: #{tpu_custom_call.1} parent=0 // pred_check_branch
    %25 = sbr.rel (0) target = $region21
  $region20: #{tpu_custom_call.1} parent=0 // pred_region
    _
  $region21: #{tpu_custom_call.1} parent=0 // pred_fallthru
    _
  // Predicated region
  $region22: #{tpu_custom_call.1} parent=0 // pred_check
    _
  $region23: #{tpu_custom_call.1} parent=0 // pred_check_branch
    %27 = sbr.rel (0) target = $region25
  $region24: #{tpu_custom_call.1} parent=0 // pred_region
    _
  $region25: #{tpu_custom_call.1} parent=0 // pred_fallthru
    _
  // Predicated region
  $region26: #{tpu_custom_call.1} parent=0 // pred_check
    _
  $region27: #{tpu_custom_call.1} parent=0 // pred_check_branch
    %29 = sbr.rel (0) target = $region29
  $region28: #{tpu_custom_call.1} parent=0 // pred_region
    _
  $region29: #{tpu_custom_call.1} parent=0 // pred_fallthru
    _
  // Predicated region
  $region30: #{tpu_custom_call.1} parent=0 // pred_check
    _
  $region31: #{tpu_custom_call.1} parent=0 // pred_check_branch
    %31 = sbr.rel (0) target = $region33
  $region32: #{tpu_custom_call.1} parent=0 // pred_region
    _
  $region33: #{tpu_custom_call.1} parent=0 // pred_fallthru
    _
  // Predicated region
  $region34: #{tpu_custom_call.1} parent=0 // pred_check
    _
  $region35: #{tpu_custom_call.1} parent=0 // pred_check_branch
    %33 = sbr.rel (0) target = $region37
  $region36: #{tpu_custom_call.1} parent=0 // pred_region
    _
  $region37: #{tpu_custom_call.1} parent=0 // pred_fallthru
    _
  // Predicated region
  $region38: #{tpu_custom_call.1} parent=0 // pred_check
    _
  $region39: #{tpu_custom_call.1} parent=0 // pred_check_branch
    %35 = sbr.rel (0) target = $region41
  $region40: #{tpu_custom_call.1} parent=0 // pred_region
    _
  $region41: #{tpu_custom_call.1} parent=0 // pred_fallthru
    _
  // Predicated region
  $region42: #{tpu_custom_call.1} parent=0 // pred_check
    _
  $region43: #{tpu_custom_call.1} parent=0 // pred_check_branch
    %37 = sbr.rel (0) target = $region45
  $region44: #{tpu_custom_call.1} parent=0 // pred_region
    _
  $region45: #{tpu_custom_call.1} parent=0 // pred_fallthru
    _
  %v38 = vld [vmem:[%s0] sm:$0xff]
  %v39 = vld [vmem:[%s0 + $0x8] sm:$0xff]
  %v40 = vld [vmem:[%s0 + $0x10] sm:$0xff]
  %v41 = vld [vmem:[%s0 + $0x18] sm:$0xff]
  %v42 = vld [vmem:[%s0 + $0x20] sm:$0xff]
  %v43 = vld [vmem:[%s0 + $0x28] sm:$0xff]
  %v44 = vld [vmem:[%s0 + $0x30] sm:$0xff]
  %v45 = vld [vmem:[%s0 + $0x38] sm:$0xff]
  %v46 = vld [vmem:[%s1] sm:$0xff]
  %v47 = vld [vmem:[%s1 + $0x8] sm:$0xff]
  %v48 = vld [vmem:[%s1 + $0x10] sm:$0xff]
  %v49 = vld [vmem:[%s1 + $0x18] sm:$0xff]
  %v50 = vld [vmem:[%s1 + $0x20] sm:$0xff]
  %v51 = vld [vmem:[%s1 + $0x28] sm:$0xff]
  %v52 = vld [vmem:[%s1 + $0x30] sm:$0xff]
  %v53 = vld [vmem:[%s1 + $0x38] sm:$0xff]
  %v54 = vld [vmem:[%s1 + $0x40] sm:$0xff]
  %v55 = vld [vmem:[%s1 + $0x48] sm:$0xff]
  %v56 = vld [vmem:[%s1 + $0x50] sm:$0xff]
  %v57 = vld [vmem:[%s1 + $0x58] sm:$0xff]
  %v58 = vld [vmem:[%s1 + $0x60] sm:$0xff]
  %v59 = vld [vmem:[%s1 + $0x68] sm:$0xff]
  %v60 = vld [vmem:[%s1 + $0x70] sm:$0xff]
  %v61 = vld [vmem:[%s1 + $0x78] sm:$0xff]
  %v62 = vld [vmem:[%s10] sm:$0x7f]
  %v63 = vld [vmem:[%s2] sm:$0x1]
  %v64 = vld [vmem:[%s2 + $0x1] sm:$0x1]
  %v65 = vld [vmem:[%s2 + $0x2] sm:$0x1]
  %v66 = vld [vmem:[%s2 + $0x3] sm:$0x1]
  %v67 = vld [vmem:[%s2 + $0x4] sm:$0x1]
  %v68 = vld [vmem:[%s2 + $0x5] sm:$0x1]
  %v69 = vld [vmem:[%s2 + $0x6] sm:$0x1]
  %v70 = vld [vmem:[%s2 + $0x7] sm:$0x1]
  %vm71 = vcmp.ne.s32.totalorder %v63, 0
  %vm72 = vcmp.ne.s32.totalorder %v64, 0
  %vm73 = vcmp.ne.s32.totalorder %v65, 0
  %vm74 = vcmp.ne.s32.totalorder %v66, 0
  %vm75 = vcmp.ne.s32.totalorder %v67, 0
  %vm76 = vcmp.ne.s32.totalorder %v68, 0
  %vm77 = vcmp.ne.s32.totalorder %v69, 0
  %vm78 = vcmp.ne.s32.totalorder %v70, 0
  %v79 = vsel %vm71, -1e+09, 0.0
  %v80 = vsel %vm72, -1e+09, 0.0
  %v81 = vsel %vm73, -1e+09, 0.0
  %v82 = vsel %vm74, -1e+09, 0.0
  %v83 = vsel %vm75, -1e+09, 0.0
  %v84 = vsel %vm76, -1e+09, 0.0
  %v85 = vsel %vm77, -1e+09, 0.0
  %v86 = vsel %vm78, -1e+09, 0.0
  %v95 = vperm.slane %v79, 0
  %v96 = vperm.slane %v80, 0
  %v97 = vperm.slane %v81, 0
  %v98 = vperm.slane %v82, 0
  %v99 = vperm.slane %v83, 0
  %v100 = vperm.slane %v84, 0
  %v101 = vperm.slane %v85, 0
  %v102 = vperm.slane %v86, 0
  %v111 = vld [vmem:[%s3] sm:$0xff]
  %v112 = vld [vmem:[%s3 + $0x8] sm:$0xff]
  %v113 = vld [vmem:[%s3 + $0x10] sm:$0xff]
  %v114 = vld [vmem:[%s3 + $0x18] sm:$0xff]
  %v115 = vperm.slane %v62, 0
  %vm116 = vcmask 261120
  %v118 = vsel %vm116, %v38, 0
  %v121 = vsel %vm116, %v39, 0
  %v124 = vsel %vm116, %v40, 0
  %v127 = vsel %vm116, %v41, 0
  %v130 = vsel %vm116, %v42, 0
  %v133 = vsel %vm116, %v43, 0
  %v136 = vsel %vm116, %v44, 0
  %v139 = vsel %vm116, %v45, 0
  %141 = vmatpush.msra.mxu0 0.0
  %142 = vmatpush.msra.mxu0 0.0
  %143 = vmatpush.msra.mxu0 0.0
  %144 = vmatpush.msra.mxu0 0.0
  %145 = vmatpush.msra.mxu0 0.0
  %146 = vmatpush.msra.mxu0 0.0
  %147 = vmatpush.msra.mxu0 0.0
  %148 = vmatpush.msra.mxu0 0.0
  %149 = vmatpush.msra.mxu0 0.0
  %150 = vmatpush.msra.mxu0 0.0
  %151 = vmatpush.msra.mxu0 0.0
  %152 = vmatpush.msra.mxu0 0.0
  %153 = vmatpush.msra.mxu0 %v114
  %154 = vmatpush.msra.mxu0 %v113
  %155 = vmatpush.msra.mxu0 %v112
  %156 = vmatpush.msra.mxu0 %v111
  %157 = vmatmul.f32.gmra.mxu0 %v118
  %v158 = vpop.f32.mrf.mxu0
  %v159 = vadd.f32 %v115, %v158
  %160 = vmatmul.f32.gmra.mxu0 %v121
  %v161 = vpop.f32.mrf.mxu0
  %v162 = vadd.f32 %v115, %v161
  %163 = vmatmul.f32.gmra.mxu0 %v124
  %v164 = vpop.f32.mrf.mxu0
  %v165 = vadd.f32 %v115, %v164
  %166 = vmatmul.f32.gmra.mxu0 %v127
  %v167 = vpop.f32.mrf.mxu0
  %v168 = vadd.f32 %v115, %v167
  %169 = vmatmul.f32.gmra.mxu0 %v130
  %v170 = vpop.f32.mrf.mxu0
  %v171 = vadd.f32 %v115, %v170
  %172 = vmatmul.f32.gmra.mxu0 %v133
  %v173 = vpop.f32.mrf.mxu0
  %v174 = vadd.f32 %v115, %v173
  %175 = vmatmul.f32.gmra.mxu0 %v136
  %v176 = vpop.f32.mrf.mxu0
  %v177 = vadd.f32 %v115, %v176
  %178 = vmatmul.f32.gmra.mxu0 %v139
  %v179 = vpop.f32.mrf.mxu0
  %v180 = vadd.f32 %v115, %v179
  %181 = vdwg.mxu0
  %v182 = vld [vmem:[%s4] sm:$0xff]
  %v183 = vld [vmem:[%s4 + $0x8] sm:$0xff]
  %v184 = vld [vmem:[%s4 + $0x10] sm:$0xff]
  %v185 = vld [vmem:[%s4 + $0x18] sm:$0xff]
  %v186 = vld [vmem:[%s8] sm:$0x1]
  %v188 = vperm.slane %v186, 0
  %v191 = vsel %vm116, %v46, 0
  %v194 = vsel %vm116, %v47, 0
  %v197 = vsel %vm116, %v48, 0
  %v200 = vsel %vm116, %v49, 0
  %v203 = vsel %vm116, %v50, 0
  %v206 = vsel %vm116, %v51, 0
  %v209 = vsel %vm116, %v52, 0
  %v212 = vsel %vm116, %v53, 0
  %v215 = vsel %vm116, %v54, 0
  %v218 = vsel %vm116, %v55, 0
  %v221 = vsel %vm116, %v56, 0
  %v224 = vsel %vm116, %v57, 0
  %v227 = vsel %vm116, %v58, 0
  %v230 = vsel %vm116, %v59, 0
  %v233 = vsel %vm116, %v60, 0
  %v236 = vsel %vm116, %v61, 0
  %238 = vmatpush.msra.mxu0 0.0
  %239 = vmatpush.msra.mxu0 0.0
  %240 = vmatpush.msra.mxu0 0.0
  %241 = vmatpush.msra.mxu0 0.0
  %242 = vmatpush.msra.mxu0 0.0
  %243 = vmatpush.msra.mxu0 0.0
  %244 = vmatpush.msra.mxu0 0.0
  %245 = vmatpush.msra.mxu0 0.0
  %246 = vmatpush.msra.mxu0 0.0
  %247 = vmatpush.msra.mxu0 0.0
  %248 = vmatpush.msra.mxu0 0.0
  %249 = vmatpush.msra.mxu0 0.0
  %250 = vmatpush.msra.mxu0 %v185
  %251 = vmatpush.msra.mxu0 %v184
  %252 = vmatpush.msra.mxu0 %v183
  %253 = vmatpush.msra.mxu0 %v182
  %254 = vmatmul.f32.gmra.mxu0 %v191
  %v255 = vpop.f32.mrf.mxu0
  %v256 = vadd.f32 %v188, %v255
  %257 = vmatmul.f32.gmra.mxu0 %v194
  %v258 = vpop.f32.mrf.mxu0
  %v259 = vadd.f32 %v188, %v258
  %260 = vmatmul.f32.gmra.mxu0 %v197
  %v261 = vpop.f32.mrf.mxu0
  %v262 = vadd.f32 %v188, %v261
  %263 = vmatmul.f32.gmra.mxu0 %v200
  %v264 = vpop.f32.mrf.mxu0
  %v265 = vadd.f32 %v188, %v264
  %266 = vmatmul.f32.gmra.mxu0 %v203
  %v267 = vpop.f32.mrf.mxu0
  %v268 = vadd.f32 %v188, %v267
  %269 = vmatmul.f32.gmra.mxu0 %v206
  %v270 = vpop.f32.mrf.mxu0
  %v271 = vadd.f32 %v188, %v270
  %272 = vmatmul.f32.gmra.mxu0 %v209
  %v273 = vpop.f32.mrf.mxu0
  %v274 = vadd.f32 %v188, %v273
  %275 = vmatmul.f32.gmra.mxu0 %v212
  %v276 = vpop.f32.mrf.mxu0
  %v277 = vadd.f32 %v188, %v276
  %278 = vmatmul.f32.gmra.mxu0 %v215
  %v279 = vpop.f32.mrf.mxu0
  %v280 = vadd.f32 %v188, %v279
  %281 = vmatmul.f32.gmra.mxu0 %v218
  %v282 = vpop.f32.mrf.mxu0
  %v283 = vadd.f32 %v188, %v282
  %284 = vmatmul.f32.gmra.mxu0 %v221
  %v285 = vpop.f32.mrf.mxu0
  %v286 = vadd.f32 %v188, %v285
  %287 = vmatmul.f32.gmra.mxu0 %v224
  %v288 = vpop.f32.mrf.mxu0
  %v289 = vadd.f32 %v188, %v288
  %290 = vmatmul.f32.gmra.mxu0 %v227
  %v291 = vpop.f32.mrf.mxu0
  %v292 = vadd.f32 %v188, %v291
  %293 = vmatmul.f32.gmra.mxu0 %v230
  %v294 = vpop.f32.mrf.mxu0
  %v295 = vadd.f32 %v188, %v294
  %296 = vmatmul.f32.gmra.mxu0 %v233
  %v297 = vpop.f32.mrf.mxu0
  %v298 = vadd.f32 %v188, %v297
  %299 = vmatmul.f32.gmra.mxu0 %v236
  %v300 = vpop.f32.mrf.mxu0
  %v301 = vadd.f32 %v188, %v300
  %302 = vdwg.mxu0
  %vm303 = vcmask 64512
  %v305 = vsel %vm303, %v159, 0
  %v308 = vsel %vm303, %v256, 0
  %v311 = vsel %vm303, %v259, 0
  %313 = vmatpush.xpose.msra.mxu0 0.0
  %314 = vmatpush.xpose.msra.mxu0 0.0
  %315 = vmatpush.xpose.msra.mxu0 0.0
  %316 = vmatpush.xpose.msra.mxu0 0.0
  %317 = vmatpush.xpose.msra.mxu0 0.0
  %318 = vmatpush.xpose.msra.mxu0 0.0
  %319 = vmatpush.xpose.msra.mxu0 0.0
  %320 = vmatpush.xpose.msra.mxu0 0.0
  %321 = vmatpush.xpose.msra.mxu0 0.0
  %322 = vmatpush.xpose.msra.mxu0 0.0
  %323 = vmatpush.xpose.msra.mxu0 0.0
  %324 = vmatpush.xpose.msra.mxu0 0.0
  %325 = vmatpush.xpose.msra.mxu0 0.0
  %326 = vmatpush.xpose.msra.mxu0 0.0
  %327 = vmatpush.xpose.msra.mxu0 %v311
  %328 = vmatpush.xpose.msra.mxu0 %v308
  %329 = vmatmul.f32.gmra.mxu0 %v305
  %v330 = vpop.f32.mrf.mxu0
  %v331 = vadd.f32 %v95, %v330
  %332 = vdwg.mxu0
  %v334 = vsel %vm303, %v162, 0
  %v337 = vsel %vm303, %v262, 0
  %v340 = vsel %vm303, %v265, 0
  %342 = vmatpush.xpose.msra.mxu0 0.0
  %343 = vmatpush.xpose.msra.mxu0 0.0
  %344 = vmatpush.xpose.msra.mxu0 0.0
  %345 = vmatpush.xpose.msra.mxu0 0.0
  %346 = vmatpush.xpose.msra.mxu0 0.0
  %347 = vmatpush.xpose.msra.mxu0 0.0
  %348 = vmatpush.xpose.msra.mxu0 0.0
  %349 = vmatpush.xpose.msra.mxu0 0.0
  %350 = vmatpush.xpose.msra.mxu0 0.0
  %351 = vmatpush.xpose.msra.mxu0 0.0
  %352 = vmatpush.xpose.msra.mxu0 0.0
  %353 = vmatpush.xpose.msra.mxu0 0.0
  %354 = vmatpush.xpose.msra.mxu0 0.0
  %355 = vmatpush.xpose.msra.mxu0 0.0
  %356 = vmatpush.xpose.msra.mxu0 %v340
  %357 = vmatpush.xpose.msra.mxu0 %v337
  %358 = vmatmul.f32.gmra.mxu0 %v334
  %v359 = vpop.f32.mrf.mxu0
  %v360 = vadd.f32 %v96, %v359
  %361 = vdwg.mxu0
  %v363 = vsel %vm303, %v165, 0
  %v366 = vsel %vm303, %v268, 0
  %v369 = vsel %vm303, %v271, 0
  %371 = vmatpush.xpose.msra.mxu0 0.0
  %372 = vmatpush.xpose.msra.mxu0 0.0
  %373 = vmatpush.xpose.msra.mxu0 0.0
  %374 = vmatpush.xpose.msra.mxu0 0.0
  %375 = vmatpush.xpose.msra.mxu0 0.0
  %376 = vmatpush.xpose.msra.mxu0 0.0
  %377 = vmatpush.xpose.msra.mxu0 0.0
  %378 = vmatpush.xpose.msra.mxu0 0.0
  %379 = vmatpush.xpose.msra.mxu0 0.0
  %380 = vmatpush.xpose.msra.mxu0 0.0
  %381 = vmatpush.xpose.msra.mxu0 0.0
  %382 = vmatpush.xpose.msra.mxu0 0.0
  %383 = vmatpush.xpose.msra.mxu0 0.0
  %384 = vmatpush.xpose.msra.mxu0 0.0
  %385 = vmatpush.xpose.msra.mxu0 %v369
  %386 = vmatpush.xpose.msra.mxu0 %v366
  %387 = vmatmul.f32.gmra.mxu0 %v363
  %v388 = vpop.f32.mrf.mxu0
  %v389 = vadd.f32 %v97, %v388
  %390 = vdwg.mxu0
  %v392 = vsel %vm303, %v168, 0
  %v395 = vsel %vm303, %v274, 0
  %v398 = vsel %vm303, %v277, 0
  %400 = vmatpush.xpose.msra.mxu0 0.0
  %401 = vmatpush.xpose.msra.mxu0 0.0
  %402 = vmatpush.xpose.msra.mxu0 0.0
  %403 = vmatpush.xpose.msra.mxu0 0.0
  %404 = vmatpush.xpose.msra.mxu0 0.0
  %405 = vmatpush.xpose.msra.mxu0 0.0
  %406 = vmatpush.xpose.msra.mxu0 0.0
  %407 = vmatpush.xpose.msra.mxu0 0.0
  %408 = vmatpush.xpose.msra.mxu0 0.0
  %409 = vmatpush.xpose.msra.mxu0 0.0
  %410 = vmatpush.xpose.msra.mxu0 0.0
  %411 = vmatpush.xpose.msra.mxu0 0.0
  %412 = vmatpush.xpose.msra.mxu0 0.0
  %413 = vmatpush.xpose.msra.mxu0 0.0
  %414 = vmatpush.xpose.msra.mxu0 %v398
  %415 = vmatpush.xpose.msra.mxu0 %v395
  %416 = vmatmul.f32.gmra.mxu0 %v392
  %v417 = vpop.f32.mrf.mxu0
  %v418 = vadd.f32 %v98, %v417
  %419 = vdwg.mxu0
  %v421 = vsel %vm303, %v171, 0
  %v424 = vsel %vm303, %v280, 0
  %v427 = vsel %vm303, %v283, 0
  %429 = vmatpush.xpose.msra.mxu0 0.0
  %430 = vmatpush.xpose.msra.mxu0 0.0
  %431 = vmatpush.xpose.msra.mxu0 0.0
  %432 = vmatpush.xpose.msra.mxu0 0.0
  %433 = vmatpush.xpose.msra.mxu0 0.0
  %434 = vmatpush.xpose.msra.mxu0 0.0
  %435 = vmatpush.xpose.msra.mxu0 0.0
  %436 = vmatpush.xpose.msra.mxu0 0.0
  %437 = vmatpush.xpose.msra.mxu0 0.0
  %438 = vmatpush.xpose.msra.mxu0 0.0
  %439 = vmatpush.xpose.msra.mxu0 0.0
  %440 = vmatpush.xpose.msra.mxu0 0.0
  %441 = vmatpush.xpose.msra.mxu0 0.0
  %442 = vmatpush.xpose.msra.mxu0 0.0
  %443 = vmatpush.xpose.msra.mxu0 %v427
  %444 = vmatpush.xpose.msra.mxu0 %v424
  %445 = vmatmul.f32.gmra.mxu0 %v421
  %v446 = vpop.f32.mrf.mxu0
  %v447 = vadd.f32 %v99, %v446
  %448 = vdwg.mxu0
  %v450 = vsel %vm303, %v174, 0
  %v453 = vsel %vm303, %v286, 0
  %v456 = vsel %vm303, %v289, 0
  %458 = vmatpush.xpose.msra.mxu0 0.0
  %459 = vmatpush.xpose.msra.mxu0 0.0
  %460 = vmatpush.xpose.msra.mxu0 0.0
  %461 = vmatpush.xpose.msra.mxu0 0.0
  %462 = vmatpush.xpose.msra.mxu0 0.0
  %463 = vmatpush.xpose.msra.mxu0 0.0
  %464 = vmatpush.xpose.msra.mxu0 0.0
  %465 = vmatpush.xpose.msra.mxu0 0.0
  %466 = vmatpush.xpose.msra.mxu0 0.0
  %467 = vmatpush.xpose.msra.mxu0 0.0
  %468 = vmatpush.xpose.msra.mxu0 0.0
  %469 = vmatpush.xpose.msra.mxu0 0.0
  %470 = vmatpush.xpose.msra.mxu0 0.0
  %471 = vmatpush.xpose.msra.mxu0 0.0
  %472 = vmatpush.xpose.msra.mxu0 %v456
  %473 = vmatpush.xpose.msra.mxu0 %v453
  %474 = vmatmul.f32.gmra.mxu0 %v450
  %v475 = vpop.f32.mrf.mxu0
  %v476 = vadd.f32 %v100, %v475
  %477 = vdwg.mxu0
  %v479 = vsel %vm303, %v177, 0
  %v482 = vsel %vm303, %v292, 0
  %v485 = vsel %vm303, %v295, 0
  %487 = vmatpush.xpose.msra.mxu0 0.0
  %488 = vmatpush.xpose.msra.mxu0 0.0
  %489 = vmatpush.xpose.msra.mxu0 0.0
  %490 = vmatpush.xpose.msra.mxu0 0.0
  %491 = vmatpush.xpose.msra.mxu0 0.0
  %492 = vmatpush.xpose.msra.mxu0 0.0
  %493 = vmatpush.xpose.msra.mxu0 0.0
  %494 = vmatpush.xpose.msra.mxu0 0.0
  %495 = vmatpush.xpose.msra.mxu0 0.0
  %496 = vmatpush.xpose.msra.mxu0 0.0
  %497 = vmatpush.xpose.msra.mxu0 0.0
  %498 = vmatpush.xpose.msra.mxu0 0.0
  %499 = vmatpush.xpose.msra.mxu0 0.0
  %500 = vmatpush.xpose.msra.mxu0 0.0
  %501 = vmatpush.xpose.msra.mxu0 %v485
  %502 = vmatpush.xpose.msra.mxu0 %v482
  %503 = vmatmul.f32.gmra.mxu0 %v479
  %v504 = vpop.f32.mrf.mxu0
  %v505 = vadd.f32 %v101, %v504
  %506 = vdwg.mxu0
  %v508 = vsel %vm303, %v180, 0
  %v511 = vsel %vm303, %v298, 0
  %v514 = vsel %vm303, %v301, 0
  %516 = vmatpush.xpose.msra.mxu0 0.0
  %517 = vmatpush.xpose.msra.mxu0 0.0
  %518 = vmatpush.xpose.msra.mxu0 0.0
  %519 = vmatpush.xpose.msra.mxu0 0.0
  %520 = vmatpush.xpose.msra.mxu0 0.0
  %521 = vmatpush.xpose.msra.mxu0 0.0
  %522 = vmatpush.xpose.msra.mxu0 0.0
  %523 = vmatpush.xpose.msra.mxu0 0.0
  %524 = vmatpush.xpose.msra.mxu0 0.0
  %525 = vmatpush.xpose.msra.mxu0 0.0
  %526 = vmatpush.xpose.msra.mxu0 0.0
  %527 = vmatpush.xpose.msra.mxu0 0.0
  %528 = vmatpush.xpose.msra.mxu0 0.0
  %529 = vmatpush.xpose.msra.mxu0 0.0
  %530 = vmatpush.xpose.msra.mxu0 %v514
  %531 = vmatpush.xpose.msra.mxu0 %v511
  %532 = vmatmul.f32.gmra.mxu0 %v508
  %v533 = vpop.f32.mrf.mxu0
  %v534 = vadd.f32 %v102, %v533
  %535 = vdwg.mxu0
  %vm536 = vcmask 130048
  %v537 = vsel %vm536, %v331, -inf
  %538 = vmax.xlane.f32.xlu0 %v537
  %v539 = vpop.xlane.xlu0 %538
  %v540 = vsel %vm536, %v360, -inf
  %541 = vmax.xlane.f32.xlu0 %v540
  %v542 = vpop.xlane.xlu0 %541
  %v543 = vsel %vm536, %v389, -inf
  %544 = vmax.xlane.f32.xlu0 %v543
  %v545 = vpop.xlane.xlu0 %544
  %v546 = vsel %vm536, %v418, -inf
  %547 = vmax.xlane.f32.xlu0 %v546
  %v548 = vpop.xlane.xlu0 %547
  %v549 = vsel %vm536, %v447, -inf
  %550 = vmax.xlane.f32.xlu0 %v549
  %v551 = vpop.xlane.xlu0 %550
  %v552 = vsel %vm536, %v476, -inf
  %553 = vmax.xlane.f32.xlu0 %v552
  %v554 = vpop.xlane.xlu0 %553
  %v555 = vsel %vm536, %v505, -inf
  %556 = vmax.xlane.f32.xlu0 %v555
  %v557 = vpop.xlane.xlu0 %556
  %v558 = vsel %vm536, %v534, -inf
  %559 = vmax.xlane.f32.xlu0 %v558
  %v560 = vpop.xlane.xlu0 %559
  %v561 = vsub.f32 %v331, %v539
  %v562 = vsub.f32 %v360, %v542
  %v563 = vsub.f32 %v389, %v545
  %v564 = vsub.f32 %v418, %v548
  %v565 = vsub.f32 %v447, %v551
  %v566 = vsub.f32 %v476, %v554
  %v567 = vsub.f32 %v505, %v557
  %v568 = vsub.f32 %v534, %v560
  %v569 = vmul.f32 %v561, 1.442695
  %v570 = vpow.pop %v569
  %v571 = vmul.f32 %v562, 1.442695
  %v572 = vpow.pop %v571
  %v573 = vmul.f32 %v563, 1.442695
  %v574 = vpow.pop %v573
  %v575 = vmul.f32 %v564, 1.442695
  %v576 = vpow.pop %v575
  %v577 = vmul.f32 %v565, 1.442695
  %v578 = vpow.pop %v577
  %v579 = vmul.f32 %v566, 1.442695
  %v580 = vpow.pop %v579
  %v581 = vmul.f32 %v567, 1.442695
  %v582 = vpow.pop %v581
  %v583 = vmul.f32 %v568, 1.442695
  %v584 = vpow.pop %v583
  %v585 = vsel %vm536, %v570, 0.0
  %586 = vadd.xlane.f32.xlu0 %v585
  %v587 = vpop.xlane.xlu0 %586
  %v588 = vsel %vm536, %v572, 0.0
  %589 = vadd.xlane.f32.xlu0 %v588
  %v590 = vpop.xlane.xlu0 %589
  %v591 = vsel %vm536, %v574, 0.0
  %592 = vadd.xlane.f32.xlu0 %v591
  %v593 = vpop.xlane.xlu0 %592
  %v594 = vsel %vm536, %v576, 0.0
  %595 = vadd.xlane.f32.xlu0 %v594
  %v596 = vpop.xlane.xlu0 %595
  %v597 = vsel %vm536, %v578, 0.0
  %598 = vadd.xlane.f32.xlu0 %v597
  %v599 = vpop.xlane.xlu0 %598
  %v600 = vsel %vm536, %v580, 0.0
  %601 = vadd.xlane.f32.xlu0 %v600
  %v602 = vpop.xlane.xlu0 %601
  %v603 = vsel %vm536, %v582, 0.0
  %604 = vadd.xlane.f32.xlu0 %v603
  %v605 = vpop.xlane.xlu0 %604
  %v606 = vsel %vm536, %v584, 0.0
  %607 = vadd.xlane.f32.xlu0 %v606
  %v608 = vpop.xlane.xlu0 %607
  %v609 = vrcp.pop %v587
  %v610 = vrcp.pop %v590
  %v611 = vrcp.pop %v593
  %v612 = vrcp.pop %v596
  %v613 = vrcp.pop %v599
  %v614 = vrcp.pop %v602
  %v615 = vrcp.pop %v605
  %v616 = vrcp.pop %v608
  %v617 = vmul.f32 %v570, %v609
  %v618 = vmul.f32 %v572, %v610
  %v619 = vmul.f32 %v574, %v611
  %v620 = vmul.f32 %v576, %v612
  %v621 = vmul.f32 %v578, %v613
  %v622 = vmul.f32 %v580, %v614
  %v623 = vmul.f32 %v582, %v615
  %v624 = vmul.f32 %v584, %v616
  %625 = vrot.lane.b32.xlu0 %v256, 96
  %v626 = vpop.permute.xlu0 %625
  %627 = vrot.lane.b32.xlu0 %v259, 96
  %v628 = vpop.permute.xlu0 %627
  %v632 = vsel %vm536, %v617, 0
  %634 = vmatpush.msra.mxu0 0.0
  %635 = vmatpush.msra.mxu0 0.0
  %636 = vmatpush.msra.mxu0 0.0
  %637 = vmatpush.msra.mxu0 0.0
  %638 = vmatpush.msra.mxu0 0.0
  %639 = vmatpush.msra.mxu0 0.0
  %640 = vmatpush.msra.mxu0 0.0
  %641 = vmatpush.msra.mxu0 0.0
  %642 = vmatpush.msra.mxu0 0.0
  %643 = vmatpush.msra.mxu0 0.0
  %644 = vmatpush.msra.mxu0 0.0
  %645 = vmatpush.msra.mxu0 0.0
  %646 = vmatpush.msra.mxu0 0.0
  %647 = vmatpush.msra.mxu0 0.0
  %648 = vmatpush.msra.mxu0 %v628
  %649 = vmatpush.msra.mxu0 %v626
  %650 = vmatmul.f32.gmra.mxu0 %v632
  %v651 = vpop.f32.mrf.mxu0
  %v652 = vadd.f32 0.0, %v651
  %653 = vdwg.mxu0
  %654 = vrot.lane.b32.xlu0 %v262, 96
  %v655 = vpop.permute.xlu0 %654
  %656 = vrot.lane.b32.xlu0 %v265, 96
  %v657 = vpop.permute.xlu0 %656
  %v661 = vsel %vm536, %v618, 0
  %663 = vmatpush.msra.mxu0 0.0
  %664 = vmatpush.msra.mxu0 0.0
  %665 = vmatpush.msra.mxu0 0.0
  %666 = vmatpush.msra.mxu0 0.0
  %667 = vmatpush.msra.mxu0 0.0
  %668 = vmatpush.msra.mxu0 0.0
  %669 = vmatpush.msra.mxu0 0.0
  %670 = vmatpush.msra.mxu0 0.0
  %671 = vmatpush.msra.mxu0 0.0
  %672 = vmatpush.msra.mxu0 0.0
  %673 = vmatpush.msra.mxu0 0.0
  %674 = vmatpush.msra.mxu0 0.0
  %675 = vmatpush.msra.mxu0 0.0
  %676 = vmatpush.msra.mxu0 0.0
  %677 = vmatpush.msra.mxu0 %v657
  %678 = vmatpush.msra.mxu0 %v655
  %679 = vmatmul.f32.gmra.mxu0 %v661
  %v680 = vpop.f32.mrf.mxu0
  %v681 = vadd.f32 0.0, %v680
  %682 = vdwg.mxu0
  %683 = vrot.lane.b32.xlu0 %v268, 96
  %v684 = vpop.permute.xlu0 %683
  %685 = vrot.lane.b32.xlu0 %v271, 96
  %v686 = vpop.permute.xlu0 %685
  %v690 = vsel %vm536, %v619, 0
  %692 = vmatpush.msra.mxu0 0.0
  %693 = vmatpush.msra.mxu0 0.0
  %694 = vmatpush.msra.mxu0 0.0
  %695 = vmatpush.msra.mxu0 0.0
  %696 = vmatpush.msra.mxu0 0.0
  %697 = vmatpush.msra.mxu0 0.0
  %698 = vmatpush.msra.mxu0 0.0
  %699 = vmatpush.msra.mxu0 0.0
  %700 = vmatpush.msra.mxu0 0.0
  %701 = vmatpush.msra.mxu0 0.0
  %702 = vmatpush.msra.mxu0 0.0
  %703 = vmatpush.msra.mxu0 0.0
  %704 = vmatpush.msra.mxu0 0.0
  %705 = vmatpush.msra.mxu0 0.0
  %706 = vmatpush.msra.mxu0 %v686
  %707 = vmatpush.msra.mxu0 %v684
  %708 = vmatmul.f32.gmra.mxu0 %v690
  %v709 = vpop.f32.mrf.mxu0
  %v710 = vadd.f32 0.0, %v709
  %711 = vdwg.mxu0
  %712 = vrot.lane.b32.xlu0 %v274, 96
  %v713 = vpop.permute.xlu0 %712
  %714 = vrot.lane.b32.xlu0 %v277, 96
  %v715 = vpop.permute.xlu0 %714
  %v719 = vsel %vm536, %v620, 0
  %721 = vmatpush.msra.mxu0 0.0
  %722 = vmatpush.msra.mxu0 0.0
  %723 = vmatpush.msra.mxu0 0.0
  %724 = vmatpush.msra.mxu0 0.0
  %725 = vmatpush.msra.mxu0 0.0
  %726 = vmatpush.msra.mxu0 0.0
  %727 = vmatpush.msra.mxu0 0.0
  %728 = vmatpush.msra.mxu0 0.0
  %729 = vmatpush.msra.mxu0 0.0
  %730 = vmatpush.msra.mxu0 0.0
  %731 = vmatpush.msra.mxu0 0.0
  %732 = vmatpush.msra.mxu0 0.0
  %733 = vmatpush.msra.mxu0 0.0
  %734 = vmatpush.msra.mxu0 0.0
  %735 = vmatpush.msra.mxu0 %v715
  %736 = vmatpush.msra.mxu0 %v713
  %737 = vmatmul.f32.gmra.mxu0 %v719
  %v738 = vpop.f32.mrf.mxu0
  %v739 = vadd.f32 0.0, %v738
  %740 = vdwg.mxu0
  %741 = vrot.lane.b32.xlu0 %v280, 96
  %v742 = vpop.permute.xlu0 %741
  %743 = vrot.lane.b32.xlu0 %v283, 96
  %v744 = vpop.permute.xlu0 %743
  %v748 = vsel %vm536, %v621, 0
  %750 = vmatpush.msra.mxu0 0.0
  %751 = vmatpush.msra.mxu0 0.0
  %752 = vmatpush.msra.mxu0 0.0
  %753 = vmatpush.msra.mxu0 0.0
  %754 = vmatpush.msra.mxu0 0.0
  %755 = vmatpush.msra.mxu0 0.0
  %756 = vmatpush.msra.mxu0 0.0
  %757 = vmatpush.msra.mxu0 0.0
  %758 = vmatpush.msra.mxu0 0.0
  %759 = vmatpush.msra.mxu0 0.0
  %760 = vmatpush.msra.mxu0 0.0
  %761 = vmatpush.msra.mxu0 0.0
  %762 = vmatpush.msra.mxu0 0.0
  %763 = vmatpush.msra.mxu0 0.0
  %764 = vmatpush.msra.mxu0 %v744
  %765 = vmatpush.msra.mxu0 %v742
  %766 = vmatmul.f32.gmra.mxu0 %v748
  %v767 = vpop.f32.mrf.mxu0
  %v768 = vadd.f32 0.0, %v767
  %769 = vdwg.mxu0
  %770 = vrot.lane.b32.xlu0 %v286, 96
  %v771 = vpop.permute.xlu0 %770
  %772 = vrot.lane.b32.xlu0 %v289, 96
  %v773 = vpop.permute.xlu0 %772
  %v777 = vsel %vm536, %v622, 0
  %779 = vmatpush.msra.mxu0 0.0
  %780 = vmatpush.msra.mxu0 0.0
  %781 = vmatpush.msra.mxu0 0.0
  %782 = vmatpush.msra.mxu0 0.0
  %783 = vmatpush.msra.mxu0 0.0
  %784 = vmatpush.msra.mxu0 0.0
  %785 = vmatpush.msra.mxu0 0.0
  %786 = vmatpush.msra.mxu0 0.0
  %787 = vmatpush.msra.mxu0 0.0
  %788 = vmatpush.msra.mxu0 0.0
  %789 = vmatpush.msra.mxu0 0.0
  %790 = vmatpush.msra.mxu0 0.0
  %791 = vmatpush.msra.mxu0 0.0
  %792 = vmatpush.msra.mxu0 0.0
  %793 = vmatpush.msra.mxu0 %v773
  %794 = vmatpush.msra.mxu0 %v771
  %795 = vmatmul.f32.gmra.mxu0 %v777
  %v796 = vpop.f32.mrf.mxu0
  %v797 = vadd.f32 0.0, %v796
  %798 = vdwg.mxu0
  %799 = vrot.lane.b32.xlu0 %v292, 96
  %v800 = vpop.permute.xlu0 %799
  %801 = vrot.lane.b32.xlu0 %v295, 96
  %v802 = vpop.permute.xlu0 %801
  %v806 = vsel %vm536, %v623, 0
  %808 = vmatpush.msra.mxu0 0.0
  %809 = vmatpush.msra.mxu0 0.0
  %810 = vmatpush.msra.mxu0 0.0
  %811 = vmatpush.msra.mxu0 0.0
  %812 = vmatpush.msra.mxu0 0.0
  %813 = vmatpush.msra.mxu0 0.0
  %814 = vmatpush.msra.mxu0 0.0
  %815 = vmatpush.msra.mxu0 0.0
  %816 = vmatpush.msra.mxu0 0.0
  %817 = vmatpush.msra.mxu0 0.0
  %818 = vmatpush.msra.mxu0 0.0
  %819 = vmatpush.msra.mxu0 0.0
  %820 = vmatpush.msra.mxu0 0.0
  %821 = vmatpush.msra.mxu0 0.0
  %822 = vmatpush.msra.mxu0 %v802
  %823 = vmatpush.msra.mxu0 %v800
  %824 = vmatmul.f32.gmra.mxu0 %v806
  %v825 = vpop.f32.mrf.mxu0
  %v826 = vadd.f32 0.0, %v825
  %827 = vdwg.mxu0
  %828 = vrot.lane.b32.xlu0 %v298, 96
  %v829 = vpop.permute.xlu0 %828
  %830 = vrot.lane.b32.xlu0 %v301, 96
  %v831 = vpop.permute.xlu0 %830
  %v835 = vsel %vm536, %v624, 0
  %837 = vmatpush.msra.mxu0 0.0
  %838 = vmatpush.msra.mxu0 0.0
  %839 = vmatpush.msra.mxu0 0.0
  %840 = vmatpush.msra.mxu0 0.0
  %841 = vmatpush.msra.mxu0 0.0
  %842 = vmatpush.msra.mxu0 0.0
  %843 = vmatpush.msra.mxu0 0.0
  %844 = vmatpush.msra.mxu0 0.0
  %845 = vmatpush.msra.mxu0 0.0
  %846 = vmatpush.msra.mxu0 0.0
  %847 = vmatpush.msra.mxu0 0.0
  %848 = vmatpush.msra.mxu0 0.0
  %849 = vmatpush.msra.mxu0 0.0
  %850 = vmatpush.msra.mxu0 0.0
  %851 = vmatpush.msra.mxu0 %v831
  %852 = vmatpush.msra.mxu0 %v829
  %853 = vmatmul.f32.gmra.mxu0 %v835
  %v854 = vpop.f32.mrf.mxu0
  %v855 = vadd.f32 0.0, %v854
  %856 = vdwg.mxu0
  %857 = vrot.lane.b32.xlu0 %v159, 120
  %v858 = vpop.permute.xlu0 %857
  %859 = vrot.lane.b32.xlu0 %v256, 120
  %v860 = vpop.permute.xlu0 %859
  %861 = vrot.lane.b32.xlu0 %v259, 120
  %v862 = vpop.permute.xlu0 %861
  %v863 = vsel %vm303, %v858, 0
  %v865 = vsel %vm303, %v860, 0
  %v867 = vsel %vm303, %v862, 0
  %869 = vmatpush.xpose.msra.mxu0 0.0
  %870 = vmatpush.xpose.msra.mxu0 0.0
  %871 = vmatpush.xpose.msra.mxu0 0.0
  %872 = vmatpush.xpose.msra.mxu0 0.0
  %873 = vmatpush.xpose.msra.mxu0 0.0
  %874 = vmatpush.xpose.msra.mxu0 0.0
  %875 = vmatpush.xpose.msra.mxu0 0.0
  %876 = vmatpush.xpose.msra.mxu0 0.0
  %877 = vmatpush.xpose.msra.mxu0 0.0
  %878 = vmatpush.xpose.msra.mxu0 0.0
  %879 = vmatpush.xpose.msra.mxu0 0.0
  %880 = vmatpush.xpose.msra.mxu0 0.0
  %881 = vmatpush.xpose.msra.mxu0 0.0
  %882 = vmatpush.xpose.msra.mxu0 0.0
  %883 = vmatpush.xpose.msra.mxu0 %v867
  %884 = vmatpush.xpose.msra.mxu0 %v865
  %885 = vmatmul.f32.gmra.mxu0 %v863
  %v886 = vpop.f32.mrf.mxu0
  %v887 = vadd.f32 %v95, %v886
  %888 = vdwg.mxu0
  %889 = vrot.lane.b32.xlu0 %v162, 120
  %v890 = vpop.permute.xlu0 %889
  %891 = vrot.lane.b32.xlu0 %v262, 120
  %v892 = vpop.permute.xlu0 %891
  %893 = vrot.lane.b32.xlu0 %v265, 120
  %v894 = vpop.permute.xlu0 %893
  %v895 = vsel %vm303, %v890, 0
  %v897 = vsel %vm303, %v892, 0
  %v899 = vsel %vm303, %v894, 0
  %901 = vmatpush.xpose.msra.mxu0 0.0
  %902 = vmatpush.xpose.msra.mxu0 0.0
  %903 = vmatpush.xpose.msra.mxu0 0.0
  %904 = vmatpush.xpose.msra.mxu0 0.0
  %905 = vmatpush.xpose.msra.mxu0 0.0
  %906 = vmatpush.xpose.msra.mxu0 0.0
  %907 = vmatpush.xpose.msra.mxu0 0.0
  %908 = vmatpush.xpose.msra.mxu0 0.0
  %909 = vmatpush.xpose.msra.mxu0 0.0
  %910 = vmatpush.xpose.msra.mxu0 0.0
  %911 = vmatpush.xpose.msra.mxu0 0.0
  %912 = vmatpush.xpose.msra.mxu0 0.0
  %913 = vmatpush.xpose.msra.mxu0 0.0
  %914 = vmatpush.xpose.msra.mxu0 0.0
  %915 = vmatpush.xpose.msra.mxu0 %v899
  %916 = vmatpush.xpose.msra.mxu0 %v897
  %917 = vmatmul.f32.gmra.mxu0 %v895
  %v918 = vpop.f32.mrf.mxu0
  %v919 = vadd.f32 %v96, %v918
  %920 = vdwg.mxu0
  %921 = vrot.lane.b32.xlu0 %v165, 120
  %v922 = vpop.permute.xlu0 %921
  %923 = vrot.lane.b32.xlu0 %v268, 120
  %v924 = vpop.permute.xlu0 %923
  %925 = vrot.lane.b32.xlu0 %v271, 120
  %v926 = vpop.permute.xlu0 %925
  %v927 = vsel %vm303, %v922, 0
  %v929 = vsel %vm303, %v924, 0
  %v931 = vsel %vm303, %v926, 0
  %933 = vmatpush.xpose.msra.mxu0 0.0
  %934 = vmatpush.xpose.msra.mxu0 0.0
  %935 = vmatpush.xpose.msra.mxu0 0.0
  %936 = vmatpush.xpose.msra.mxu0 0.0
  %937 = vmatpush.xpose.msra.mxu0 0.0
  %938 = vmatpush.xpose.msra.mxu0 0.0
  %939 = vmatpush.xpose.msra.mxu0 0.0
  %940 = vmatpush.xpose.msra.mxu0 0.0
  %941 = vmatpush.xpose.msra.mxu0 0.0
  %942 = vmatpush.xpose.msra.mxu0 0.0
  %943 = vmatpush.xpose.msra.mxu0 0.0
  %944 = vmatpush.xpose.msra.mxu0 0.0
  %945 = vmatpush.xpose.msra.mxu0 0.0
  %946 = vmatpush.xpose.msra.mxu0 0.0
  %947 = vmatpush.xpose.msra.mxu0 %v931
  %948 = vmatpush.xpose.msra.mxu0 %v929
  %949 = vmatmul.f32.gmra.mxu0 %v927
  %v950 = vpop.f32.mrf.mxu0
  %v951 = vadd.f32 %v97, %v950
  %952 = vdwg.mxu0
  %953 = vrot.lane.b32.xlu0 %v168, 120
  %v954 = vpop.permute.xlu0 %953
  %955 = vrot.lane.b32.xlu0 %v274, 120
  %v956 = vpop.permute.xlu0 %955
  %957 = vrot.lane.b32.xlu0 %v277, 120
  %v958 = vpop.permute.xlu0 %957
  %v959 = vsel %vm303, %v954, 0
  %v961 = vsel %vm303, %v956, 0
  %v963 = vsel %vm303, %v958, 0
  %965 = vmatpush.xpose.msra.mxu0 0.0
  %966 = vmatpush.xpose.msra.mxu0 0.0
  %967 = vmatpush.xpose.msra.mxu0 0.0
  %968 = vmatpush.xpose.msra.mxu0 0.0
  %969 = vmatpush.xpose.msra.mxu0 0.0
  %970 = vmatpush.xpose.msra.mxu0 0.0
  %971 = vmatpush.xpose.msra.mxu0 0.0
  %972 = vmatpush.xpose.msra.mxu0 0.0
  %973 = vmatpush.xpose.msra.mxu0 0.0
  %974 = vmatpush.xpose.msra.mxu0 0.0
  %975 = vmatpush.xpose.msra.mxu0 0.0
  %976 = vmatpush.xpose.msra.mxu0 0.0
  %977 = vmatpush.xpose.msra.mxu0 0.0
  %978 = vmatpush.xpose.msra.mxu0 0.0
  %979 = vmatpush.xpose.msra.mxu0 %v963
  %980 = vmatpush.xpose.msra.mxu0 %v961
  %981 = vmatmul.f32.gmra.mxu0 %v959
  %v982 = vpop.f32.mrf.mxu0
  %v983 = vadd.f32 %v98, %v982
  %984 = vdwg.mxu0
  %985 = vrot.lane.b32.xlu0 %v171, 120
  %v986 = vpop.permute.xlu0 %985
  %987 = vrot.lane.b32.xlu0 %v280, 120
  %v988 = vpop.permute.xlu0 %987
  %989 = vrot.lane.b32.xlu0 %v283, 120
  %v990 = vpop.permute.xlu0 %989
  %v991 = vsel %vm303, %v986, 0
  %v993 = vsel %vm303, %v988, 0
  %v995 = vsel %vm303, %v990, 0
  %997 = vmatpush.xpose.msra.mxu0 0.0
  %998 = vmatpush.xpose.msra.mxu0 0.0
  %999 = vmatpush.xpose.msra.mxu0 0.0
  %1000 = vmatpush.xpose.msra.mxu0 0.0
  %1001 = vmatpush.xpose.msra.mxu0 0.0
  %1002 = vmatpush.xpose.msra.mxu0 0.0
  %1003 = vmatpush.xpose.msra.mxu0 0.0
  %1004 = vmatpush.xpose.msra.mxu0 0.0
  %1005 = vmatpush.xpose.msra.mxu0 0.0
  %1006 = vmatpush.xpose.msra.mxu0 0.0
  %1007 = vmatpush.xpose.msra.mxu0 0.0
  %1008 = vmatpush.xpose.msra.mxu0 0.0
  %1009 = vmatpush.xpose.msra.mxu0 0.0
  %1010 = vmatpush.xpose.msra.mxu0 0.0
  %1011 = vmatpush.xpose.msra.mxu0 %v995
  %1012 = vmatpush.xpose.msra.mxu0 %v993
  %1013 = vmatmul.f32.gmra.mxu0 %v991
  %v1014 = vpop.f32.mrf.mxu0
  %v1015 = vadd.f32 %v99, %v1014
  %1016 = vdwg.mxu0
  %1017 = vrot.lane.b32.xlu0 %v174, 120
  %v1018 = vpop.permute.xlu0 %1017
  %1019 = vrot.lane.b32.xlu0 %v286, 120
  %v1020 = vpop.permute.xlu0 %1019
  %1021 = vrot.lane.b32.xlu0 %v289, 120
  %v1022 = vpop.permute.xlu0 %1021
  %v1023 = vsel %vm303, %v1018, 0
  %v1025 = vsel %vm303, %v1020, 0
  %v1027 = vsel %vm303, %v1022, 0
  %1029 = vmatpush.xpose.msra.mxu0 0.0
  %1030 = vmatpush.xpose.msra.mxu0 0.0
  %1031 = vmatpush.xpose.msra.mxu0 0.0
  %1032 = vmatpush.xpose.msra.mxu0 0.0
  %1033 = vmatpush.xpose.msra.mxu0 0.0
  %1034 = vmatpush.xpose.msra.mxu0 0.0
  %1035 = vmatpush.xpose.msra.mxu0 0.0
  %1036 = vmatpush.xpose.msra.mxu0 0.0
  %1037 = vmatpush.xpose.msra.mxu0 0.0
  %1038 = vmatpush.xpose.msra.mxu0 0.0
  %1039 = vmatpush.xpose.msra.mxu0 0.0
  %1040 = vmatpush.xpose.msra.mxu0 0.0
  %1041 = vmatpush.xpose.msra.mxu0 0.0
  %1042 = vmatpush.xpose.msra.mxu0 0.0
  %1043 = vmatpush.xpose.msra.mxu0 %v1027
  %1044 = vmatpush.xpose.msra.mxu0 %v1025
  %1045 = vmatmul.f32.gmra.mxu0 %v1023
  %v1046 = vpop.f32.mrf.mxu0
  %v1047 = vadd.f32 %v100, %v1046
  %1048 = vdwg.mxu0
  %1049 = vrot.lane.b32.xlu0 %v177, 120
  %v1050 = vpop.permute.xlu0 %1049
  %1051 = vrot.lane.b32.xlu0 %v292, 120
  %v1052 = vpop.permute.xlu0 %1051
  %1053 = vrot.lane.b32.xlu0 %v295, 120
  %v1054 = vpop.permute.xlu0 %1053
  %v1055 = vsel %vm303, %v1050, 0
  %v1057 = vsel %vm303, %v1052, 0
  %v1059 = vsel %vm303, %v1054, 0
  %1061 = vmatpush.xpose.msra.mxu0 0.0
  %1062 = vmatpush.xpose.msra.mxu0 0.0
  %1063 = vmatpush.xpose.msra.mxu0 0.0
  %1064 = vmatpush.xpose.msra.mxu0 0.0
  %1065 = vmatpush.xpose.msra.mxu0 0.0
  %1066 = vmatpush.xpose.msra.mxu0 0.0
  %1067 = vmatpush.xpose.msra.mxu0 0.0
  %1068 = vmatpush.xpose.msra.mxu0 0.0
  %1069 = vmatpush.xpose.msra.mxu0 0.0
  %1070 = vmatpush.xpose.msra.mxu0 0.0
  %1071 = vmatpush.xpose.msra.mxu0 0.0
  %1072 = vmatpush.xpose.msra.mxu0 0.0
  %1073 = vmatpush.xpose.msra.mxu0 0.0
  %1074 = vmatpush.xpose.msra.mxu0 0.0
  %1075 = vmatpush.xpose.msra.mxu0 %v1059
  %1076 = vmatpush.xpose.msra.mxu0 %v1057
  %1077 = vmatmul.f32.gmra.mxu0 %v1055
  %v1078 = vpop.f32.mrf.mxu0
  %v1079 = vadd.f32 %v101, %v1078
  %1080 = vdwg.mxu0
  %1081 = vrot.lane.b32.xlu0 %v180, 120
  %v1082 = vpop.permute.xlu0 %1081
  %1083 = vrot.lane.b32.xlu0 %v298, 120
  %v1084 = vpop.permute.xlu0 %1083
  %1085 = vrot.lane.b32.xlu0 %v301, 120
  %v1086 = vpop.permute.xlu0 %1085
  %v1087 = vsel %vm303, %v1082, 0
  %v1089 = vsel %vm303, %v1084, 0
  %v1091 = vsel %vm303, %v1086, 0
  %1093 = vmatpush.xpose.msra.mxu0 0.0
  %1094 = vmatpush.xpose.msra.mxu0 0.0
  %1095 = vmatpush.xpose.msra.mxu0 0.0
  %1096 = vmatpush.xpose.msra.mxu0 0.0
  %1097 = vmatpush.xpose.msra.mxu0 0.0
  %1098 = vmatpush.xpose.msra.mxu0 0.0
  %1099 = vmatpush.xpose.msra.mxu0 0.0
  %1100 = vmatpush.xpose.msra.mxu0 0.0
  %1101 = vmatpush.xpose.msra.mxu0 0.0
  %1102 = vmatpush.xpose.msra.mxu0 0.0
  %1103 = vmatpush.xpose.msra.mxu0 0.0
  %1104 = vmatpush.xpose.msra.mxu0 0.0
  %1105 = vmatpush.xpose.msra.mxu0 0.0
  %1106 = vmatpush.xpose.msra.mxu0 0.0
  %1107 = vmatpush.xpose.msra.mxu0 %v1091
  %1108 = vmatpush.xpose.msra.mxu0 %v1089
  %1109 = vmatmul.f32.gmra.mxu0 %v1087
  %v1110 = vpop.f32.mrf.mxu0
  %v1111 = vadd.f32 %v102, %v1110
  %1112 = vdwg.mxu0
  %v1113 = vsel %vm536, %v887, -inf
  %1114 = vmax.xlane.f32.xlu0 %v1113
  %v1115 = vpop.xlane.xlu0 %1114
  %v1116 = vsel %vm536, %v919, -inf
  %1117 = vmax.xlane.f32.xlu0 %v1116
  %v1118 = vpop.xlane.xlu0 %1117
  %v1119 = vsel %vm536, %v951, -inf
  %1120 = vmax.xlane.f32.xlu0 %v1119
  %v1121 = vpop.xlane.xlu0 %1120
  %v1122 = vsel %vm536, %v983, -inf
  %1123 = vmax.xlane.f32.xlu0 %v1122
  %v1124 = vpop.xlane.xlu0 %1123
  %v1125 = vsel %vm536, %v1015, -inf
  %1126 = vmax.xlane.f32.xlu0 %v1125
  %v1127 = vpop.xlane.xlu0 %1126
  %v1128 = vsel %vm536, %v1047, -inf
  %1129 = vmax.xlane.f32.xlu0 %v1128
  %v1130 = vpop.xlane.xlu0 %1129
  %v1131 = vsel %vm536, %v1079, -inf
  %1132 = vmax.xlane.f32.xlu0 %v1131
  %v1133 = vpop.xlane.xlu0 %1132
  %v1134 = vsel %vm536, %v1111, -inf
  %1135 = vmax.xlane.f32.xlu0 %v1134
  %v1136 = vpop.xlane.xlu0 %1135
  %v1137 = vsub.f32 %v887, %v1115
  %v1138 = vsub.f32 %v919, %v1118
  %v1139 = vsub.f32 %v951, %v1121
  %v1140 = vsub.f32 %v983, %v1124
  %v1141 = vsub.f32 %v1015, %v1127
  %v1142 = vsub.f32 %v1047, %v1130
  %v1143 = vsub.f32 %v1079, %v1133
  %v1144 = vsub.f32 %v1111, %v1136
  %v1145 = vmul.f32 %v1137, 1.442695
  %v1146 = vpow.pop %v1145
  %v1147 = vmul.f32 %v1138, 1.442695
  %v1148 = vpow.pop %v1147
  %v1149 = vmul.f32 %v1139, 1.442695
  %v1150 = vpow.pop %v1149
  %v1151 = vmul.f32 %v1140, 1.442695
  %v1152 = vpow.pop %v1151
  %v1153 = vmul.f32 %v1141, 1.442695
  %v1154 = vpow.pop %v1153
  %v1155 = vmul.f32 %v1142, 1.442695
  %v1156 = vpow.pop %v1155
  %v1157 = vmul.f32 %v1143, 1.442695
  %v1158 = vpow.pop %v1157
  %v1159 = vmul.f32 %v1144, 1.442695
  %v1160 = vpow.pop %v1159
  %v1161 = vsel %vm536, %v1146, 0.0
  %1162 = vadd.xlane.f32.xlu0 %v1161
  %v1163 = vpop.xlane.xlu0 %1162
  %v1164 = vsel %vm536, %v1148, 0.0
  %1165 = vadd.xlane.f32.xlu0 %v1164
  %v1166 = vpop.xlane.xlu0 %1165
  %v1167 = vsel %vm536, %v1150, 0.0
  %1168 = vadd.xlane.f32.xlu0 %v1167
  %v1169 = vpop.xlane.xlu0 %1168
  %v1170 = vsel %vm536, %v1152, 0.0
  %1171 = vadd.xlane.f32.xlu0 %v1170
  %v1172 = vpop.xlane.xlu0 %1171
  %v1173 = vsel %vm536, %v1154, 0.0
  %1174 = vadd.xlane.f32.xlu0 %v1173
  %v1175 = vpop.xlane.xlu0 %1174
  %v1176 = vsel %vm536, %v1156, 0.0
  %1177 = vadd.xlane.f32.xlu0 %v1176
  %v1178 = vpop.xlane.xlu0 %1177
  %v1179 = vsel %vm536, %v1158, 0.0
  %1180 = vadd.xlane.f32.xlu0 %v1179
  %v1181 = vpop.xlane.xlu0 %1180
  %v1182 = vsel %vm536, %v1160, 0.0
  %1183 = vadd.xlane.f32.xlu0 %v1182
  %v1184 = vpop.xlane.xlu0 %1183
  %v1185 = vrcp.pop %v1163
  %v1186 = vrcp.pop %v1166
  %v1187 = vrcp.pop %v1169
  %v1188 = vrcp.pop %v1172
  %v1189 = vrcp.pop %v1175
  %v1190 = vrcp.pop %v1178
  %v1191 = vrcp.pop %v1181
  %v1192 = vrcp.pop %v1184
  %v1193 = vmul.f32 %v1146, %v1185
  %v1194 = vmul.f32 %v1148, %v1186
  %v1195 = vmul.f32 %v1150, %v1187
  %v1196 = vmul.f32 %v1152, %v1188
  %v1197 = vmul.f32 %v1154, %v1189
  %v1198 = vmul.f32 %v1156, %v1190
  %v1199 = vmul.f32 %v1158, %v1191
  %v1200 = vmul.f32 %v1160, %v1192
  %1201 = vrot.lane.b32.xlu0 %v256, 88
  %v1202 = vpop.permute.xlu0 %1201
  %1203 = vrot.lane.b32.xlu0 %v259, 88
  %v1204 = vpop.permute.xlu0 %1203
  %v1208 = vsel %vm536, %v1193, 0
  %1210 = vmatpush.msra.mxu0 0.0
  %1211 = vmatpush.msra.mxu0 0.0
  %1212 = vmatpush.msra.mxu0 0.0
  %1213 = vmatpush.msra.mxu0 0.0
  %1214 = vmatpush.msra.mxu0 0.0
  %1215 = vmatpush.msra.mxu0 0.0
  %1216 = vmatpush.msra.mxu0 0.0
  %1217 = vmatpush.msra.mxu0 0.0
  %1218 = vmatpush.msra.mxu0 0.0
  %1219 = vmatpush.msra.mxu0 0.0
  %1220 = vmatpush.msra.mxu0 0.0
  %1221 = vmatpush.msra.mxu0 0.0
  %1222 = vmatpush.msra.mxu0 0.0
  %1223 = vmatpush.msra.mxu0 0.0
  %1224 = vmatpush.msra.mxu0 %v1204
  %1225 = vmatpush.msra.mxu0 %v1202
  %1226 = vmatmul.f32.gmra.mxu0 %v1208
  %v1227 = vpop.f32.mrf.mxu0
  %v1228 = vadd.f32 0.0, %v1227
  %1229 = vdwg.mxu0
  %1230 = vrot.lane.b32.xlu0 %v262, 88
  %v1231 = vpop.permute.xlu0 %1230
  %1232 = vrot.lane.b32.xlu0 %v265, 88
  %v1233 = vpop.permute.xlu0 %1232
  %v1237 = vsel %vm536, %v1194, 0
  %1239 = vmatpush.msra.mxu0 0.0
  %1240 = vmatpush.msra.mxu0 0.0
  %1241 = vmatpush.msra.mxu0 0.0
  %1242 = vmatpush.msra.mxu0 0.0
  %1243 = vmatpush.msra.mxu0 0.0
  %1244 = vmatpush.msra.mxu0 0.0
  %1245 = vmatpush.msra.mxu0 0.0
  %1246 = vmatpush.msra.mxu0 0.0
  %1247 = vmatpush.msra.mxu0 0.0
  %1248 = vmatpush.msra.mxu0 0.0
  %1249 = vmatpush.msra.mxu0 0.0
  %1250 = vmatpush.msra.mxu0 0.0
  %1251 = vmatpush.msra.mxu0 0.0
  %1252 = vmatpush.msra.mxu0 0.0
  %1253 = vmatpush.msra.mxu0 %v1233
  %1254 = vmatpush.msra.mxu0 %v1231
  %1255 = vmatmul.f32.gmra.mxu0 %v1237
  %v1256 = vpop.f32.mrf.mxu0
  %v1257 = vadd.f32 0.0, %v1256
  %1258 = vdwg.mxu0
  %1259 = vrot.lane.b32.xlu0 %v268, 88
  %v1260 = vpop.permute.xlu0 %1259
  %1261 = vrot.lane.b32.xlu0 %v271, 88
  %v1262 = vpop.permute.xlu0 %1261
  %v1266 = vsel %vm536, %v1195, 0
  %1268 = vmatpush.msra.mxu0 0.0
  %1269 = vmatpush.msra.mxu0 0.0
  %1270 = vmatpush.msra.mxu0 0.0
  %1271 = vmatpush.msra.mxu0 0.0
  %1272 = vmatpush.msra.mxu0 0.0
  %1273 = vmatpush.msra.mxu0 0.0
  %1274 = vmatpush.msra.mxu0 0.0
  %1275 = vmatpush.msra.mxu0 0.0
  %1276 = vmatpush.msra.mxu0 0.0
  %1277 = vmatpush.msra.mxu0 0.0
  %1278 = vmatpush.msra.mxu0 0.0
  %1279 = vmatpush.msra.mxu0 0.0
  %1280 = vmatpush.msra.mxu0 0.0
  %1281 = vmatpush.msra.mxu0 0.0
  %1282 = vmatpush.msra.mxu0 %v1262
  %1283 = vmatpush.msra.mxu0 %v1260
  %1284 = vmatmul.f32.gmra.mxu0 %v1266
  %v1285 = vpop.f32.mrf.mxu0
  %v1286 = vadd.f32 0.0, %v1285
  %1287 = vdwg.mxu0
  %1288 = vrot.lane.b32.xlu0 %v274, 88
  %v1289 = vpop.permute.xlu0 %1288
  %1290 = vrot.lane.b32.xlu0 %v277, 88
  %v1291 = vpop.permute.xlu0 %1290
  %v1295 = vsel %vm536, %v1196, 0
  %1297 = vmatpush.msra.mxu0 0.0
  %1298 = vmatpush.msra.mxu0 0.0
  %1299 = vmatpush.msra.mxu0 0.0
  %1300 = vmatpush.msra.mxu0 0.0
  %1301 = vmatpush.msra.mxu0 0.0
  %1302 = vmatpush.msra.mxu0 0.0
  %1303 = vmatpush.msra.mxu0 0.0
  %1304 = vmatpush.msra.mxu0 0.0
  %1305 = vmatpush.msra.mxu0 0.0
  %1306 = vmatpush.msra.mxu0 0.0
  %1307 = vmatpush.msra.mxu0 0.0
  %1308 = vmatpush.msra.mxu0 0.0
  %1309 = vmatpush.msra.mxu0 0.0
  %1310 = vmatpush.msra.mxu0 0.0
  %1311 = vmatpush.msra.mxu0 %v1291
  %1312 = vmatpush.msra.mxu0 %v1289
  %1313 = vmatmul.f32.gmra.mxu0 %v1295
  %v1314 = vpop.f32.mrf.mxu0
  %v1315 = vadd.f32 0.0, %v1314
  %1316 = vdwg.mxu0
  %1317 = vrot.lane.b32.xlu0 %v280, 88
  %v1318 = vpop.permute.xlu0 %1317
  %1319 = vrot.lane.b32.xlu0 %v283, 88
  %v1320 = vpop.permute.xlu0 %1319
  %v1324 = vsel %vm536, %v1197, 0
  %1326 = vmatpush.msra.mxu0 0.0
  %1327 = vmatpush.msra.mxu0 0.0
  %1328 = vmatpush.msra.mxu0 0.0
  %1329 = vmatpush.msra.mxu0 0.0
  %1330 = vmatpush.msra.mxu0 0.0
  %1331 = vmatpush.msra.mxu0 0.0
  %1332 = vmatpush.msra.mxu0 0.0
  %1333 = vmatpush.msra.mxu0 0.0
  %1334 = vmatpush.msra.mxu0 0.0
  %1335 = vmatpush.msra.mxu0 0.0
  %1336 = vmatpush.msra.mxu0 0.0
  %1337 = vmatpush.msra.mxu0 0.0
  %1338 = vmatpush.msra.mxu0 0.0
  %1339 = vmatpush.msra.mxu0 0.0
  %1340 = vmatpush.msra.mxu0 %v1320
  %1341 = vmatpush.msra.mxu0 %v1318
  %1342 = vmatmul.f32.gmra.mxu0 %v1324
  %v1343 = vpop.f32.mrf.mxu0
  %v1344 = vadd.f32 0.0, %v1343
  %1345 = vdwg.mxu0
  %1346 = vrot.lane.b32.xlu0 %v286, 88
  %v1347 = vpop.permute.xlu0 %1346
  %1348 = vrot.lane.b32.xlu0 %v289, 88
  %v1349 = vpop.permute.xlu0 %1348
  %v1353 = vsel %vm536, %v1198, 0
  %1355 = vmatpush.msra.mxu0 0.0
  %1356 = vmatpush.msra.mxu0 0.0
  %1357 = vmatpush.msra.mxu0 0.0
  %1358 = vmatpush.msra.mxu0 0.0
  %1359 = vmatpush.msra.mxu0 0.0
  %1360 = vmatpush.msra.mxu0 0.0
  %1361 = vmatpush.msra.mxu0 0.0
  %1362 = vmatpush.msra.mxu0 0.0
  %1363 = vmatpush.msra.mxu0 0.0
  %1364 = vmatpush.msra.mxu0 0.0
  %1365 = vmatpush.msra.mxu0 0.0
  %1366 = vmatpush.msra.mxu0 0.0
  %1367 = vmatpush.msra.mxu0 0.0
  %1368 = vmatpush.msra.mxu0 0.0
  %1369 = vmatpush.msra.mxu0 %v1349
  %1370 = vmatpush.msra.mxu0 %v1347
  %1371 = vmatmul.f32.gmra.mxu0 %v1353
  %v1372 = vpop.f32.mrf.mxu0
  %v1373 = vadd.f32 0.0, %v1372
  %1374 = vdwg.mxu0
  %1375 = vrot.lane.b32.xlu0 %v292, 88
  %v1376 = vpop.permute.xlu0 %1375
  %1377 = vrot.lane.b32.xlu0 %v295, 88
  %v1378 = vpop.permute.xlu0 %1377
  %v1382 = vsel %vm536, %v1199, 0
  %1384 = vmatpush.msra.mxu0 0.0
  %1385 = vmatpush.msra.mxu0 0.0
  %1386 = vmatpush.msra.mxu0 0.0
  %1387 = vmatpush.msra.mxu0 0.0
  %1388 = vmatpush.msra.mxu0 0.0
  %1389 = vmatpush.msra.mxu0 0.0
  %1390 = vmatpush.msra.mxu0 0.0
  %1391 = vmatpush.msra.mxu0 0.0
  %1392 = vmatpush.msra.mxu0 0.0
  %1393 = vmatpush.msra.mxu0 0.0
  %1394 = vmatpush.msra.mxu0 0.0
  %1395 = vmatpush.msra.mxu0 0.0
  %1396 = vmatpush.msra.mxu0 0.0
  %1397 = vmatpush.msra.mxu0 0.0
  %1398 = vmatpush.msra.mxu0 %v1378
  %1399 = vmatpush.msra.mxu0 %v1376
  %1400 = vmatmul.f32.gmra.mxu0 %v1382
  %v1401 = vpop.f32.mrf.mxu0
  %v1402 = vadd.f32 0.0, %v1401
  %1403 = vdwg.mxu0
  %1404 = vrot.lane.b32.xlu0 %v298, 88
  %v1405 = vpop.permute.xlu0 %1404
  %1406 = vrot.lane.b32.xlu0 %v301, 88
  %v1407 = vpop.permute.xlu0 %1406
  %v1411 = vsel %vm536, %v1200, 0
  %1413 = vmatpush.msra.mxu0 0.0
  %1414 = vmatpush.msra.mxu0 0.0
  %1415 = vmatpush.msra.mxu0 0.0
  %1416 = vmatpush.msra.mxu0 0.0
  %1417 = vmatpush.msra.mxu0 0.0
  %1418 = vmatpush.msra.mxu0 0.0
  %1419 = vmatpush.msra.mxu0 0.0
  %1420 = vmatpush.msra.mxu0 0.0
  %1421 = vmatpush.msra.mxu0 0.0
  %1422 = vmatpush.msra.mxu0 0.0
  %1423 = vmatpush.msra.mxu0 0.0
  %1424 = vmatpush.msra.mxu0 0.0
  %1425 = vmatpush.msra.mxu0 0.0
  %1426 = vmatpush.msra.mxu0 0.0
  %1427 = vmatpush.msra.mxu0 %v1407
  %1428 = vmatpush.msra.mxu0 %v1405
  %1429 = vmatmul.f32.gmra.mxu0 %v1411
  %v1430 = vpop.f32.mrf.mxu0
  %v1431 = vadd.f32 0.0, %v1430
  %1432 = vdwg.mxu0
  %1433 = vrot.lane.b32.xlu0 %v159, 112
  %v1434 = vpop.permute.xlu0 %1433
  %1435 = vrot.lane.b32.xlu0 %v256, 112
  %v1436 = vpop.permute.xlu0 %1435
  %1437 = vrot.lane.b32.xlu0 %v259, 112
  %v1438 = vpop.permute.xlu0 %1437
  %v1439 = vsel %vm303, %v1434, 0
  %v1441 = vsel %vm303, %v1436, 0
  %v1443 = vsel %vm303, %v1438, 0
  %1445 = vmatpush.xpose.msra.mxu0 0.0
  %1446 = vmatpush.xpose.msra.mxu0 0.0
  %1447 = vmatpush.xpose.msra.mxu0 0.0
  %1448 = vmatpush.xpose.msra.mxu0 0.0
  %1449 = vmatpush.xpose.msra.mxu0 0.0
  %1450 = vmatpush.xpose.msra.mxu0 0.0
  %1451 = vmatpush.xpose.msra.mxu0 0.0
  %1452 = vmatpush.xpose.msra.mxu0 0.0
  %1453 = vmatpush.xpose.msra.mxu0 0.0
  %1454 = vmatpush.xpose.msra.mxu0 0.0
  %1455 = vmatpush.xpose.msra.mxu0 0.0
  %1456 = vmatpush.xpose.msra.mxu0 0.0
  %1457 = vmatpush.xpose.msra.mxu0 0.0
  %1458 = vmatpush.xpose.msra.mxu0 0.0
  %1459 = vmatpush.xpose.msra.mxu0 %v1443
  %1460 = vmatpush.xpose.msra.mxu0 %v1441
  %1461 = vmatmul.f32.gmra.mxu0 %v1439
  %v1462 = vpop.f32.mrf.mxu0
  %v1463 = vadd.f32 %v95, %v1462
  %1464 = vdwg.mxu0
  %1465 = vrot.lane.b32.xlu0 %v162, 112
  %v1466 = vpop.permute.xlu0 %1465
  %1467 = vrot.lane.b32.xlu0 %v262, 112
  %v1468 = vpop.permute.xlu0 %1467
  %1469 = vrot.lane.b32.xlu0 %v265, 112
  %v1470 = vpop.permute.xlu0 %1469
  %v1471 = vsel %vm303, %v1466, 0
  %v1473 = vsel %vm303, %v1468, 0
  %v1475 = vsel %vm303, %v1470, 0
  %1477 = vmatpush.xpose.msra.mxu0 0.0
  %1478 = vmatpush.xpose.msra.mxu0 0.0
  %1479 = vmatpush.xpose.msra.mxu0 0.0
  %1480 = vmatpush.xpose.msra.mxu0 0.0
  %1481 = vmatpush.xpose.msra.mxu0 0.0
  %1482 = vmatpush.xpose.msra.mxu0 0.0
  %1483 = vmatpush.xpose.msra.mxu0 0.0
  %1484 = vmatpush.xpose.msra.mxu0 0.0
  %1485 = vmatpush.xpose.msra.mxu0 0.0
  %1486 = vmatpush.xpose.msra.mxu0 0.0
  %1487 = vmatpush.xpose.msra.mxu0 0.0
  %1488 = vmatpush.xpose.msra.mxu0 0.0
  %1489 = vmatpush.xpose.msra.mxu0 0.0
  %1490 = vmatpush.xpose.msra.mxu0 0.0
  %1491 = vmatpush.xpose.msra.mxu0 %v1475
  %1492 = vmatpush.xpose.msra.mxu0 %v1473
  %1493 = vmatmul.f32.gmra.mxu0 %v1471
  %v1494 = vpop.f32.mrf.mxu0
  %v1495 = vadd.f32 %v96, %v1494
  %1496 = vdwg.mxu0
  %1497 = vrot.lane.b32.xlu0 %v165, 112
  %v1498 = vpop.permute.xlu0 %1497
  %1499 = vrot.lane.b32.xlu0 %v268, 112
  %v1500 = vpop.permute.xlu0 %1499
  %1501 = vrot.lane.b32.xlu0 %v271, 112
  %v1502 = vpop.permute.xlu0 %1501
  %v1503 = vsel %vm303, %v1498, 0
  %v1505 = vsel %vm303, %v1500, 0
  %v1507 = vsel %vm303, %v1502, 0
  %1509 = vmatpush.xpose.msra.mxu0 0.0
  %1510 = vmatpush.xpose.msra.mxu0 0.0
  %1511 = vmatpush.xpose.msra.mxu0 0.0
  %1512 = vmatpush.xpose.msra.mxu0 0.0
  %1513 = vmatpush.xpose.msra.mxu0 0.0
  %1514 = vmatpush.xpose.msra.mxu0 0.0
  %1515 = vmatpush.xpose.msra.mxu0 0.0
  %1516 = vmatpush.xpose.msra.mxu0 0.0
  %1517 = vmatpush.xpose.msra.mxu0 0.0
  %1518 = vmatpush.xpose.msra.mxu0 0.0
  %1519 = vmatpush.xpose.msra.mxu0 0.0
  %1520 = vmatpush.xpose.msra.mxu0 0.0
  %1521 = vmatpush.xpose.msra.mxu0 0.0
  %1522 = vmatpush.xpose.msra.mxu0 0.0
  %1523 = vmatpush.xpose.msra.mxu0 %v1507
  %1524 = vmatpush.xpose.msra.mxu0 %v1505
  %1525 = vmatmul.f32.gmra.mxu0 %v1503
  %v1526 = vpop.f32.mrf.mxu0
  %v1527 = vadd.f32 %v97, %v1526
  %1528 = vdwg.mxu0
  %1529 = vrot.lane.b32.xlu0 %v168, 112
  %v1530 = vpop.permute.xlu0 %1529
  %1531 = vrot.lane.b32.xlu0 %v274, 112
  %v1532 = vpop.permute.xlu0 %1531
  %1533 = vrot.lane.b32.xlu0 %v277, 112
  %v1534 = vpop.permute.xlu0 %1533
  %v1535 = vsel %vm303, %v1530, 0
  %v1537 = vsel %vm303, %v1532, 0
  %v1539 = vsel %vm303, %v1534, 0
  %1541 = vmatpush.xpose.msra.mxu0 0.0
  %1542 = vmatpush.xpose.msra.mxu0 0.0
  %1543 = vmatpush.xpose.msra.mxu0 0.0
  %1544 = vmatpush.xpose.msra.mxu0 0.0
  %1545 = vmatpush.xpose.msra.mxu0 0.0
  %1546 = vmatpush.xpose.msra.mxu0 0.0
  %1547 = vmatpush.xpose.msra.mxu0 0.0
  %1548 = vmatpush.xpose.msra.mxu0 0.0
  %1549 = vmatpush.xpose.msra.mxu0 0.0
  %1550 = vmatpush.xpose.msra.mxu0 0.0
  %1551 = vmatpush.xpose.msra.mxu0 0.0
  %1552 = vmatpush.xpose.msra.mxu0 0.0
  %1553 = vmatpush.xpose.msra.mxu0 0.0
  %1554 = vmatpush.xpose.msra.mxu0 0.0
  %1555 = vmatpush.xpose.msra.mxu0 %v1539
  %1556 = vmatpush.xpose.msra.mxu0 %v1537
  %1557 = vmatmul.f32.gmra.mxu0 %v1535
  %v1558 = vpop.f32.mrf.mxu0
  %v1559 = vadd.f32 %v98, %v1558
  %1560 = vdwg.mxu0
  %1561 = vrot.lane.b32.xlu0 %v171, 112
  %v1562 = vpop.permute.xlu0 %1561
  %1563 = vrot.lane.b32.xlu0 %v280, 112
  %v1564 = vpop.permute.xlu0 %1563
  %1565 = vrot.lane.b32.xlu0 %v283, 112
  %v1566 = vpop.permute.xlu0 %1565
  %v1567 = vsel %vm303, %v1562, 0
  %v1569 = vsel %vm303, %v1564, 0
  %v1571 = vsel %vm303, %v1566, 0
  %1573 = vmatpush.xpose.msra.mxu0 0.0
  %1574 = vmatpush.xpose.msra.mxu0 0.0
  %1575 = vmatpush.xpose.msra.mxu0 0.0
  %1576 = vmatpush.xpose.msra.mxu0 0.0
  %1577 = vmatpush.xpose.msra.mxu0 0.0
  %1578 = vmatpush.xpose.msra.mxu0 0.0
  %1579 = vmatpush.xpose.msra.mxu0 0.0
  %1580 = vmatpush.xpose.msra.mxu0 0.0
  %1581 = vmatpush.xpose.msra.mxu0 0.0
  %1582 = vmatpush.xpose.msra.mxu0 0.0
  %1583 = vmatpush.xpose.msra.mxu0 0.0
  %1584 = vmatpush.xpose.msra.mxu0 0.0
  %1585 = vmatpush.xpose.msra.mxu0 0.0
  %1586 = vmatpush.xpose.msra.mxu0 0.0
  %1587 = vmatpush.xpose.msra.mxu0 %v1571
  %1588 = vmatpush.xpose.msra.mxu0 %v1569
  %1589 = vmatmul.f32.gmra.mxu0 %v1567
  %v1590 = vpop.f32.mrf.mxu0
  %v1591 = vadd.f32 %v99, %v1590
  %1592 = vdwg.mxu0
  %1593 = vrot.lane.b32.xlu0 %v174, 112
  %v1594 = vpop.permute.xlu0 %1593
  %1595 = vrot.lane.b32.xlu0 %v286, 112
  %v1596 = vpop.permute.xlu0 %1595
  %1597 = vrot.lane.b32.xlu0 %v289, 112
  %v1598 = vpop.permute.xlu0 %1597
  %v1599 = vsel %vm303, %v1594, 0
  %v1601 = vsel %vm303, %v1596, 0
  %v1603 = vsel %vm303, %v1598, 0
  %1605 = vmatpush.xpose.msra.mxu0 0.0
  %1606 = vmatpush.xpose.msra.mxu0 0.0
  %1607 = vmatpush.xpose.msra.mxu0 0.0
  %1608 = vmatpush.xpose.msra.mxu0 0.0
  %1609 = vmatpush.xpose.msra.mxu0 0.0
  %1610 = vmatpush.xpose.msra.mxu0 0.0
  %1611 = vmatpush.xpose.msra.mxu0 0.0
  %1612 = vmatpush.xpose.msra.mxu0 0.0
  %1613 = vmatpush.xpose.msra.mxu0 0.0
  %1614 = vmatpush.xpose.msra.mxu0 0.0
  %1615 = vmatpush.xpose.msra.mxu0 0.0
  %1616 = vmatpush.xpose.msra.mxu0 0.0
  %1617 = vmatpush.xpose.msra.mxu0 0.0
  %1618 = vmatpush.xpose.msra.mxu0 0.0
  %1619 = vmatpush.xpose.msra.mxu0 %v1603
  %1620 = vmatpush.xpose.msra.mxu0 %v1601
  %1621 = vmatmul.f32.gmra.mxu0 %v1599
  %v1622 = vpop.f32.mrf.mxu0
  %v1623 = vadd.f32 %v100, %v1622
  %1624 = vdwg.mxu0
  %1625 = vrot.lane.b32.xlu0 %v177, 112
  %v1626 = vpop.permute.xlu0 %1625
  %1627 = vrot.lane.b32.xlu0 %v292, 112
  %v1628 = vpop.permute.xlu0 %1627
  %1629 = vrot.lane.b32.xlu0 %v295, 112
  %v1630 = vpop.permute.xlu0 %1629
  %v1631 = vsel %vm303, %v1626, 0
  %v1633 = vsel %vm303, %v1628, 0
  %v1635 = vsel %vm303, %v1630, 0
  %1637 = vmatpush.xpose.msra.mxu0 0.0
  %1638 = vmatpush.xpose.msra.mxu0 0.0
  %1639 = vmatpush.xpose.msra.mxu0 0.0
  %1640 = vmatpush.xpose.msra.mxu0 0.0
  %1641 = vmatpush.xpose.msra.mxu0 0.0
  %1642 = vmatpush.xpose.msra.mxu0 0.0
  %1643 = vmatpush.xpose.msra.mxu0 0.0
  %1644 = vmatpush.xpose.msra.mxu0 0.0
  %1645 = vmatpush.xpose.msra.mxu0 0.0
  %1646 = vmatpush.xpose.msra.mxu0 0.0
  %1647 = vmatpush.xpose.msra.mxu0 0.0
  %1648 = vmatpush.xpose.msra.mxu0 0.0
  %1649 = vmatpush.xpose.msra.mxu0 0.0
  %1650 = vmatpush.xpose.msra.mxu0 0.0
  %1651 = vmatpush.xpose.msra.mxu0 %v1635
  %1652 = vmatpush.xpose.msra.mxu0 %v1633
  %1653 = vmatmul.f32.gmra.mxu0 %v1631
  %v1654 = vpop.f32.mrf.mxu0
  %v1655 = vadd.f32 %v101, %v1654
  %1656 = vdwg.mxu0
  %1657 = vrot.lane.b32.xlu0 %v180, 112
  %v1658 = vpop.permute.xlu0 %1657
  %1659 = vrot.lane.b32.xlu0 %v298, 112
  %v1660 = vpop.permute.xlu0 %1659
  %1661 = vrot.lane.b32.xlu0 %v301, 112
  %v1662 = vpop.permute.xlu0 %1661
  %v1663 = vsel %vm303, %v1658, 0
  %v1665 = vsel %vm303, %v1660, 0
  %v1667 = vsel %vm303, %v1662, 0
  %1669 = vmatpush.xpose.msra.mxu0 0.0
  %1670 = vmatpush.xpose.msra.mxu0 0.0
  %1671 = vmatpush.xpose.msra.mxu0 0.0
  %1672 = vmatpush.xpose.msra.mxu0 0.0
  %1673 = vmatpush.xpose.msra.mxu0 0.0
  %1674 = vmatpush.xpose.msra.mxu0 0.0
  %1675 = vmatpush.xpose.msra.mxu0 0.0
  %1676 = vmatpush.xpose.msra.mxu0 0.0
  %1677 = vmatpush.xpose.msra.mxu0 0.0
  %1678 = vmatpush.xpose.msra.mxu0 0.0
  %1679 = vmatpush.xpose.msra.mxu0 0.0
  %1680 = vmatpush.xpose.msra.mxu0 0.0
  %1681 = vmatpush.xpose.msra.mxu0 0.0
  %1682 = vmatpush.xpose.msra.mxu0 0.0
  %1683 = vmatpush.xpose.msra.mxu0 %v1667
  %1684 = vmatpush.xpose.msra.mxu0 %v1665
  %1685 = vmatmul.f32.gmra.mxu0 %v1663
  %v1686 = vpop.f32.mrf.mxu0
  %v1687 = vadd.f32 %v102, %v1686
  %1688 = vdwg.mxu0
  %v1689 = vsel %vm536, %v1463, -inf
  %1690 = vmax.xlane.f32.xlu0 %v1689
  %v1691 = vpop.xlane.xlu0 %1690
  %v1692 = vsel %vm536, %v1495, -inf
  %1693 = vmax.xlane.f32.xlu0 %v1692
  %v1694 = vpop.xlane.xlu0 %1693
  %v1695 = vsel %vm536, %v1527, -inf
  %1696 = vmax.xlane.f32.xlu0 %v1695
  %v1697 = vpop.xlane.xlu0 %1696
  %v1698 = vsel %vm536, %v1559, -inf
  %1699 = vmax.xlane.f32.xlu0 %v1698
  %v1700 = vpop.xlane.xlu0 %1699
  %v1701 = vsel %vm536, %v1591, -inf
  %1702 = vmax.xlane.f32.xlu0 %v1701
  %v1703 = vpop.xlane.xlu0 %1702
  %v1704 = vsel %vm536, %v1623, -inf
  %1705 = vmax.xlane.f32.xlu0 %v1704
  %v1706 = vpop.xlane.xlu0 %1705
  %v1707 = vsel %vm536, %v1655, -inf
  %1708 = vmax.xlane.f32.xlu0 %v1707
  %v1709 = vpop.xlane.xlu0 %1708
  %v1710 = vsel %vm536, %v1687, -inf
  %1711 = vmax.xlane.f32.xlu0 %v1710
  %v1712 = vpop.xlane.xlu0 %1711
  %v1713 = vsub.f32 %v1463, %v1691
  %v1714 = vsub.f32 %v1495, %v1694
  %v1715 = vsub.f32 %v1527, %v1697
  %v1716 = vsub.f32 %v1559, %v1700
  %v1717 = vsub.f32 %v1591, %v1703
  %v1718 = vsub.f32 %v1623, %v1706
  %v1719 = vsub.f32 %v1655, %v1709
  %v1720 = vsub.f32 %v1687, %v1712
  %v1721 = vmul.f32 %v1713, 1.442695
  %v1722 = vpow.pop %v1721
  %v1723 = vmul.f32 %v1714, 1.442695
  %v1724 = vpow.pop %v1723
  %v1725 = vmul.f32 %v1715, 1.442695
  %v1726 = vpow.pop %v1725
  %v1727 = vmul.f32 %v1716, 1.442695
  %v1728 = vpow.pop %v1727
  %v1729 = vmul.f32 %v1717, 1.442695
  %v1730 = vpow.pop %v1729
  %v1731 = vmul.f32 %v1718, 1.442695
  %v1732 = vpow.pop %v1731
  %v1733 = vmul.f32 %v1719, 1.442695
  %v1734 = vpow.pop %v1733
  %v1735 = vmul.f32 %v1720, 1.442695
  %v1736 = vpow.pop %v1735
  %v1737 = vsel %vm536, %v1722, 0.0
  %1738 = vadd.xlane.f32.xlu0 %v1737
  %v1739 = vpop.xlane.xlu0 %1738
  %v1740 = vsel %vm536, %v1724, 0.0
  %1741 = vadd.xlane.f32.xlu0 %v1740
  %v1742 = vpop.xlane.xlu0 %1741
  %v1743 = vsel %vm536, %v1726, 0.0
  %1744 = vadd.xlane.f32.xlu0 %v1743
  %v1745 = vpop.xlane.xlu0 %1744
  %v1746 = vsel %vm536, %v1728, 0.0
  %1747 = vadd.xlane.f32.xlu0 %v1746
  %v1748 = vpop.xlane.xlu0 %1747
  %v1749 = vsel %vm536, %v1730, 0.0
  %1750 = vadd.xlane.f32.xlu0 %v1749
  %v1751 = vpop.xlane.xlu0 %1750
  %v1752 = vsel %vm536, %v1732, 0.0
  %1753 = vadd.xlane.f32.xlu0 %v1752
  %v1754 = vpop.xlane.xlu0 %1753
  %v1755 = vsel %vm536, %v1734, 0.0
  %1756 = vadd.xlane.f32.xlu0 %v1755
  %v1757 = vpop.xlane.xlu0 %1756
  %v1758 = vsel %vm536, %v1736, 0.0
  %1759 = vadd.xlane.f32.xlu0 %v1758
  %v1760 = vpop.xlane.xlu0 %1759
  %v1761 = vrcp.pop %v1739
  %v1762 = vrcp.pop %v1742
  %v1763 = vrcp.pop %v1745
  %v1764 = vrcp.pop %v1748
  %v1765 = vrcp.pop %v1751
  %v1766 = vrcp.pop %v1754
  %v1767 = vrcp.pop %v1757
  %v1768 = vrcp.pop %v1760
  %v1769 = vmul.f32 %v1722, %v1761
  %v1770 = vmul.f32 %v1724, %v1762
  %v1771 = vmul.f32 %v1726, %v1763
  %v1772 = vmul.f32 %v1728, %v1764
  %v1773 = vmul.f32 %v1730, %v1765
  %v1774 = vmul.f32 %v1732, %v1766
  %v1775 = vmul.f32 %v1734, %v1767
  %v1776 = vmul.f32 %v1736, %v1768
  %1777 = vrot.lane.b32.xlu0 %v256, 80
  %v1778 = vpop.permute.xlu0 %1777
  %1779 = vrot.lane.b32.xlu0 %v259, 80
  %v1780 = vpop.permute.xlu0 %1779
  %v1784 = vsel %vm536, %v1769, 0
  %1786 = vmatpush.msra.mxu0 0.0
  %1787 = vmatpush.msra.mxu0 0.0
  %1788 = vmatpush.msra.mxu0 0.0
  %1789 = vmatpush.msra.mxu0 0.0
  %1790 = vmatpush.msra.mxu0 0.0
  %1791 = vmatpush.msra.mxu0 0.0
  %1792 = vmatpush.msra.mxu0 0.0
  %1793 = vmatpush.msra.mxu0 0.0
  %1794 = vmatpush.msra.mxu0 0.0
  %1795 = vmatpush.msra.mxu0 0.0
  %1796 = vmatpush.msra.mxu0 0.0
  %1797 = vmatpush.msra.mxu0 0.0
  %1798 = vmatpush.msra.mxu0 0.0
  %1799 = vmatpush.msra.mxu0 0.0
  %1800 = vmatpush.msra.mxu0 %v1780
  %1801 = vmatpush.msra.mxu0 %v1778
  %1802 = vmatmul.f32.gmra.mxu0 %v1784
  %v1803 = vpop.f32.mrf.mxu0
  %v1804 = vadd.f32 0.0, %v1803
  %1805 = vdwg.mxu0
  %1806 = vrot.lane.b32.xlu0 %v262, 80
  %v1807 = vpop.permute.xlu0 %1806
  %1808 = vrot.lane.b32.xlu0 %v265, 80
  %v1809 = vpop.permute.xlu0 %1808
  %v1813 = vsel %vm536, %v1770, 0
  %1815 = vmatpush.msra.mxu0 0.0
  %1816 = vmatpush.msra.mxu0 0.0
  %1817 = vmatpush.msra.mxu0 0.0
  %1818 = vmatpush.msra.mxu0 0.0
  %1819 = vmatpush.msra.mxu0 0.0
  %1820 = vmatpush.msra.mxu0 0.0
  %1821 = vmatpush.msra.mxu0 0.0
  %1822 = vmatpush.msra.mxu0 0.0
  %1823 = vmatpush.msra.mxu0 0.0
  %1824 = vmatpush.msra.mxu0 0.0
  %1825 = vmatpush.msra.mxu0 0.0
  %1826 = vmatpush.msra.mxu0 0.0
  %1827 = vmatpush.msra.mxu0 0.0
  %1828 = vmatpush.msra.mxu0 0.0
  %1829 = vmatpush.msra.mxu0 %v1809
  %1830 = vmatpush.msra.mxu0 %v1807
  %1831 = vmatmul.f32.gmra.mxu0 %v1813
  %v1832 = vpop.f32.mrf.mxu0
  %v1833 = vadd.f32 0.0, %v1832
  %1834 = vdwg.mxu0
  %1835 = vrot.lane.b32.xlu0 %v268, 80
  %v1836 = vpop.permute.xlu0 %1835
  %1837 = vrot.lane.b32.xlu0 %v271, 80
  %v1838 = vpop.permute.xlu0 %1837
  %v1842 = vsel %vm536, %v1771, 0
  %1844 = vmatpush.msra.mxu0 0.0
  %1845 = vmatpush.msra.mxu0 0.0
  %1846 = vmatpush.msra.mxu0 0.0
  %1847 = vmatpush.msra.mxu0 0.0
  %1848 = vmatpush.msra.mxu0 0.0
  %1849 = vmatpush.msra.mxu0 0.0
  %1850 = vmatpush.msra.mxu0 0.0
  %1851 = vmatpush.msra.mxu0 0.0
  %1852 = vmatpush.msra.mxu0 0.0
  %1853 = vmatpush.msra.mxu0 0.0
  %1854 = vmatpush.msra.mxu0 0.0
  %1855 = vmatpush.msra.mxu0 0.0
  %1856 = vmatpush.msra.mxu0 0.0
  %1857 = vmatpush.msra.mxu0 0.0
  %1858 = vmatpush.msra.mxu0 %v1838
  %1859 = vmatpush.msra.mxu0 %v1836
  %1860 = vmatmul.f32.gmra.mxu0 %v1842
  %v1861 = vpop.f32.mrf.mxu0
  %v1862 = vadd.f32 0.0, %v1861
  %1863 = vdwg.mxu0
  %1864 = vrot.lane.b32.xlu0 %v274, 80
  %v1865 = vpop.permute.xlu0 %1864
  %1866 = vrot.lane.b32.xlu0 %v277, 80
  %v1867 = vpop.permute.xlu0 %1866
  %v1871 = vsel %vm536, %v1772, 0
  %1873 = vmatpush.msra.mxu0 0.0
  %1874 = vmatpush.msra.mxu0 0.0
  %1875 = vmatpush.msra.mxu0 0.0
  %1876 = vmatpush.msra.mxu0 0.0
  %1877 = vmatpush.msra.mxu0 0.0
  %1878 = vmatpush.msra.mxu0 0.0
  %1879 = vmatpush.msra.mxu0 0.0
  %1880 = vmatpush.msra.mxu0 0.0
  %1881 = vmatpush.msra.mxu0 0.0
  %1882 = vmatpush.msra.mxu0 0.0
  %1883 = vmatpush.msra.mxu0 0.0
  %1884 = vmatpush.msra.mxu0 0.0
  %1885 = vmatpush.msra.mxu0 0.0
  %1886 = vmatpush.msra.mxu0 0.0
  %1887 = vmatpush.msra.mxu0 %v1867
  %1888 = vmatpush.msra.mxu0 %v1865
  %1889 = vmatmul.f32.gmra.mxu0 %v1871
  %v1890 = vpop.f32.mrf.mxu0
  %v1891 = vadd.f32 0.0, %v1890
  %1892 = vdwg.mxu0
  %1893 = vrot.lane.b32.xlu0 %v280, 80
  %v1894 = vpop.permute.xlu0 %1893
  %1895 = vrot.lane.b32.xlu0 %v283, 80
  %v1896 = vpop.permute.xlu0 %1895
  %v1900 = vsel %vm536, %v1773, 0
  %1902 = vmatpush.msra.mxu0 0.0
  %1903 = vmatpush.msra.mxu0 0.0
  %1904 = vmatpush.msra.mxu0 0.0
  %1905 = vmatpush.msra.mxu0 0.0
  %1906 = vmatpush.msra.mxu0 0.0
  %1907 = vmatpush.msra.mxu0 0.0
  %1908 = vmatpush.msra.mxu0 0.0
  %1909 = vmatpush.msra.mxu0 0.0
  %1910 = vmatpush.msra.mxu0 0.0
  %1911 = vmatpush.msra.mxu0 0.0
  %1912 = vmatpush.msra.mxu0 0.0
  %1913 = vmatpush.msra.mxu0 0.0
  %1914 = vmatpush.msra.mxu0 0.0
  %1915 = vmatpush.msra.mxu0 0.0
  %1916 = vmatpush.msra.mxu0 %v1896
  %1917 = vmatpush.msra.mxu0 %v1894
  %1918 = vmatmul.f32.gmra.mxu0 %v1900
  %v1919 = vpop.f32.mrf.mxu0
  %v1920 = vadd.f32 0.0, %v1919
  %1921 = vdwg.mxu0
  %1922 = vrot.lane.b32.xlu0 %v286, 80
  %v1923 = vpop.permute.xlu0 %1922
  %1924 = vrot.lane.b32.xlu0 %v289, 80
  %v1925 = vpop.permute.xlu0 %1924
  %v1929 = vsel %vm536, %v1774, 0
  %1931 = vmatpush.msra.mxu0 0.0
  %1932 = vmatpush.msra.mxu0 0.0
  %1933 = vmatpush.msra.mxu0 0.0
  %1934 = vmatpush.msra.mxu0 0.0
  %1935 = vmatpush.msra.mxu0 0.0
  %1936 = vmatpush.msra.mxu0 0.0
  %1937 = vmatpush.msra.mxu0 0.0
  %1938 = vmatpush.msra.mxu0 0.0
  %1939 = vmatpush.msra.mxu0 0.0
  %1940 = vmatpush.msra.mxu0 0.0
  %1941 = vmatpush.msra.mxu0 0.0
  %1942 = vmatpush.msra.mxu0 0.0
  %1943 = vmatpush.msra.mxu0 0.0
  %1944 = vmatpush.msra.mxu0 0.0
  %1945 = vmatpush.msra.mxu0 %v1925
  %1946 = vmatpush.msra.mxu0 %v1923
  %1947 = vmatmul.f32.gmra.mxu0 %v1929
  %v1948 = vpop.f32.mrf.mxu0
  %v1949 = vadd.f32 0.0, %v1948
  %1950 = vdwg.mxu0
  %1951 = vrot.lane.b32.xlu0 %v292, 80
  %v1952 = vpop.permute.xlu0 %1951
  %1953 = vrot.lane.b32.xlu0 %v295, 80
  %v1954 = vpop.permute.xlu0 %1953
  %v1958 = vsel %vm536, %v1775, 0
  %1960 = vmatpush.msra.mxu0 0.0
  %1961 = vmatpush.msra.mxu0 0.0
  %1962 = vmatpush.msra.mxu0 0.0
  %1963 = vmatpush.msra.mxu0 0.0
  %1964 = vmatpush.msra.mxu0 0.0
  %1965 = vmatpush.msra.mxu0 0.0
  %1966 = vmatpush.msra.mxu0 0.0
  %1967 = vmatpush.msra.mxu0 0.0
  %1968 = vmatpush.msra.mxu0 0.0
  %1969 = vmatpush.msra.mxu0 0.0
  %1970 = vmatpush.msra.mxu0 0.0
  %1971 = vmatpush.msra.mxu0 0.0
  %1972 = vmatpush.msra.mxu0 0.0
  %1973 = vmatpush.msra.mxu0 0.0
  %1974 = vmatpush.msra.mxu0 %v1954
  %1975 = vmatpush.msra.mxu0 %v1952
  %1976 = vmatmul.f32.gmra.mxu0 %v1958
  %v1977 = vpop.f32.mrf.mxu0
  %v1978 = vadd.f32 0.0, %v1977
  %1979 = vdwg.mxu0
  %1980 = vrot.lane.b32.xlu0 %v298, 80
  %v1981 = vpop.permute.xlu0 %1980
  %1982 = vrot.lane.b32.xlu0 %v301, 80
  %v1983 = vpop.permute.xlu0 %1982
  %v1987 = vsel %vm536, %v1776, 0
  %1989 = vmatpush.msra.mxu0 0.0
  %1990 = vmatpush.msra.mxu0 0.0
  %1991 = vmatpush.msra.mxu0 0.0
  %1992 = vmatpush.msra.mxu0 0.0
  %1993 = vmatpush.msra.mxu0 0.0
  %1994 = vmatpush.msra.mxu0 0.0
  %1995 = vmatpush.msra.mxu0 0.0
  %1996 = vmatpush.msra.mxu0 0.0
  %1997 = vmatpush.msra.mxu0 0.0
  %1998 = vmatpush.msra.mxu0 0.0
  %1999 = vmatpush.msra.mxu0 0.0
  %2000 = vmatpush.msra.mxu0 0.0
  %2001 = vmatpush.msra.mxu0 0.0
  %2002 = vmatpush.msra.mxu0 0.0
  %2003 = vmatpush.msra.mxu0 %v1983
  %2004 = vmatpush.msra.mxu0 %v1981
  %2005 = vmatmul.f32.gmra.mxu0 %v1987
  %v2006 = vpop.f32.mrf.mxu0
  %v2007 = vadd.f32 0.0, %v2006
  %2008 = vdwg.mxu0
  %2009 = vrot.lane.b32.xlu0 %v159, 104
  %v2010 = vpop.permute.xlu0 %2009
  %2011 = vrot.lane.b32.xlu0 %v256, 104
  %v2012 = vpop.permute.xlu0 %2011
  %2013 = vrot.lane.b32.xlu0 %v259, 104
  %v2014 = vpop.permute.xlu0 %2013
  %v2015 = vsel %vm303, %v2010, 0
  %v2017 = vsel %vm303, %v2012, 0
  %v2019 = vsel %vm303, %v2014, 0
  %2021 = vmatpush.xpose.msra.mxu0 0.0
  %2022 = vmatpush.xpose.msra.mxu0 0.0
  %2023 = vmatpush.xpose.msra.mxu0 0.0
  %2024 = vmatpush.xpose.msra.mxu0 0.0
  %2025 = vmatpush.xpose.msra.mxu0 0.0
  %2026 = vmatpush.xpose.msra.mxu0 0.0
  %2027 = vmatpush.xpose.msra.mxu0 0.0
  %2028 = vmatpush.xpose.msra.mxu0 0.0
  %2029 = vmatpush.xpose.msra.mxu0 0.0
  %2030 = vmatpush.xpose.msra.mxu0 0.0
  %2031 = vmatpush.xpose.msra.mxu0 0.0
  %2032 = vmatpush.xpose.msra.mxu0 0.0
  %2033 = vmatpush.xpose.msra.mxu0 0.0
  %2034 = vmatpush.xpose.msra.mxu0 0.0
  %2035 = vmatpush.xpose.msra.mxu0 %v2019
  %2036 = vmatpush.xpose.msra.mxu0 %v2017
  %2037 = vmatmul.f32.gmra.mxu0 %v2015
  %v2038 = vpop.f32.mrf.mxu0
  %v2039 = vadd.f32 %v95, %v2038
  %2040 = vdwg.mxu0
  %2041 = vrot.lane.b32.xlu0 %v162, 104
  %v2042 = vpop.permute.xlu0 %2041
  %2043 = vrot.lane.b32.xlu0 %v262, 104
  %v2044 = vpop.permute.xlu0 %2043
  %2045 = vrot.lane.b32.xlu0 %v265, 104
  %v2046 = vpop.permute.xlu0 %2045
  %v2047 = vsel %vm303, %v2042, 0
  %v2049 = vsel %vm303, %v2044, 0
  %v2051 = vsel %vm303, %v2046, 0
  %2053 = vmatpush.xpose.msra.mxu0 0.0
  %2054 = vmatpush.xpose.msra.mxu0 0.0
  %2055 = vmatpush.xpose.msra.mxu0 0.0
  %2056 = vmatpush.xpose.msra.mxu0 0.0
  %2057 = vmatpush.xpose.msra.mxu0 0.0
  %2058 = vmatpush.xpose.msra.mxu0 0.0
  %2059 = vmatpush.xpose.msra.mxu0 0.0
  %2060 = vmatpush.xpose.msra.mxu0 0.0
  %2061 = vmatpush.xpose.msra.mxu0 0.0
  %2062 = vmatpush.xpose.msra.mxu0 0.0
  %2063 = vmatpush.xpose.msra.mxu0 0.0
  %2064 = vmatpush.xpose.msra.mxu0 0.0
  %2065 = vmatpush.xpose.msra.mxu0 0.0
  %2066 = vmatpush.xpose.msra.mxu0 0.0
  %2067 = vmatpush.xpose.msra.mxu0 %v2051
  %2068 = vmatpush.xpose.msra.mxu0 %v2049
  %2069 = vmatmul.f32.gmra.mxu0 %v2047
  %v2070 = vpop.f32.mrf.mxu0
  %v2071 = vadd.f32 %v96, %v2070
  %2072 = vdwg.mxu0
  %2073 = vrot.lane.b32.xlu0 %v165, 104
  %v2074 = vpop.permute.xlu0 %2073
  %2075 = vrot.lane.b32.xlu0 %v268, 104
  %v2076 = vpop.permute.xlu0 %2075
  %2077 = vrot.lane.b32.xlu0 %v271, 104
  %v2078 = vpop.permute.xlu0 %2077
  %v2079 = vsel %vm303, %v2074, 0
  %v2081 = vsel %vm303, %v2076, 0
  %v2083 = vsel %vm303, %v2078, 0
  %2085 = vmatpush.xpose.msra.mxu0 0.0
  %2086 = vmatpush.xpose.msra.mxu0 0.0
  %2087 = vmatpush.xpose.msra.mxu0 0.0
  %2088 = vmatpush.xpose.msra.mxu0 0.0
  %2089 = vmatpush.xpose.msra.mxu0 0.0
  %2090 = vmatpush.xpose.msra.mxu0 0.0
  %2091 = vmatpush.xpose.msra.mxu0 0.0
  %2092 = vmatpush.xpose.msra.mxu0 0.0
  %2093 = vmatpush.xpose.msra.mxu0 0.0
  %2094 = vmatpush.xpose.msra.mxu0 0.0
  %2095 = vmatpush.xpose.msra.mxu0 0.0
  %2096 = vmatpush.xpose.msra.mxu0 0.0
  %2097 = vmatpush.xpose.msra.mxu0 0.0
  %2098 = vmatpush.xpose.msra.mxu0 0.0
  %2099 = vmatpush.xpose.msra.mxu0 %v2083
  %2100 = vmatpush.xpose.msra.mxu0 %v2081
  %2101 = vmatmul.f32.gmra.mxu0 %v2079
  %v2102 = vpop.f32.mrf.mxu0
  %v2103 = vadd.f32 %v97, %v2102
  %2104 = vdwg.mxu0
  %2105 = vrot.lane.b32.xlu0 %v168, 104
  %v2106 = vpop.permute.xlu0 %2105
  %2107 = vrot.lane.b32.xlu0 %v274, 104
  %v2108 = vpop.permute.xlu0 %2107
  %2109 = vrot.lane.b32.xlu0 %v277, 104
  %v2110 = vpop.permute.xlu0 %2109
  %v2111 = vsel %vm303, %v2106, 0
  %v2113 = vsel %vm303, %v2108, 0
  %v2115 = vsel %vm303, %v2110, 0
  %2117 = vmatpush.xpose.msra.mxu0 0.0
  %2118 = vmatpush.xpose.msra.mxu0 0.0
  %2119 = vmatpush.xpose.msra.mxu0 0.0
  %2120 = vmatpush.xpose.msra.mxu0 0.0
  %2121 = vmatpush.xpose.msra.mxu0 0.0
  %2122 = vmatpush.xpose.msra.mxu0 0.0
  %2123 = vmatpush.xpose.msra.mxu0 0.0
  %2124 = vmatpush.xpose.msra.mxu0 0.0
  %2125 = vmatpush.xpose.msra.mxu0 0.0
  %2126 = vmatpush.xpose.msra.mxu0 0.0
  %2127 = vmatpush.xpose.msra.mxu0 0.0
  %2128 = vmatpush.xpose.msra.mxu0 0.0
  %2129 = vmatpush.xpose.msra.mxu0 0.0
  %2130 = vmatpush.xpose.msra.mxu0 0.0
  %2131 = vmatpush.xpose.msra.mxu0 %v2115
  %2132 = vmatpush.xpose.msra.mxu0 %v2113
  %2133 = vmatmul.f32.gmra.mxu0 %v2111
  %v2134 = vpop.f32.mrf.mxu0
  %v2135 = vadd.f32 %v98, %v2134
  %2136 = vdwg.mxu0
  %2137 = vrot.lane.b32.xlu0 %v171, 104
  %v2138 = vpop.permute.xlu0 %2137
  %2139 = vrot.lane.b32.xlu0 %v280, 104
  %v2140 = vpop.permute.xlu0 %2139
  %2141 = vrot.lane.b32.xlu0 %v283, 104
  %v2142 = vpop.permute.xlu0 %2141
  %v2143 = vsel %vm303, %v2138, 0
  %v2145 = vsel %vm303, %v2140, 0
  %v2147 = vsel %vm303, %v2142, 0
  %2149 = vmatpush.xpose.msra.mxu0 0.0
  %2150 = vmatpush.xpose.msra.mxu0 0.0
  %2151 = vmatpush.xpose.msra.mxu0 0.0
  %2152 = vmatpush.xpose.msra.mxu0 0.0
  %2153 = vmatpush.xpose.msra.mxu0 0.0
  %2154 = vmatpush.xpose.msra.mxu0 0.0
  %2155 = vmatpush.xpose.msra.mxu0 0.0
  %2156 = vmatpush.xpose.msra.mxu0 0.0
  %2157 = vmatpush.xpose.msra.mxu0 0.0
  %2158 = vmatpush.xpose.msra.mxu0 0.0
  %2159 = vmatpush.xpose.msra.mxu0 0.0
  %2160 = vmatpush.xpose.msra.mxu0 0.0
  %2161 = vmatpush.xpose.msra.mxu0 0.0
  %2162 = vmatpush.xpose.msra.mxu0 0.0
  %2163 = vmatpush.xpose.msra.mxu0 %v2147
  %2164 = vmatpush.xpose.msra.mxu0 %v2145
  %2165 = vmatmul.f32.gmra.mxu0 %v2143
  %v2166 = vpop.f32.mrf.mxu0
  %v2167 = vadd.f32 %v99, %v2166
  %2168 = vdwg.mxu0
  %2169 = vrot.lane.b32.xlu0 %v174, 104
  %v2170 = vpop.permute.xlu0 %2169
  %2171 = vrot.lane.b32.xlu0 %v286, 104
  %v2172 = vpop.permute.xlu0 %2171
  %2173 = vrot.lane.b32.xlu0 %v289, 104
  %v2174 = vpop.permute.xlu0 %2173
  %v2175 = vsel %vm303, %v2170, 0
  %v2177 = vsel %vm303, %v2172, 0
  %v2179 = vsel %vm303, %v2174, 0
  %2181 = vmatpush.xpose.msra.mxu0 0.0
  %2182 = vmatpush.xpose.msra.mxu0 0.0
  %2183 = vmatpush.xpose.msra.mxu0 0.0
  %2184 = vmatpush.xpose.msra.mxu0 0.0
  %2185 = vmatpush.xpose.msra.mxu0 0.0
  %2186 = vmatpush.xpose.msra.mxu0 0.0
  %2187 = vmatpush.xpose.msra.mxu0 0.0
  %2188 = vmatpush.xpose.msra.mxu0 0.0
  %2189 = vmatpush.xpose.msra.mxu0 0.0
  %2190 = vmatpush.xpose.msra.mxu0 0.0
  %2191 = vmatpush.xpose.msra.mxu0 0.0
  %2192 = vmatpush.xpose.msra.mxu0 0.0
  %2193 = vmatpush.xpose.msra.mxu0 0.0
  %2194 = vmatpush.xpose.msra.mxu0 0.0
  %2195 = vmatpush.xpose.msra.mxu0 %v2179
  %2196 = vmatpush.xpose.msra.mxu0 %v2177
  %2197 = vmatmul.f32.gmra.mxu0 %v2175
  %v2198 = vpop.f32.mrf.mxu0
  %v2199 = vadd.f32 %v100, %v2198
  %2200 = vdwg.mxu0
  %2201 = vrot.lane.b32.xlu0 %v177, 104
  %v2202 = vpop.permute.xlu0 %2201
  %2203 = vrot.lane.b32.xlu0 %v292, 104
  %v2204 = vpop.permute.xlu0 %2203
  %2205 = vrot.lane.b32.xlu0 %v295, 104
  %v2206 = vpop.permute.xlu0 %2205
  %v2207 = vsel %vm303, %v2202, 0
  %v2209 = vsel %vm303, %v2204, 0
  %v2211 = vsel %vm303, %v2206, 0
  %2213 = vmatpush.xpose.msra.mxu0 0.0
  %2214 = vmatpush.xpose.msra.mxu0 0.0
  %2215 = vmatpush.xpose.msra.mxu0 0.0
  %2216 = vmatpush.xpose.msra.mxu0 0.0
  %2217 = vmatpush.xpose.msra.mxu0 0.0
  %2218 = vmatpush.xpose.msra.mxu0 0.0
  %2219 = vmatpush.xpose.msra.mxu0 0.0
  %2220 = vmatpush.xpose.msra.mxu0 0.0
  %2221 = vmatpush.xpose.msra.mxu0 0.0
  %2222 = vmatpush.xpose.msra.mxu0 0.0
  %2223 = vmatpush.xpose.msra.mxu0 0.0
  %2224 = vmatpush.xpose.msra.mxu0 0.0
  %2225 = vmatpush.xpose.msra.mxu0 0.0
  %2226 = vmatpush.xpose.msra.mxu0 0.0
  %2227 = vmatpush.xpose.msra.mxu0 %v2211
  %2228 = vmatpush.xpose.msra.mxu0 %v2209
  %2229 = vmatmul.f32.gmra.mxu0 %v2207
  %v2230 = vpop.f32.mrf.mxu0
  %v2231 = vadd.f32 %v101, %v2230
  %2232 = vdwg.mxu0
  %2233 = vrot.lane.b32.xlu0 %v180, 104
  %v2234 = vpop.permute.xlu0 %2233
  %2235 = vrot.lane.b32.xlu0 %v298, 104
  %v2236 = vpop.permute.xlu0 %2235
  %2237 = vrot.lane.b32.xlu0 %v301, 104
  %v2238 = vpop.permute.xlu0 %2237
  %v2239 = vsel %vm303, %v2234, 0
  %v2241 = vsel %vm303, %v2236, 0
  %v2243 = vsel %vm303, %v2238, 0
  %2245 = vmatpush.xpose.msra.mxu0 0.0
  %2246 = vmatpush.xpose.msra.mxu0 0.0
  %2247 = vmatpush.xpose.msra.mxu0 0.0
  %2248 = vmatpush.xpose.msra.mxu0 0.0
  %2249 = vmatpush.xpose.msra.mxu0 0.0
  %2250 = vmatpush.xpose.msra.mxu0 0.0
  %2251 = vmatpush.xpose.msra.mxu0 0.0
  %2252 = vmatpush.xpose.msra.mxu0 0.0
  %2253 = vmatpush.xpose.msra.mxu0 0.0
  %2254 = vmatpush.xpose.msra.mxu0 0.0
  %2255 = vmatpush.xpose.msra.mxu0 0.0
  %2256 = vmatpush.xpose.msra.mxu0 0.0
  %2257 = vmatpush.xpose.msra.mxu0 0.0
  %2258 = vmatpush.xpose.msra.mxu0 0.0
  %2259 = vmatpush.xpose.msra.mxu0 %v2243
  %2260 = vmatpush.xpose.msra.mxu0 %v2241
  %2261 = vmatmul.f32.gmra.mxu0 %v2239
  %v2262 = vpop.f32.mrf.mxu0
  %v2263 = vadd.f32 %v102, %v2262
  %2264 = vdwg.mxu0
  %v2265 = vsel %vm536, %v2039, -inf
  %2266 = vmax.xlane.f32.xlu0 %v2265
  %v2267 = vpop.xlane.xlu0 %2266
  %v2268 = vsel %vm536, %v2071, -inf
  %2269 = vmax.xlane.f32.xlu0 %v2268
  %v2270 = vpop.xlane.xlu0 %2269
  %v2271 = vsel %vm536, %v2103, -inf
  %2272 = vmax.xlane.f32.xlu0 %v2271
  %v2273 = vpop.xlane.xlu0 %2272
  %v2274 = vsel %vm536, %v2135, -inf
  %2275 = vmax.xlane.f32.xlu0 %v2274
  %v2276 = vpop.xlane.xlu0 %2275
  %v2277 = vsel %vm536, %v2167, -inf
  %2278 = vmax.xlane.f32.xlu0 %v2277
  %v2279 = vpop.xlane.xlu0 %2278
  %v2280 = vsel %vm536, %v2199, -inf
  %2281 = vmax.xlane.f32.xlu0 %v2280
  %v2282 = vpop.xlane.xlu0 %2281
  %v2283 = vsel %vm536, %v2231, -inf
  %2284 = vmax.xlane.f32.xlu0 %v2283
  %v2285 = vpop.xlane.xlu0 %2284
  %v2286 = vsel %vm536, %v2263, -inf
  %2287 = vmax.xlane.f32.xlu0 %v2286
  %v2288 = vpop.xlane.xlu0 %2287
  %v2289 = vsub.f32 %v2039, %v2267
  %v2290 = vsub.f32 %v2071, %v2270
  %v2291 = vsub.f32 %v2103, %v2273
  %v2292 = vsub.f32 %v2135, %v2276
  %v2293 = vsub.f32 %v2167, %v2279
  %v2294 = vsub.f32 %v2199, %v2282
  %v2295 = vsub.f32 %v2231, %v2285
  %v2296 = vsub.f32 %v2263, %v2288
  %v2297 = vmul.f32 %v2289, 1.442695
  %v2298 = vpow.pop %v2297
  %v2299 = vmul.f32 %v2290, 1.442695
  %v2300 = vpow.pop %v2299
  %v2301 = vmul.f32 %v2291, 1.442695
  %v2302 = vpow.pop %v2301
  %v2303 = vmul.f32 %v2292, 1.442695
  %v2304 = vpow.pop %v2303
  %v2305 = vmul.f32 %v2293, 1.442695
  %v2306 = vpow.pop %v2305
  %v2307 = vmul.f32 %v2294, 1.442695
  %v2308 = vpow.pop %v2307
  %v2309 = vmul.f32 %v2295, 1.442695
  %v2310 = vpow.pop %v2309
  %v2311 = vmul.f32 %v2296, 1.442695
  %v2312 = vpow.pop %v2311
  %v2313 = vsel %vm536, %v2298, 0.0
  %2314 = vadd.xlane.f32.xlu0 %v2313
  %v2315 = vpop.xlane.xlu0 %2314
  %v2316 = vsel %vm536, %v2300, 0.0
  %2317 = vadd.xlane.f32.xlu0 %v2316
  %v2318 = vpop.xlane.xlu0 %2317
  %v2319 = vsel %vm536, %v2302, 0.0
  %2320 = vadd.xlane.f32.xlu0 %v2319
  %v2321 = vpop.xlane.xlu0 %2320
  %v2322 = vsel %vm536, %v2304, 0.0
  %2323 = vadd.xlane.f32.xlu0 %v2322
  %v2324 = vpop.xlane.xlu0 %2323
  %v2325 = vsel %vm536, %v2306, 0.0
  %2326 = vadd.xlane.f32.xlu0 %v2325
  %v2327 = vpop.xlane.xlu0 %2326
  %v2328 = vsel %vm536, %v2308, 0.0
  %2329 = vadd.xlane.f32.xlu0 %v2328
  %v2330 = vpop.xlane.xlu0 %2329
  %v2331 = vsel %vm536, %v2310, 0.0
  %2332 = vadd.xlane.f32.xlu0 %v2331
  %v2333 = vpop.xlane.xlu0 %2332
  %v2334 = vsel %vm536, %v2312, 0.0
  %2335 = vadd.xlane.f32.xlu0 %v2334
  %v2336 = vpop.xlane.xlu0 %2335
  %v2337 = vrcp.pop %v2315
  %v2338 = vrcp.pop %v2318
  %v2339 = vrcp.pop %v2321
  %v2340 = vrcp.pop %v2324
  %v2341 = vrcp.pop %v2327
  %v2342 = vrcp.pop %v2330
  %v2343 = vrcp.pop %v2333
  %v2344 = vrcp.pop %v2336
  %v2345 = vmul.f32 %v2298, %v2337
  %v2346 = vmul.f32 %v2300, %v2338
  %v2347 = vmul.f32 %v2302, %v2339
  %v2348 = vmul.f32 %v2304, %v2340
  %v2349 = vmul.f32 %v2306, %v2341
  %v2350 = vmul.f32 %v2308, %v2342
  %v2351 = vmul.f32 %v2310, %v2343
  %v2352 = vmul.f32 %v2312, %v2344
  %2353 = vrot.lane.b32.xlu0 %v256, 72
  %v2354 = vpop.permute.xlu0 %2353
  %2355 = vrot.lane.b32.xlu0 %v259, 72
  %v2356 = vpop.permute.xlu0 %2355
  %v2360 = vsel %vm536, %v2345, 0
  %2362 = vmatpush.msra.mxu0 0.0
  %2363 = vmatpush.msra.mxu0 0.0
  %2364 = vmatpush.msra.mxu0 0.0
  %2365 = vmatpush.msra.mxu0 0.0
  %2366 = vmatpush.msra.mxu0 0.0
  %2367 = vmatpush.msra.mxu0 0.0
  %2368 = vmatpush.msra.mxu0 0.0
  %2369 = vmatpush.msra.mxu0 0.0
  %2370 = vmatpush.msra.mxu0 0.0
  %2371 = vmatpush.msra.mxu0 0.0
  %2372 = vmatpush.msra.mxu0 0.0
  %2373 = vmatpush.msra.mxu0 0.0
  %2374 = vmatpush.msra.mxu0 0.0
  %2375 = vmatpush.msra.mxu0 0.0
  %2376 = vmatpush.msra.mxu0 %v2356
  %2377 = vmatpush.msra.mxu0 %v2354
  %2378 = vmatmul.f32.gmra.mxu0 %v2360
  %v2379 = vpop.f32.mrf.mxu0
  %v2380 = vadd.f32 0.0, %v2379
  %2381 = vdwg.mxu0
  %2382 = vrot.lane.b32.xlu0 %v262, 72
  %v2383 = vpop.permute.xlu0 %2382
  %2384 = vrot.lane.b32.xlu0 %v265, 72
  %v2385 = vpop.permute.xlu0 %2384
  %v2389 = vsel %vm536, %v2346, 0
  %2391 = vmatpush.msra.mxu0 0.0
  %2392 = vmatpush.msra.mxu0 0.0
  %2393 = vmatpush.msra.mxu0 0.0
  %2394 = vmatpush.msra.mxu0 0.0
  %2395 = vmatpush.msra.mxu0 0.0
  %2396 = vmatpush.msra.mxu0 0.0
  %2397 = vmatpush.msra.mxu0 0.0
  %2398 = vmatpush.msra.mxu0 0.0
  %2399 = vmatpush.msra.mxu0 0.0
  %2400 = vmatpush.msra.mxu0 0.0
  %2401 = vmatpush.msra.mxu0 0.0
  %2402 = vmatpush.msra.mxu0 0.0
  %2403 = vmatpush.msra.mxu0 0.0
  %2404 = vmatpush.msra.mxu0 0.0
  %2405 = vmatpush.msra.mxu0 %v2385
  %2406 = vmatpush.msra.mxu0 %v2383
  %2407 = vmatmul.f32.gmra.mxu0 %v2389
  %v2408 = vpop.f32.mrf.mxu0
  %v2409 = vadd.f32 0.0, %v2408
  %2410 = vdwg.mxu0
  %2411 = vrot.lane.b32.xlu0 %v268, 72
  %v2412 = vpop.permute.xlu0 %2411
  %2413 = vrot.lane.b32.xlu0 %v271, 72
  %v2414 = vpop.permute.xlu0 %2413
  %v2418 = vsel %vm536, %v2347, 0
  %2420 = vmatpush.msra.mxu0 0.0
  %2421 = vmatpush.msra.mxu0 0.0
  %2422 = vmatpush.msra.mxu0 0.0
  %2423 = vmatpush.msra.mxu0 0.0
  %2424 = vmatpush.msra.mxu0 0.0
  %2425 = vmatpush.msra.mxu0 0.0
  %2426 = vmatpush.msra.mxu0 0.0
  %2427 = vmatpush.msra.mxu0 0.0
  %2428 = vmatpush.msra.mxu0 0.0
  %2429 = vmatpush.msra.mxu0 0.0
  %2430 = vmatpush.msra.mxu0 0.0
  %2431 = vmatpush.msra.mxu0 0.0
  %2432 = vmatpush.msra.mxu0 0.0
  %2433 = vmatpush.msra.mxu0 0.0
  %2434 = vmatpush.msra.mxu0 %v2414
  %2435 = vmatpush.msra.mxu0 %v2412
  %2436 = vmatmul.f32.gmra.mxu0 %v2418
  %v2437 = vpop.f32.mrf.mxu0
  %v2438 = vadd.f32 0.0, %v2437
  %2439 = vdwg.mxu0
  %2440 = vrot.lane.b32.xlu0 %v274, 72
  %v2441 = vpop.permute.xlu0 %2440
  %2442 = vrot.lane.b32.xlu0 %v277, 72
  %v2443 = vpop.permute.xlu0 %2442
  %v2447 = vsel %vm536, %v2348, 0
  %2449 = vmatpush.msra.mxu0 0.0
  %2450 = vmatpush.msra.mxu0 0.0
  %2451 = vmatpush.msra.mxu0 0.0
  %2452 = vmatpush.msra.mxu0 0.0
  %2453 = vmatpush.msra.mxu0 0.0
  %2454 = vmatpush.msra.mxu0 0.0
  %2455 = vmatpush.msra.mxu0 0.0
  %2456 = vmatpush.msra.mxu0 0.0
  %2457 = vmatpush.msra.mxu0 0.0
  %2458 = vmatpush.msra.mxu0 0.0
  %2459 = vmatpush.msra.mxu0 0.0
  %2460 = vmatpush.msra.mxu0 0.0
  %2461 = vmatpush.msra.mxu0 0.0
  %2462 = vmatpush.msra.mxu0 0.0
  %2463 = vmatpush.msra.mxu0 %v2443
  %2464 = vmatpush.msra.mxu0 %v2441
  %2465 = vmatmul.f32.gmra.mxu0 %v2447
  %v2466 = vpop.f32.mrf.mxu0
  %v2467 = vadd.f32 0.0, %v2466
  %2468 = vdwg.mxu0
  %2469 = vrot.lane.b32.xlu0 %v280, 72
  %v2470 = vpop.permute.xlu0 %2469
  %2471 = vrot.lane.b32.xlu0 %v283, 72
  %v2472 = vpop.permute.xlu0 %2471
  %v2476 = vsel %vm536, %v2349, 0
  %2478 = vmatpush.msra.mxu0 0.0
  %2479 = vmatpush.msra.mxu0 0.0
  %2480 = vmatpush.msra.mxu0 0.0
  %2481 = vmatpush.msra.mxu0 0.0
  %2482 = vmatpush.msra.mxu0 0.0
  %2483 = vmatpush.msra.mxu0 0.0
  %2484 = vmatpush.msra.mxu0 0.0
  %2485 = vmatpush.msra.mxu0 0.0
  %2486 = vmatpush.msra.mxu0 0.0
  %2487 = vmatpush.msra.mxu0 0.0
  %2488 = vmatpush.msra.mxu0 0.0
  %2489 = vmatpush.msra.mxu0 0.0
  %2490 = vmatpush.msra.mxu0 0.0
  %2491 = vmatpush.msra.mxu0 0.0
  %2492 = vmatpush.msra.mxu0 %v2472
  %2493 = vmatpush.msra.mxu0 %v2470
  %2494 = vmatmul.f32.gmra.mxu0 %v2476
  %v2495 = vpop.f32.mrf.mxu0
  %v2496 = vadd.f32 0.0, %v2495
  %2497 = vdwg.mxu0
  %2498 = vrot.lane.b32.xlu0 %v286, 72
  %v2499 = vpop.permute.xlu0 %2498
  %2500 = vrot.lane.b32.xlu0 %v289, 72
  %v2501 = vpop.permute.xlu0 %2500
  %v2505 = vsel %vm536, %v2350, 0
  %2507 = vmatpush.msra.mxu0 0.0
  %2508 = vmatpush.msra.mxu0 0.0
  %2509 = vmatpush.msra.mxu0 0.0
  %2510 = vmatpush.msra.mxu0 0.0
  %2511 = vmatpush.msra.mxu0 0.0
  %2512 = vmatpush.msra.mxu0 0.0
  %2513 = vmatpush.msra.mxu0 0.0
  %2514 = vmatpush.msra.mxu0 0.0
  %2515 = vmatpush.msra.mxu0 0.0
  %2516 = vmatpush.msra.mxu0 0.0
  %2517 = vmatpush.msra.mxu0 0.0
  %2518 = vmatpush.msra.mxu0 0.0
  %2519 = vmatpush.msra.mxu0 0.0
  %2520 = vmatpush.msra.mxu0 0.0
  %2521 = vmatpush.msra.mxu0 %v2501
  %2522 = vmatpush.msra.mxu0 %v2499
  %2523 = vmatmul.f32.gmra.mxu0 %v2505
  %v2524 = vpop.f32.mrf.mxu0
  %v2525 = vadd.f32 0.0, %v2524
  %2526 = vdwg.mxu0
  %2527 = vrot.lane.b32.xlu0 %v292, 72
  %v2528 = vpop.permute.xlu0 %2527
  %2529 = vrot.lane.b32.xlu0 %v295, 72
  %v2530 = vpop.permute.xlu0 %2529
  %v2534 = vsel %vm536, %v2351, 0
  %2536 = vmatpush.msra.mxu0 0.0
  %2537 = vmatpush.msra.mxu0 0.0
  %2538 = vmatpush.msra.mxu0 0.0
  %2539 = vmatpush.msra.mxu0 0.0
  %2540 = vmatpush.msra.mxu0 0.0
  %2541 = vmatpush.msra.mxu0 0.0
  %2542 = vmatpush.msra.mxu0 0.0
  %2543 = vmatpush.msra.mxu0 0.0
  %2544 = vmatpush.msra.mxu0 0.0
  %2545 = vmatpush.msra.mxu0 0.0
  %2546 = vmatpush.msra.mxu0 0.0
  %2547 = vmatpush.msra.mxu0 0.0
  %2548 = vmatpush.msra.mxu0 0.0
  %2549 = vmatpush.msra.mxu0 0.0
  %2550 = vmatpush.msra.mxu0 %v2530
  %2551 = vmatpush.msra.mxu0 %v2528
  %2552 = vmatmul.f32.gmra.mxu0 %v2534
  %v2553 = vpop.f32.mrf.mxu0
  %v2554 = vadd.f32 0.0, %v2553
  %2555 = vdwg.mxu0
  %2556 = vrot.lane.b32.xlu0 %v298, 72
  %v2557 = vpop.permute.xlu0 %2556
  %2558 = vrot.lane.b32.xlu0 %v301, 72
  %v2559 = vpop.permute.xlu0 %2558
  %v2563 = vsel %vm536, %v2352, 0
  %2565 = vmatpush.msra.mxu0 0.0
  %2566 = vmatpush.msra.mxu0 0.0
  %2567 = vmatpush.msra.mxu0 0.0
  %2568 = vmatpush.msra.mxu0 0.0
  %2569 = vmatpush.msra.mxu0 0.0
  %2570 = vmatpush.msra.mxu0 0.0
  %2571 = vmatpush.msra.mxu0 0.0
  %2572 = vmatpush.msra.mxu0 0.0
  %2573 = vmatpush.msra.mxu0 0.0
  %2574 = vmatpush.msra.mxu0 0.0
  %2575 = vmatpush.msra.mxu0 0.0
  %2576 = vmatpush.msra.mxu0 0.0
  %2577 = vmatpush.msra.mxu0 0.0
  %2578 = vmatpush.msra.mxu0 0.0
  %2579 = vmatpush.msra.mxu0 %v2559
  %2580 = vmatpush.msra.mxu0 %v2557
  %2581 = vmatmul.f32.gmra.mxu0 %v2563
  %v2582 = vpop.f32.mrf.mxu0
  %v2583 = vadd.f32 0.0, %v2582
  %2584 = vdwg.mxu0
  %2593 = vrot.lane.b32.xlu0 %v1228, 8
  %v2594 = vpop.permute.xlu0 %2593
  %2595 = vrot.lane.b32.xlu0 %v1257, 8
  %v2596 = vpop.permute.xlu0 %2595
  %2597 = vrot.lane.b32.xlu0 %v1286, 8
  %v2598 = vpop.permute.xlu0 %2597
  %2599 = vrot.lane.b32.xlu0 %v1315, 8
  %v2600 = vpop.permute.xlu0 %2599
  %2601 = vrot.lane.b32.xlu0 %v1344, 8
  %v2602 = vpop.permute.xlu0 %2601
  %2603 = vrot.lane.b32.xlu0 %v1373, 8
  %v2604 = vpop.permute.xlu0 %2603
  %2605 = vrot.lane.b32.xlu0 %v1402, 8
  %v2606 = vpop.permute.xlu0 %2605
  %2607 = vrot.lane.b32.xlu0 %v1431, 8
  %v2608 = vpop.permute.xlu0 %2607
  %2625 = vrot.lane.b32.xlu0 %v1804, 16
  %v2626 = vpop.permute.xlu0 %2625
  %2627 = vrot.lane.b32.xlu0 %v1833, 16
  %v2628 = vpop.permute.xlu0 %2627
  %2629 = vrot.lane.b32.xlu0 %v1862, 16
  %v2630 = vpop.permute.xlu0 %2629
  %2631 = vrot.lane.b32.xlu0 %v1891, 16
  %v2632 = vpop.permute.xlu0 %2631
  %2633 = vrot.lane.b32.xlu0 %v1920, 16
  %v2634 = vpop.permute.xlu0 %2633
  %2635 = vrot.lane.b32.xlu0 %v1949, 16
  %v2636 = vpop.permute.xlu0 %2635
  %2637 = vrot.lane.b32.xlu0 %v1978, 16
  %v2638 = vpop.permute.xlu0 %2637
  %2639 = vrot.lane.b32.xlu0 %v2007, 16
  %v2640 = vpop.permute.xlu0 %2639
  %2657 = vrot.lane.b32.xlu0 %v2380, 24
  %v2658 = vpop.permute.xlu0 %2657
  %2659 = vrot.lane.b32.xlu0 %v2409, 24
  %v2660 = vpop.permute.xlu0 %2659
  %2661 = vrot.lane.b32.xlu0 %v2438, 24
  %v2662 = vpop.permute.xlu0 %2661
  %2663 = vrot.lane.b32.xlu0 %v2467, 24
  %v2664 = vpop.permute.xlu0 %2663
  %2665 = vrot.lane.b32.xlu0 %v2496, 24
  %v2666 = vpop.permute.xlu0 %2665
  %2667 = vrot.lane.b32.xlu0 %v2525, 24
  %v2668 = vpop.permute.xlu0 %2667
  %2669 = vrot.lane.b32.xlu0 %v2554, 24
  %v2670 = vpop.permute.xlu0 %2669
  %2671 = vrot.lane.b32.xlu0 %v2583, 24
  %v2672 = vpop.permute.xlu0 %2671
  %v2681 = vsel %vm303, %v652, %v2594
  %v2682 = vsel %vm303, %v681, %v2596
  %v2683 = vsel %vm303, %v710, %v2598
  %v2684 = vsel %vm303, %v739, %v2600
  %v2685 = vsel %vm303, %v768, %v2602
  %v2686 = vsel %vm303, %v797, %v2604
  %v2687 = vsel %vm303, %v826, %v2606
  %v2688 = vsel %vm303, %v855, %v2608
  %v2689 = vsel %vm536, %v2681, %v2626
  %v2690 = vsel %vm536, %v2682, %v2628
  %v2691 = vsel %vm536, %v2683, %v2630
  %v2692 = vsel %vm536, %v2684, %v2632
  %v2693 = vsel %vm536, %v2685, %v2634
  %v2694 = vsel %vm536, %v2686, %v2636
  %v2695 = vsel %vm536, %v2687, %v2638
  %v2696 = vsel %vm536, %v2688, %v2640
  %vm2697 = vcmask 195584
  %v2698 = vsel %vm2697, %v2689, %v2658
  %v2699 = vsel %vm2697, %v2690, %v2660
  %v2700 = vsel %vm2697, %v2691, %v2662
  %v2701 = vsel %vm2697, %v2692, %v2664
  %v2702 = vsel %vm2697, %v2693, %v2666
  %v2703 = vsel %vm2697, %v2694, %v2668
  %v2704 = vsel %vm2697, %v2695, %v2670
  %v2705 = vsel %vm2697, %v2696, %v2672
  %v2706 = vld [vmem:[%s5] sm:$0xff]
  %v2707 = vld [vmem:[%s5 + $0x8] sm:$0xff]
  %v2708 = vld [vmem:[%s5 + $0x10] sm:$0xff]
  %v2709 = vld [vmem:[%s5 + $0x18] sm:$0xff]
  %v2710 = vperm.slane %v62, 1
  %v2712 = vsel %vm116, %v2698, 0
  %v2715 = vsel %vm116, %v2699, 0
  %v2718 = vsel %vm116, %v2700, 0
  %v2721 = vsel %vm116, %v2701, 0
  %v2724 = vsel %vm116, %v2702, 0
  %v2727 = vsel %vm116, %v2703, 0
  %v2730 = vsel %vm116, %v2704, 0
  %v2733 = vsel %vm116, %v2705, 0
  %2735 = vmatpush.msra.mxu0 0.0
  %2736 = vmatpush.msra.mxu0 0.0
  %2737 = vmatpush.msra.mxu0 0.0
  %2738 = vmatpush.msra.mxu0 0.0
  %2739 = vmatpush.msra.mxu0 0.0
  %2740 = vmatpush.msra.mxu0 0.0
  %2741 = vmatpush.msra.mxu0 0.0
  %2742 = vmatpush.msra.mxu0 0.0
  %2743 = vmatpush.msra.mxu0 0.0
  %2744 = vmatpush.msra.mxu0 0.0
  %2745 = vmatpush.msra.mxu0 0.0
  %2746 = vmatpush.msra.mxu0 0.0
  %2747 = vmatpush.msra.mxu0 %v2709
  %2748 = vmatpush.msra.mxu0 %v2708
  %2749 = vmatpush.msra.mxu0 %v2707
  %2750 = vmatpush.msra.mxu0 %v2706
  %2751 = vmatmul.f32.gmra.mxu0 %v2712
  %v2752 = vpop.f32.mrf.mxu0
  %v2753 = vadd.f32 %v2710, %v2752
  %2754 = vmatmul.f32.gmra.mxu0 %v2715
  %v2755 = vpop.f32.mrf.mxu0
  %v2756 = vadd.f32 %v2710, %v2755
  %2757 = vmatmul.f32.gmra.mxu0 %v2718
  %v2758 = vpop.f32.mrf.mxu0
  %v2759 = vadd.f32 %v2710, %v2758
  %2760 = vmatmul.f32.gmra.mxu0 %v2721
  %v2761 = vpop.f32.mrf.mxu0
  %v2762 = vadd.f32 %v2710, %v2761
  %2763 = vmatmul.f32.gmra.mxu0 %v2724
  %v2764 = vpop.f32.mrf.mxu0
  %v2765 = vadd.f32 %v2710, %v2764
  %2766 = vmatmul.f32.gmra.mxu0 %v2727
  %v2767 = vpop.f32.mrf.mxu0
  %v2768 = vadd.f32 %v2710, %v2767
  %2769 = vmatmul.f32.gmra.mxu0 %v2730
  %v2770 = vpop.f32.mrf.mxu0
  %v2771 = vadd.f32 %v2710, %v2770
  %2772 = vmatmul.f32.gmra.mxu0 %v2733
  %v2773 = vpop.f32.mrf.mxu0
  %v2774 = vadd.f32 %v2710, %v2773
  %2775 = vdwg.mxu0
  %v2776 = vadd.f32 %v2753, %v38
  %v2777 = vadd.f32 %v2756, %v39
  %v2778 = vadd.f32 %v2759, %v40
  %v2779 = vadd.f32 %v2762, %v41
  %v2780 = vadd.f32 %v2765, %v42
  %v2781 = vadd.f32 %v2768, %v43
  %v2782 = vadd.f32 %v2771, %v44
  %v2783 = vadd.f32 %v2774, %v45
  %v2784 = vsel %vm116, %v2776, 0.0
  %2785 = vadd.xlane.f32.xlu0 %v2784
  %v2786 = vpop.xlane.xlu0 %2785
  %v2787 = vsel %vm116, %v2777, 0.0
  %2788 = vadd.xlane.f32.xlu0 %v2787
  %v2789 = vpop.xlane.xlu0 %2788
  %v2790 = vsel %vm116, %v2778, 0.0
  %2791 = vadd.xlane.f32.xlu0 %v2790
  %v2792 = vpop.xlane.xlu0 %2791
  %v2793 = vsel %vm116, %v2779, 0.0
  %2794 = vadd.xlane.f32.xlu0 %v2793
  %v2795 = vpop.xlane.xlu0 %2794
  %v2796 = vsel %vm116, %v2780, 0.0
  %2797 = vadd.xlane.f32.xlu0 %v2796
  %v2798 = vpop.xlane.xlu0 %2797
  %v2799 = vsel %vm116, %v2781, 0.0
  %2800 = vadd.xlane.f32.xlu0 %v2799
  %v2801 = vpop.xlane.xlu0 %2800
  %v2802 = vsel %vm116, %v2782, 0.0
  %2803 = vadd.xlane.f32.xlu0 %v2802
  %v2804 = vpop.xlane.xlu0 %2803
  %v2805 = vsel %vm116, %v2783, 0.0
  %2806 = vadd.xlane.f32.xlu0 %v2805
  %v2807 = vpop.xlane.xlu0 %2806
  %v2808 = vrcp.pop 32.0
  %v2809 = vmul.f32 32.0, %v2808
  %v2810 = vsub.f32 1.0, %v2809
  %v2811 = vmul.f32 %v2808, %v2810
  %v2812 = vadd.f32 %v2808, %v2811
  %vm2813 = vweird.f32 %v2808
  %v2814 = vsel %vm2813, %v2808, %v2812
  %v2815 = vmul.f32 %v2786, %v2814
  %v2816 = vmul.f32 %v2789, %v2814
  %v2817 = vmul.f32 %v2792, %v2814
  %v2818 = vmul.f32 %v2795, %v2814
  %v2819 = vmul.f32 %v2798, %v2814
  %v2820 = vmul.f32 %v2801, %v2814
  %v2821 = vmul.f32 %v2804, %v2814
  %v2822 = vmul.f32 %v2807, %v2814
  %v2823 = vsub.f32 %v2776, %v2815
  %v2824 = vsub.f32 %v2777, %v2816
  %v2825 = vsub.f32 %v2778, %v2817
  %v2826 = vsub.f32 %v2779, %v2818
  %v2827 = vsub.f32 %v2780, %v2819
  %v2828 = vsub.f32 %v2781, %v2820
  %v2829 = vsub.f32 %v2782, %v2821
  %v2830 = vsub.f32 %v2783, %v2822
  %v2831 = vmul.f32 %v2823, %v2823
  %v2832 = vmul.f32 %v2824, %v2824
  %v2833 = vmul.f32 %v2825, %v2825
  %v2834 = vmul.f32 %v2826, %v2826
  %v2835 = vmul.f32 %v2827, %v2827
  %v2836 = vmul.f32 %v2828, %v2828
  %v2837 = vmul.f32 %v2829, %v2829
  %v2838 = vmul.f32 %v2830, %v2830
  %v2839 = vsel %vm116, %v2831, 0.0
  %2840 = vadd.xlane.f32.xlu0 %v2839
  %v2841 = vpop.xlane.xlu0 %2840
  %v2842 = vsel %vm116, %v2832, 0.0
  %2843 = vadd.xlane.f32.xlu0 %v2842
  %v2844 = vpop.xlane.xlu0 %2843
  %v2845 = vsel %vm116, %v2833, 0.0
  %2846 = vadd.xlane.f32.xlu0 %v2845
  %v2847 = vpop.xlane.xlu0 %2846
  %v2848 = vsel %vm116, %v2834, 0.0
  %2849 = vadd.xlane.f32.xlu0 %v2848
  %v2850 = vpop.xlane.xlu0 %2849
  %v2851 = vsel %vm116, %v2835, 0.0
  %2852 = vadd.xlane.f32.xlu0 %v2851
  %v2853 = vpop.xlane.xlu0 %2852
  %v2854 = vsel %vm116, %v2836, 0.0
  %2855 = vadd.xlane.f32.xlu0 %v2854
  %v2856 = vpop.xlane.xlu0 %2855
  %v2857 = vsel %vm116, %v2837, 0.0
  %2858 = vadd.xlane.f32.xlu0 %v2857
  %v2859 = vpop.xlane.xlu0 %2858
  %v2860 = vsel %vm116, %v2838, 0.0
  %2861 = vadd.xlane.f32.xlu0 %v2860
  %v2862 = vpop.xlane.xlu0 %2861
  %v2863 = vmul.f32 %v2841, %v2814
  %v2864 = vmul.f32 %v2844, %v2814
  %v2865 = vmul.f32 %v2847, %v2814
  %v2866 = vmul.f32 %v2850, %v2814
  %v2867 = vmul.f32 %v2853, %v2814
  %v2868 = vmul.f32 %v2856, %v2814
  %v2869 = vmul.f32 %v2859, %v2814
  %v2870 = vmul.f32 %v2862, %v2814
  %v2871 = vadd.f32 %v2863, 1e-05
  %v2872 = vadd.f32 %v2864, 1e-05
  %v2873 = vadd.f32 %v2865, 1e-05
  %v2874 = vadd.f32 %v2866, 1e-05
  %v2875 = vadd.f32 %v2867, 1e-05
  %v2876 = vadd.f32 %v2868, 1e-05
  %v2877 = vadd.f32 %v2869, 1e-05
  %v2878 = vadd.f32 %v2870, 1e-05
  %v2879 = vrsqrt.pop %v2871
  %v2880 = vmul.f32 %v2879, %v2871
  %v2881 = vmul.f32 %v2880, %v2879
  %v2882 = vmul.f32 0.5, %v2881
  %v2883 = vsub.f32 1.5, %v2882
  %v2884 = vmul.f32 %v2879, %v2883
  %vm2885 = vweird.f32 %v2871
  %vm2886 = vweird.f32 %v2879
  %vm2887 = vmor %vm2885, %vm2886
  %v2888 = vsel %vm2887, %v2879, %v2884
  %v2889 = vrsqrt.pop %v2872
  %v2890 = vmul.f32 %v2889, %v2872
  %v2891 = vmul.f32 %v2890, %v2889
  %v2892 = vmul.f32 0.5, %v2891
  %v2893 = vsub.f32 1.5, %v2892
  %v2894 = vmul.f32 %v2889, %v2893
  %vm2895 = vweird.f32 %v2872
  %vm2896 = vweird.f32 %v2889
  %vm2897 = vmor %vm2895, %vm2896
  %v2898 = vsel %vm2897, %v2889, %v2894
  %v2899 = vrsqrt.pop %v2873
  %v2900 = vmul.f32 %v2899, %v2873
  %v2901 = vmul.f32 %v2900, %v2899
  %v2902 = vmul.f32 0.5, %v2901
  %v2903 = vsub.f32 1.5, %v2902
  %v2904 = vmul.f32 %v2899, %v2903
  %vm2905 = vweird.f32 %v2873
  %vm2906 = vweird.f32 %v2899
  %vm2907 = vmor %vm2905, %vm2906
  %v2908 = vsel %vm2907, %v2899, %v2904
  %v2909 = vrsqrt.pop %v2874
  %v2910 = vmul.f32 %v2909, %v2874
  %v2911 = vmul.f32 %v2910, %v2909
  %v2912 = vmul.f32 0.5, %v2911
  %v2913 = vsub.f32 1.5, %v2912
  %v2914 = vmul.f32 %v2909, %v2913
  %vm2915 = vweird.f32 %v2874
  %vm2916 = vweird.f32 %v2909
  %vm2917 = vmor %vm2915, %vm2916
  %v2918 = vsel %vm2917, %v2909, %v2914
  %v2919 = vrsqrt.pop %v2875
  %v2920 = vmul.f32 %v2919, %v2875
  %v2921 = vmul.f32 %v2920, %v2919
  %v2922 = vmul.f32 0.5, %v2921
  %v2923 = vsub.f32 1.5, %v2922
  %v2924 = vmul.f32 %v2919, %v2923
  %vm2925 = vweird.f32 %v2875
  %vm2926 = vweird.f32 %v2919
  %vm2927 = vmor %vm2925, %vm2926
  %v2928 = vsel %vm2927, %v2919, %v2924
  %v2929 = vrsqrt.pop %v2876
  %v2930 = vmul.f32 %v2929, %v2876
  %v2931 = vmul.f32 %v2930, %v2929
  %v2932 = vmul.f32 0.5, %v2931
  %v2933 = vsub.f32 1.5, %v2932
  %v2934 = vmul.f32 %v2929, %v2933
  %vm2935 = vweird.f32 %v2876
  %vm2936 = vweird.f32 %v2929
  %vm2937 = vmor %vm2935, %vm2936
  %v2938 = vsel %vm2937, %v2929, %v2934
  %v2939 = vrsqrt.pop %v2877
  %v2940 = vmul.f32 %v2939, %v2877
  %v2941 = vmul.f32 %v2940, %v2939
  %v2942 = vmul.f32 0.5, %v2941
  %v2943 = vsub.f32 1.5, %v2942
  %v2944 = vmul.f32 %v2939, %v2943
  %vm2945 = vweird.f32 %v2877
  %vm2946 = vweird.f32 %v2939
  %vm2947 = vmor %vm2945, %vm2946
  %v2948 = vsel %vm2947, %v2939, %v2944
  %v2949 = vrsqrt.pop %v2878
  %v2950 = vmul.f32 %v2949, %v2878
  %v2951 = vmul.f32 %v2950, %v2949
  %v2952 = vmul.f32 0.5, %v2951
  %v2953 = vsub.f32 1.5, %v2952
  %v2954 = vmul.f32 %v2949, %v2953
  %vm2955 = vweird.f32 %v2878
  %vm2956 = vweird.f32 %v2949
  %vm2957 = vmor %vm2955, %vm2956
  %v2958 = vsel %vm2957, %v2949, %v2954
  %v2959 = vmul.f32 %v2823, %v2888
  %v2960 = vmul.f32 %v2824, %v2898
  %v2961 = vmul.f32 %v2825, %v2908
  %v2962 = vmul.f32 %v2826, %v2918
  %v2963 = vmul.f32 %v2827, %v2928
  %v2964 = vmul.f32 %v2828, %v2938
  %v2965 = vmul.f32 %v2829, %v2948
  %v2966 = vmul.f32 %v2830, %v2958
  %v2967 = vperm.slane %v62, 2
  %v2968 = vmul.f32 %v2959, %v2967
  %v2969 = vmul.f32 %v2960, %v2967
  %v2970 = vmul.f32 %v2961, %v2967
  %v2971 = vmul.f32 %v2962, %v2967
  %v2972 = vmul.f32 %v2963, %v2967
  %v2973 = vmul.f32 %v2964, %v2967
  %v2974 = vmul.f32 %v2965, %v2967
  %v2975 = vmul.f32 %v2966, %v2967
  %v2976 = vperm.slane %v62, 3
  %v2977 = vadd.f32 %v2968, %v2976
  %v2978 = vadd.f32 %v2969, %v2976
  %v2979 = vadd.f32 %v2970, %v2976
  %v2980 = vadd.f32 %v2971, %v2976
  %v2981 = vadd.f32 %v2972, %v2976
  %v2982 = vadd.f32 %v2973, %v2976
  %v2983 = vadd.f32 %v2974, %v2976
  %v2984 = vadd.f32 %v2975, %v2976
  %v2985 = vld [vmem:[%s6] sm:$0xff]
  %v2986 = vld [vmem:[%s6 + $0x8] sm:$0xff]
  %v2987 = vld [vmem:[%s6 + $0x10] sm:$0xff]
  %v2988 = vld [vmem:[%s6 + $0x18] sm:$0xff]
  %v2989 = vld [vmem:[%s9] sm:$0x1]
  %v2991 = vperm.slane %v2989, 0
  %v2994 = vsel %vm116, %v2977, 0
  %v2997 = vsel %vm116, %v2978, 0
  %v3000 = vsel %vm116, %v2979, 0
  %v3003 = vsel %vm116, %v2980, 0
  %v3006 = vsel %vm116, %v2981, 0
  %v3009 = vsel %vm116, %v2982, 0
  %v3012 = vsel %vm116, %v2983, 0
  %v3015 = vsel %vm116, %v2984, 0
  %3017 = vmatpush.msra.mxu0 0.0
  %3018 = vmatpush.msra.mxu0 0.0
  %3019 = vmatpush.msra.mxu0 0.0
  %3020 = vmatpush.msra.mxu0 0.0
  %3021 = vmatpush.msra.mxu0 0.0
  %3022 = vmatpush.msra.mxu0 0.0
  %3023 = vmatpush.msra.mxu0 0.0
  %3024 = vmatpush.msra.mxu0 0.0
  %3025 = vmatpush.msra.mxu0 0.0
  %3026 = vmatpush.msra.mxu0 0.0
  %3027 = vmatpush.msra.mxu0 0.0
  %3028 = vmatpush.msra.mxu0 0.0
  %3029 = vmatpush.msra.mxu0 %v2988
  %3030 = vmatpush.msra.mxu0 %v2987
  %3031 = vmatpush.msra.mxu0 %v2986
  %3032 = vmatpush.msra.mxu0 %v2985
  %3033 = vmatmul.f32.gmra.mxu0 %v2994
  %v3034 = vpop.f32.mrf.mxu0
  %v3035 = vadd.f32 %v2991, %v3034
  %3036 = vmatmul.f32.gmra.mxu0 %v2997
  %v3037 = vpop.f32.mrf.mxu0
  %v3038 = vadd.f32 %v2991, %v3037
  %3039 = vmatmul.f32.gmra.mxu0 %v3000
  %v3040 = vpop.f32.mrf.mxu0
  %v3041 = vadd.f32 %v2991, %v3040
  %3042 = vmatmul.f32.gmra.mxu0 %v3003
  %v3043 = vpop.f32.mrf.mxu0
  %v3044 = vadd.f32 %v2991, %v3043
  %3045 = vmatmul.f32.gmra.mxu0 %v3006
  %v3046 = vpop.f32.mrf.mxu0
  %v3047 = vadd.f32 %v2991, %v3046
  %3048 = vmatmul.f32.gmra.mxu0 %v3009
  %v3049 = vpop.f32.mrf.mxu0
  %v3050 = vadd.f32 %v2991, %v3049
  %3051 = vmatmul.f32.gmra.mxu0 %v3012
  %v3052 = vpop.f32.mrf.mxu0
  %v3053 = vadd.f32 %v2991, %v3052
  %3054 = vmatmul.f32.gmra.mxu0 %v3015
  %v3055 = vpop.f32.mrf.mxu0
  %v3056 = vadd.f32 %v2991, %v3055
  %3057 = vdwg.mxu0
  %v3058 = vmax.f32 %v3035, 0.0
  %v3059 = vmax.f32 %v3038, 0.0
  %v3060 = vmax.f32 %v3041, 0.0
  %v3061 = vmax.f32 %v3044, 0.0
  %v3062 = vmax.f32 %v3047, 0.0
  %v3063 = vmax.f32 %v3050, 0.0
  %v3064 = vmax.f32 %v3053, 0.0
  %v3065 = vmax.f32 %v3056, 0.0
  %v3066 = vld [vmem:[%s7] sm:$0xff]
  %v3067 = vld [vmem:[%s7 + $0x8] sm:$0xff]
  %v3068 = vld [vmem:[%s7 + $0x10] sm:$0xff]
  %v3069 = vld [vmem:[%s7 + $0x18] sm:$0xff]
  %v3070 = vld [vmem:[%s7 + $0x20] sm:$0xff]
  %v3071 = vld [vmem:[%s7 + $0x28] sm:$0xff]
  %v3072 = vld [vmem:[%s7 + $0x30] sm:$0xff]
  %v3073 = vld [vmem:[%s7 + $0x38] sm:$0xff]
  %v3074 = vperm.slane %v62, 4
  %vm3075 = vcmask 523264
  %v3077 = vsel %vm3075, %v3058, 0
  %v3080 = vsel %vm3075, %v3059, 0
  %v3083 = vsel %vm3075, %v3060, 0
  %v3086 = vsel %vm3075, %v3061, 0
  %v3089 = vsel %vm3075, %v3062, 0
  %v3092 = vsel %vm3075, %v3063, 0
  %v3095 = vsel %vm3075, %v3064, 0
  %v3098 = vsel %vm3075, %v3065, 0
  %3100 = vmatpush.msra.mxu0 0.0
  %3101 = vmatpush.msra.mxu0 0.0
  %3102 = vmatpush.msra.mxu0 0.0
  %3103 = vmatpush.msra.mxu0 0.0
  %3104 = vmatpush.msra.mxu0 0.0
  %3105 = vmatpush.msra.mxu0 0.0
  %3106 = vmatpush.msra.mxu0 0.0
  %3107 = vmatpush.msra.mxu0 0.0
  %3108 = vmatpush.msra.mxu0 %v3073
  %3109 = vmatpush.msra.mxu0 %v3072
  %3110 = vmatpush.msra.mxu0 %v3071
  %3111 = vmatpush.msra.mxu0 %v3070
  %3112 = vmatpush.msra.mxu0 %v3069
  %3113 = vmatpush.msra.mxu0 %v3068
  %3114 = vmatpush.msra.mxu0 %v3067
  %3115 = vmatpush.msra.mxu0 %v3066
  %3116 = vmatmul.f32.gmra.mxu0 %v3077
  %v3117 = vpop.f32.mrf.mxu0
  %v3118 = vadd.f32 %v3074, %v3117
  %3119 = vmatmul.f32.gmra.mxu0 %v3080
  %v3120 = vpop.f32.mrf.mxu0
  %v3121 = vadd.f32 %v3074, %v3120
  %3122 = vmatmul.f32.gmra.mxu0 %v3083
  %v3123 = vpop.f32.mrf.mxu0
  %v3124 = vadd.f32 %v3074, %v3123
  %3125 = vmatmul.f32.gmra.mxu0 %v3086
  %v3126 = vpop.f32.mrf.mxu0
  %v3127 = vadd.f32 %v3074, %v3126
  %3128 = vmatmul.f32.gmra.mxu0 %v3089
  %v3129 = vpop.f32.mrf.mxu0
  %v3130 = vadd.f32 %v3074, %v3129
  %3131 = vmatmul.f32.gmra.mxu0 %v3092
  %v3132 = vpop.f32.mrf.mxu0
  %v3133 = vadd.f32 %v3074, %v3132
  %3134 = vmatmul.f32.gmra.mxu0 %v3095
  %v3135 = vpop.f32.mrf.mxu0
  %v3136 = vadd.f32 %v3074, %v3135
  %3137 = vmatmul.f32.gmra.mxu0 %v3098
  %v3138 = vpop.f32.mrf.mxu0
  %v3139 = vadd.f32 %v3074, %v3138
  %3140 = vdwg.mxu0
  %v3141 = vadd.f32 %v3118, %v2977
  %v3142 = vadd.f32 %v3121, %v2978
  %v3143 = vadd.f32 %v3124, %v2979
  %v3144 = vadd.f32 %v3127, %v2980
  %v3145 = vadd.f32 %v3130, %v2981
  %v3146 = vadd.f32 %v3133, %v2982
  %v3147 = vadd.f32 %v3136, %v2983
  %v3148 = vadd.f32 %v3139, %v2984
  %v3149 = vsel %vm116, %v3141, 0.0
  %3150 = vadd.xlane.f32.xlu0 %v3149
  %v3151 = vpop.xlane.xlu0 %3150
  %v3152 = vsel %vm116, %v3142, 0.0
  %3153 = vadd.xlane.f32.xlu0 %v3152
  %v3154 = vpop.xlane.xlu0 %3153
  %v3155 = vsel %vm116, %v3143, 0.0
  %3156 = vadd.xlane.f32.xlu0 %v3155
  %v3157 = vpop.xlane.xlu0 %3156
  %v3158 = vsel %vm116, %v3144, 0.0
  %3159 = vadd.xlane.f32.xlu0 %v3158
  %v3160 = vpop.xlane.xlu0 %3159
  %v3161 = vsel %vm116, %v3145, 0.0
  %3162 = vadd.xlane.f32.xlu0 %v3161
  %v3163 = vpop.xlane.xlu0 %3162
  %v3164 = vsel %vm116, %v3146, 0.0
  %3165 = vadd.xlane.f32.xlu0 %v3164
  %v3166 = vpop.xlane.xlu0 %3165
  %v3167 = vsel %vm116, %v3147, 0.0
  %3168 = vadd.xlane.f32.xlu0 %v3167
  %v3169 = vpop.xlane.xlu0 %3168
  %v3170 = vsel %vm116, %v3148, 0.0
  %3171 = vadd.xlane.f32.xlu0 %v3170
  %v3172 = vpop.xlane.xlu0 %3171
  %v3173 = vmul.f32 %v3151, %v2814
  %v3174 = vmul.f32 %v3154, %v2814
  %v3175 = vmul.f32 %v3157, %v2814
  %v3176 = vmul.f32 %v3160, %v2814
  %v3177 = vmul.f32 %v3163, %v2814
  %v3178 = vmul.f32 %v3166, %v2814
  %v3179 = vmul.f32 %v3169, %v2814
  %v3180 = vmul.f32 %v3172, %v2814
  %v3181 = vsub.f32 %v3141, %v3173
  %v3182 = vsub.f32 %v3142, %v3174
  %v3183 = vsub.f32 %v3143, %v3175
  %v3184 = vsub.f32 %v3144, %v3176
  %v3185 = vsub.f32 %v3145, %v3177
  %v3186 = vsub.f32 %v3146, %v3178
  %v3187 = vsub.f32 %v3147, %v3179
  %v3188 = vsub.f32 %v3148, %v3180
  %v3189 = vmul.f32 %v3181, %v3181
  %v3190 = vmul.f32 %v3182, %v3182
  %v3191 = vmul.f32 %v3183, %v3183
  %v3192 = vmul.f32 %v3184, %v3184
  %v3193 = vmul.f32 %v3185, %v3185
  %v3194 = vmul.f32 %v3186, %v3186
  %v3195 = vmul.f32 %v3187, %v3187
  %v3196 = vmul.f32 %v3188, %v3188
  %v3197 = vsel %vm116, %v3189, 0.0
  %3198 = vadd.xlane.f32.xlu0 %v3197
  %v3199 = vpop.xlane.xlu0 %3198
  %v3200 = vsel %vm116, %v3190, 0.0
  %3201 = vadd.xlane.f32.xlu0 %v3200
  %v3202 = vpop.xlane.xlu0 %3201
  %v3203 = vsel %vm116, %v3191, 0.0
  %3204 = vadd.xlane.f32.xlu0 %v3203
  %v3205 = vpop.xlane.xlu0 %3204
  %v3206 = vsel %vm116, %v3192, 0.0
  %3207 = vadd.xlane.f32.xlu0 %v3206
  %v3208 = vpop.xlane.xlu0 %3207
  %v3209 = vsel %vm116, %v3193, 0.0
  %3210 = vadd.xlane.f32.xlu0 %v3209
  %v3211 = vpop.xlane.xlu0 %3210
  %v3212 = vsel %vm116, %v3194, 0.0
  %3213 = vadd.xlane.f32.xlu0 %v3212
  %v3214 = vpop.xlane.xlu0 %3213
  %v3215 = vsel %vm116, %v3195, 0.0
  %3216 = vadd.xlane.f32.xlu0 %v3215
  %v3217 = vpop.xlane.xlu0 %3216
  %v3218 = vsel %vm116, %v3196, 0.0
  %3219 = vadd.xlane.f32.xlu0 %v3218
  %v3220 = vpop.xlane.xlu0 %3219
  %v3221 = vmul.f32 %v3199, %v2814
  %v3222 = vmul.f32 %v3202, %v2814
  %v3223 = vmul.f32 %v3205, %v2814
  %v3224 = vmul.f32 %v3208, %v2814
  %v3225 = vmul.f32 %v3211, %v2814
  %v3226 = vmul.f32 %v3214, %v2814
  %v3227 = vmul.f32 %v3217, %v2814
  %v3228 = vmul.f32 %v3220, %v2814
  %v3229 = vadd.f32 %v3221, 1e-05
  %v3230 = vadd.f32 %v3222, 1e-05
  %v3231 = vadd.f32 %v3223, 1e-05
  %v3232 = vadd.f32 %v3224, 1e-05
  %v3233 = vadd.f32 %v3225, 1e-05
  %v3234 = vadd.f32 %v3226, 1e-05
  %v3235 = vadd.f32 %v3227, 1e-05
  %v3236 = vadd.f32 %v3228, 1e-05
  %v3237 = vrsqrt.pop %v3229
  %v3238 = vmul.f32 %v3237, %v3229
  %v3239 = vmul.f32 %v3238, %v3237
  %v3240 = vmul.f32 0.5, %v3239
  %v3241 = vsub.f32 1.5, %v3240
  %v3242 = vmul.f32 %v3237, %v3241
  %vm3243 = vweird.f32 %v3229
  %vm3244 = vweird.f32 %v3237
  %vm3245 = vmor %vm3243, %vm3244
  %v3246 = vsel %vm3245, %v3237, %v3242
  %v3247 = vrsqrt.pop %v3230
  %v3248 = vmul.f32 %v3247, %v3230
  %v3249 = vmul.f32 %v3248, %v3247
  %v3250 = vmul.f32 0.5, %v3249
  %v3251 = vsub.f32 1.5, %v3250
  %v3252 = vmul.f32 %v3247, %v3251
  %vm3253 = vweird.f32 %v3230
  %vm3254 = vweird.f32 %v3247
  %vm3255 = vmor %vm3253, %vm3254
  %v3256 = vsel %vm3255, %v3247, %v3252
  %v3257 = vrsqrt.pop %v3231
  %v3258 = vmul.f32 %v3257, %v3231
  %v3259 = vmul.f32 %v3258, %v3257
  %v3260 = vmul.f32 0.5, %v3259
  %v3261 = vsub.f32 1.5, %v3260
  %v3262 = vmul.f32 %v3257, %v3261
  %vm3263 = vweird.f32 %v3231
  %vm3264 = vweird.f32 %v3257
  %vm3265 = vmor %vm3263, %vm3264
  %v3266 = vsel %vm3265, %v3257, %v3262
  %v3267 = vrsqrt.pop %v3232
  %v3268 = vmul.f32 %v3267, %v3232
  %v3269 = vmul.f32 %v3268, %v3267
  %v3270 = vmul.f32 0.5, %v3269
  %v3271 = vsub.f32 1.5, %v3270
  %v3272 = vmul.f32 %v3267, %v3271
  %vm3273 = vweird.f32 %v3232
  %vm3274 = vweird.f32 %v3267
  %vm3275 = vmor %vm3273, %vm3274
  %v3276 = vsel %vm3275, %v3267, %v3272
  %v3277 = vrsqrt.pop %v3233
  %v3278 = vmul.f32 %v3277, %v3233
  %v3279 = vmul.f32 %v3278, %v3277
  %v3280 = vmul.f32 0.5, %v3279
  %v3281 = vsub.f32 1.5, %v3280
  %v3282 = vmul.f32 %v3277, %v3281
  %vm3283 = vweird.f32 %v3233
  %vm3284 = vweird.f32 %v3277
  %vm3285 = vmor %vm3283, %vm3284
  %v3286 = vsel %vm3285, %v3277, %v3282
  %v3287 = vrsqrt.pop %v3234
  %v3288 = vmul.f32 %v3287, %v3234
  %v3289 = vmul.f32 %v3288, %v3287
  %v3290 = vmul.f32 0.5, %v3289
  %v3291 = vsub.f32 1.5, %v3290
  %v3292 = vmul.f32 %v3287, %v3291
  %vm3293 = vweird.f32 %v3234
  %vm3294 = vweird.f32 %v3287
  %vm3295 = vmor %vm3293, %vm3294
  %v3296 = vsel %vm3295, %v3287, %v3292
  %v3297 = vrsqrt.pop %v3235
  %v3298 = vmul.f32 %v3297, %v3235
  %v3299 = vmul.f32 %v3298, %v3297
  %v3300 = vmul.f32 0.5, %v3299
  %v3301 = vsub.f32 1.5, %v3300
  %v3302 = vmul.f32 %v3297, %v3301
  %vm3303 = vweird.f32 %v3235
  %vm3304 = vweird.f32 %v3297
  %vm3305 = vmor %vm3303, %vm3304
  %v3306 = vsel %vm3305, %v3297, %v3302
  %v3307 = vrsqrt.pop %v3236
  %v3308 = vmul.f32 %v3307, %v3236
  %v3309 = vmul.f32 %v3308, %v3307
  %v3310 = vmul.f32 0.5, %v3309
  %v3311 = vsub.f32 1.5, %v3310
  %v3312 = vmul.f32 %v3307, %v3311
  %vm3313 = vweird.f32 %v3236
  %vm3314 = vweird.f32 %v3307
  %vm3315 = vmor %vm3313, %vm3314
  %v3316 = vsel %vm3315, %v3307, %v3312
  %v3317 = vmul.f32 %v3181, %v3246
  %v3318 = vmul.f32 %v3182, %v3256
  %v3319 = vmul.f32 %v3183, %v3266
  %v3320 = vmul.f32 %v3184, %v3276
  %v3321 = vmul.f32 %v3185, %v3286
  %v3322 = vmul.f32 %v3186, %v3296
  %v3323 = vmul.f32 %v3187, %v3306
  %v3324 = vmul.f32 %v3188, %v3316
  %v3325 = vperm.slane %v62, 5
  %v3326 = vmul.f32 %v3317, %v3325
  %v3327 = vmul.f32 %v3318, %v3325
  %v3328 = vmul.f32 %v3319, %v3325
  %v3329 = vmul.f32 %v3320, %v3325
  %v3330 = vmul.f32 %v3321, %v3325
  %v3331 = vmul.f32 %v3322, %v3325
  %v3332 = vmul.f32 %v3323, %v3325
  %v3333 = vmul.f32 %v3324, %v3325
  %v3334 = vperm.slane %v62, 6
  %v3335 = vadd.f32 %v3326, %v3334
  %v3336 = vadd.f32 %v3327, %v3334
  %v3337 = vadd.f32 %v3328, %v3334
  %v3338 = vadd.f32 %v3329, %v3334
  %v3339 = vadd.f32 %v3330, %v3334
  %v3340 = vadd.f32 %v3331, %v3334
  %v3341 = vadd.f32 %v3332, %v3334
  %v3342 = vadd.f32 %v3333, %v3334
  %3343 = vst.msk [vmem:[%s11] sm:$0xff] %vm116, %v3335
  %3344 = vst.msk [vmem:[%s11 + $0x8] sm:$0xff] %vm116, %v3336
  %3345 = vst.msk [vmem:[%s11 + $0x10] sm:$0xff] %vm116, %v3337
  %3346 = vst.msk [vmem:[%s11 + $0x18] sm:$0xff] %vm116, %v3338
  %3347 = vst.msk [vmem:[%s11 + $0x20] sm:$0xff] %vm116, %v3339
  %3348 = vst.msk [vmem:[%s11 + $0x28] sm:$0xff] %vm116, %v3340
  %3349 = vst.msk [vmem:[%s11 + $0x30] sm:$0xff] %vm116, %v3341
  %3350 = vst.msk [vmem:[%s11 + $0x38] sm:$0xff] %vm116, %v3342
  // Predicated region
  $region46: #{tpu_custom_call.1} parent=0 // pred_check
    _
  $region47: #{tpu_custom_call.1} parent=0 // pred_check_branch
    %3352 = sbr.rel (0) target = $region49
  $region48: #{tpu_custom_call.1} parent=0 // pred_region
    _
  $region49: #{tpu_custom_call.1} parent=0 // pred_fallthru
    _
  // Predicated region
  $region50: #{tpu_custom_call.1} parent=0 // pred_check
    _
  $region51: #{tpu_custom_call.1} parent=0 // pred_check_branch
    %3354 = sbr.rel (0) target = $region53
  $region52: #{tpu_custom_call.1} parent=0 // pred_region
    _
  $region53: #{tpu_custom_call.1} parent=0 // pred_fallthru
    _

</llo_original>
